<compile_context>
chip_gen: v7x
topology: tpu7x:2x2x1
jax: 0.10.0
libtpu: 0.0.40
codegen_flags: <defaults>
</compile_context>

<pallas_src>
import functools

import jax
import jax.numpy as jnp
from jax import lax
from jax.experimental import pallas as pl
from jax.experimental.pallas import tpu as pltpu

EPS = 1e-5   # nn.GroupNorm default eps
LANE = 128   # TPU lane width: keep channel dims lane-dense


def _round_up(v, m):
    return ((v + m - 1) // m) * m


def _vmem_capacity_bytes():
    try:
        info = pltpu.get_tpu_info()
        cap = getattr(info, "vmem_capacity_bytes", None)
        if cap:
            return int(cap)
    except Exception:
        pass
    return 64 * 1024 * 1024   # conservative default: v7x per-TensorCore VMEM


def _vmem_plan(B, T, Tp, Cin_p, Cout_p, K, G, compute_dtype):
    """Generation-gated VMEM budget -> (block_batch Bb, vmem_limit_bytes).

    v5e/v6e (128 MiB VMEM): ~100 MiB scoped limit, up to 1024-row tiles.
    v7x (64 MiB VMEM): ~51 MiB scoped limit, up to 512-row tiles.
    """
    bytes_c = jnp.finfo(compute_dtype).bits // 8
    cap = _vmem_capacity_bytes()
    vmem_limit = min(int(cap * 0.80), 100 * 1024 * 1024)
    budget = int(vmem_limit * 0.85)            # headroom for compiler scratch

    # Grid-invariant operands. Counted double-buffered so the plan stays valid
    # even if the Buffered(1) request is not honoured by this jax version.
    fixed = 2 * ((K * Cin_p * Cout_p + K * Cout_p * Cout_p) * bytes_c
                 + Cin_p * Cout_p * 4          # residual weight kept f32
                 + 9 * Cout_p * 4              # conv biases / GN gamma,beta / res bias
                 + 2 * G * Cout_p * 4)         # GN one-hot matrices

    per_sample = (2 * Tp * Cin_p * bytes_c     # x block (double buffered)
                  + 2 * 2 * Cout_p * 4         # FiLM scale/bias (double buffered)
                  + 2 * T * Cout_p * 4         # f32 output block (double buffered)
                  + Tp * Cout_p * bytes_c      # h_scratch
                  + 4 * T * Cout_p * 4)        # f32 conv/GN/Mish temporaries

    max_rows = 1024 if cap >= 96 * 1024 * 1024 else 512   # MXU M-tile multiples
    bb = 1
    for c in range(1, B + 1):
        if B % c:
            continue
        if c > 1 and c * T > max_rows:
            break
        if c == 1 or fixed + c * per_sample <= budget:
            bb = c
    return bb, vmem_limit


# ----------------------------- kernel helpers -----------------------------

def _mish(x, approx_recip):
    # mish(x) = x * tanh(softplus(x)) = x * t / (t + 2)  with t = e^x * (e^x + 2)
    # -> one exp + one reciprocal; approx reciprocal goes to the EUP slot.
    e = jnp.exp(jnp.minimum(x, 20.0))
    t = e * (e + 2.0)
    y = x * t * pl.reciprocal(t + 2.0, approx=approx_recip)
    return jnp.where(x > 20.0, x, y)


def _conv1d_taps(tap, w_ref, b_ref, K, rows):
    """'same' Conv1d as K accumulating MXU matmuls over a time-padded operand.

    Written as a single summed expression with the bias added once at the end
    (no zeros memset / per-tap VPU add chain; MRB-friendly on v7x).
    tap(k) -> [Bb, T, Cin] window k; w_ref: [K, Cin, Cout]; b_ref: [1, Cout] f32.
    Returns [rows, Cout] f32 (f32 accumulation on the MXU).
    """
    acc = jnp.dot(tap(0).reshape(rows, -1), w_ref[0],
                  preferred_element_type=jnp.float32)
    for k in range(1, K):
        acc = acc + jnp.dot(tap(k).reshape(rows, -1), w_ref[k],
                            preferred_element_type=jnp.float32)
    return acc + b_ref[...].astype(jnp.float32)


def _group_norm(y, gamma_ref, beta_ref, mcg_ref, mgc_ref, inv_n):
    """Per-sample GroupNorm. y: [Bb, T, C] f32.

    Group statistics gathered with one-hot matmuls; the two channel->group
    dots and the two group->channel dots are each fused into one by stacking
    operands along sublanes (halves MXU pushes). Padded channels map to no
    group so they stay exactly zero.
    """
    Bb = y.shape[0]
    sum_c = jnp.sum(y, axis=1)                                   # [Bb, C]
    sumsq_c = jnp.sum(y * y, axis=1)                             # [Bb, C]
    stats = jnp.concatenate([sum_c, sumsq_c], axis=0)            # [2Bb, C]
    gstats = jnp.dot(stats, mcg_ref[...],
                     preferred_element_type=jnp.float32)         # [2Bb, G]
    gmean = gstats[:Bb] * inv_n
    # TODO(synk): single-pass E[x^2]-E[x]^2 (clamped at 0); switch to a
    # mean-shifted sumsq if T*group_size grows very large.
    gvar = jnp.maximum(gstats[Bb:] * inv_n - gmean * gmean, 0.0)
    packed = jnp.concatenate([gmean, lax.rsqrt(gvar + EPS)], axis=0)  # [2Bb, G]
    cstats = jnp.dot(packed, mgc_ref[...],
                     preferred_element_type=jnp.float32)         # [2Bb, C]
    mean_c = cstats[:Bb][:, None, :]
    rstd_c = cstats[Bb:][:, None, :]
    # fold gamma/beta into one per-(sample,channel) scale/bias -> 1 mul + 1 add on y
    scale = rstd_c * gamma_ref[...].astype(jnp.float32)
    bias = beta_ref[...].astype(jnp.float32) - mean_c * scale
    return y * scale + bias


# --------------------------------- kernel ---------------------------------

def crb1d_kernel(x_ref, scale_ref, fbias_ref,
                 w0_ref, b0_ref, g0w_ref, g0b_ref,
                 w1_ref, b1_ref, g1w_ref, g1b_ref,
                 wr_ref, br_ref, mcg_ref, mgc_ref,
                 o_ref,
                 h_scratch,
                 *, K, T, group_size, approx_recip):
    Bb, _, Cout = o_ref.shape          # Cout is the padded (lane-dense) count
    pad = K // 2
    rows = Bb * T
    inv_n = 1.0 / float(T * group_size)   # GN count over real channels only

    # ---- block 0: Conv1d (time-padded input) -> GroupNorm -> Mish ----
    h = _conv1d_taps(lambda k: x_ref[:, pl.ds(k, T), :],
                     w0_ref, b0_ref, K, rows).reshape(Bb, T, Cout)
    h = _group_norm(h, g0w_ref, g0b_ref, mcg_ref, mgc_ref, inv_n)
    h = _mish(h, approx_recip)

    # ---- FiLM conditioning (per-sample scale/bias precomputed in the wrapper) ----
    h = scale_ref[...] * h + fbias_ref[...]

    # ---- stage h into a zero-padded VMEM scratch for the second conv's taps ----
    # Pad rows are re-zeroed every step on purpose: the grid axis is "parallel"
    # (megacore-sharded on v7x), so a pl.when(program_id == 0) init would never
    # run on the second TensorCore.
    if pad > 0:
        zeros = jnp.zeros((Bb, pad, Cout), h_scratch.dtype)
        h_scratch[:, pl.ds(0, pad), :] = zeros
        h_scratch[:, pl.ds(T + pad, pad), :] = zeros
    h_scratch[:, pl.ds(pad, T), :] = h.astype(h_scratch.dtype)

    # ---- block 1: Conv1d -> GroupNorm -> Mish ----
    h = _conv1d_taps(lambda k: h_scratch[:, pl.ds(k, T), :],
                     w1_ref, b1_ref, K, rows).reshape(Bb, T, Cout)
    h = _group_norm(h, g1w_ref, g1b_ref, mcg_ref, mgc_ref, inv_n)
    h = _mish(h, approx_recip)

    # ---- residual 1x1 conv, kept in f32 (wr/br never cast to bf16) so the skip
    # path only carries the bf16 rounding of x ----
    xc = x_ref[:, pl.ds(pad, T), :].astype(jnp.float32)   # un-padded center slice
    res = jnp.dot(xc.reshape(rows, xc.shape[-1]), wr_ref[...],
                  preferred_element_type=jnp.float32) + br_ref[...]
    o_ref[...] = (h + res.reshape(Bb, T, Cout)).astype(o_ref.dtype)


# --------------------------------- wrapper ---------------------------------

def _group_onehots(c_pad, g, gs):
    # m_cg[c, g] = 1 iff real channel c belongs to group g (padded channels
    # belong to no group). Built once with XLA in the wrapper, not per step.
    ch = jnp.arange(c_pad, dtype=jnp.int32)[:, None]
    lo = (jnp.arange(g, dtype=jnp.int32) * gs)[None, :]
    m_cg = ((ch >= lo) & (ch < lo + gs)).astype(jnp.float32)   # [c_pad, g]
    return m_cg, m_cg.T                                        # [g, c_pad]


def conditional_residual_block_1d(x_nct, cond, params, *, n_groups=8, kernel_size=3,
                                  compute_dtype=jnp.bfloat16, block_batch=None):
    """x_nct: [B, Cin, T] (PyTorch NCW), cond: [B, cond_dim] -> [B, Cout, T].

    compute_dtype sets the MXU operand precision for the convs (bf16 is the
    fast path on all of v5e/v6e/v7x); accumulation, GN statistics, elementwise
    math and the residual 1x1 GEMM always stay f32.
    """
    B, Cin, T = x_nct.shape
    K = kernel_size
    pad = K // 2
    Cout = params["g0_w"].shape[1]
    G = n_groups
    assert Cout % G == 0
    gs = Cout // G

    Cin_p = _round_up(Cin, LANE)
    Cout_p = _round_up(Cout, LANE)
    Tp = T + 2 * pad
    f32 = jnp.float32

    Bb, vmem_limit = _vmem_plan(B, T, Tp, Cin_p, Cout_p, K, G, compute_dtype)
    if block_batch is not None:
        Bb = block_batch
    assert B % Bb == 0

    # TODO(synk): if the surrounding model keeps activations channels-last and
    # lane-padded, drop these NCW<->NWC transposes / channel pads (each is a
    # full HBM round trip of the activation).
    x = jnp.transpose(x_nct, (0, 2, 1)).astype(f32)
    x = jnp.pad(x, ((0, 0), (pad, pad), (0, Cin_p - Cin))).astype(compute_dtype)

    # FiLM conditioning hoisted to one batched XLA GEMM: Mish -> Linear -> split
    c = cond.astype(f32)
    emb = (c * jnp.tanh(jax.nn.softplus(c))) @ params["wc"].astype(f32) \
        + params["bc"].astype(f32)
    scale = jnp.pad(emb[:, :Cout], ((0, 0), (0, Cout_p - Cout)))[:, None, :]
    fbias = jnp.pad(emb[:, Cout:], ((0, 0), (0, Cout_p - Cout)))[:, None, :]

    # weights: zero-pad channel dims so padded lanes stay exactly zero
    def pad_w3(w, ci, co):   # [K, Cin, Cout]
        return jnp.pad(w.astype(f32), ((0, 0), (0, ci - w.shape[1]),
                                       (0, co - w.shape[2]))).astype(compute_dtype)

    def pad_vec(v):          # [1, C] -> [1, Cout_p], kept f32 for elementwise math
        return jnp.pad(v.astype(f32), ((0, 0), (0, Cout_p - v.shape[1])))

    w0 = pad_w3(params["w0"], Cin_p, Cout_p)
    w1 = pad_w3(params["w1"], Cout_p, Cout_p)
    wr = jnp.pad(params["wr"].astype(f32),
                 ((0, Cin_p - Cin), (0, Cout_p - Cout)))   # residual weight stays f32
    b0, b1, br = pad_vec(params["b0"]), pad_vec(params["b1"]), pad_vec(params["br"])
    g0w, g0b = pad_vec(params["g0_w"]), pad_vec(params["g0_b"])
    g1w, g1b = pad_vec(params["g1_w"]), pad_vec(params["g1_b"])
    m_cg, m_gc = _group_onehots(Cout_p, G, gs)

    kernel = functools.partial(crb1d_kernel, K=K, T=T, group_size=gs,
                               approx_recip=(compute_dtype != jnp.float32))

    def build_and_call(single_buffer_weights):
        pm = pl.Buffered(1) if single_buffer_weights else None

        def wspec(shape):   # grid-invariant operand (never re-fetched)
            idx = (lambda b: (0, 0)) if len(shape) == 2 else (lambda b: (0, 0, 0))
            if pm is None:
                return pl.BlockSpec(shape, idx)
            return pl.BlockSpec(shape, idx, pipeline_mode=pm)

        grid_spec = pltpu.PrefetchScalarGridSpec(
            num_scalar_prefetch=0,
            grid=(B // Bb,),
            in_specs=[
                pl.BlockSpec((Bb, Tp, Cin_p), lambda b: (b, 0, 0)),   # x (time-padded)
                pl.BlockSpec((Bb, 1, Cout_p), lambda b: (b, 0, 0)),   # FiLM scale
                pl.BlockSpec((Bb, 1, Cout_p), lambda b: (b, 0, 0)),   # FiLM bias
                wspec((K, Cin_p, Cout_p)),                            # conv0 weight
                wspec((1, Cout_p)),                                   # conv0 bias
                wspec((1, Cout_p)),                                   # gn0 gamma
                wspec((1, Cout_p)),                                   # gn0 beta
                wspec((K, Cout_p, Cout_p)),                           # conv1 weight
                wspec((1, Cout_p)),                                   # conv1 bias
                wspec((1, Cout_p)),                                   # gn1 gamma
                wspec((1, Cout_p)),                                   # gn1 beta
                wspec((Cin_p, Cout_p)),                               # residual weight (f32)
                wspec((1, Cout_p)),                                   # residual bias
                wspec((Cout_p, G)),                                   # GN one-hot C->G
                wspec((G, Cout_p)),                                   # GN one-hot G->C
            ],
            out_specs=pl.BlockSpec((Bb, T, Cout_p), lambda b: (b, 0, 0)),
            scratch_shapes=[pltpu.VMEM((Bb, Tp, Cout_p), compute_dtype)],
        )
        return pl.pallas_call(
            kernel,
            out_shape=jax.ShapeDtypeStruct((B, T, Cout_p), jnp.float32),
            grid_spec=grid_spec,
            compiler_params=pltpu.CompilerParams(
                dimension_semantics=("parallel",),
                vmem_limit_bytes=int(vmem_limit),
            ),
        )(x, scale, fbias, w0, b0, g0w, g0b, w1, b1, g1w, g1b, wr, br, m_cg, m_gc)

    try:
        out = build_and_call(True)    # single-buffer the grid-invariant weights
    except Exception:
        # pipeline_mode=pl.Buffered(1) not supported by this jax version's
        # top-level pallas_call: fall back to default double buffering.
        out = build_and_call(False)

    # strip channel padding, back to PyTorch NCW
    return jnp.transpose(out[:, :, :Cout], (0, 2, 1))


# --------------------------- pure-JAX reference ---------------------------

def _ref_forward(x_nct, cond, params, *, n_groups=8, kernel_size=3):
    K = kernel_size
    Cout = params["g0_w"].shape[1]

    def conv1d(x, w_kio, b):  # x [B,Cin,T], w_kio [K,Cin,Cout], b [1,Cout]
        w = jnp.transpose(w_kio, (2, 1, 0))  # [Cout, Cin, K]
        y = lax.conv_general_dilated(
            x, w, window_strides=(1,), padding=((K // 2, K // 2),),
            dimension_numbers=("NCH", "OIH", "NCH"),
            precision=lax.Precision.HIGHEST)
        return y + b[0][None, :, None]

    def gn(x, gamma, beta):
        B, C, T = x.shape
        xr = x.reshape(B, n_groups, C // n_groups, T)
        mean = xr.mean(axis=(2, 3), keepdims=True)
        var = xr.var(axis=(2, 3), keepdims=True)
        xn = ((xr - mean) / jnp.sqrt(var + EPS)).reshape(B, C, T)
        return xn * gamma[0][None, :, None] + beta[0][None, :, None]

    def mish(x):
        return x * jnp.tanh(jax.nn.softplus(x))

    out = mish(gn(conv1d(x_nct, params["w0"], params["b0"]),
                  params["g0_w"], params["g0_b"]))
    emb = jnp.dot(mish(cond), params["wc"], precision=lax.Precision.HIGHEST) + params["bc"][0]
    scale = emb[:, :Cout][:, :, None]
    bias = emb[:, Cout:][:, :, None]
    out = scale * out + bias
    out = mish(gn(conv1d(out, params["w1"], params["b1"]),
                  params["g1_w"], params["g1_b"]))
    res = jnp.einsum("bct,co->bot", x_nct, params["wr"],
                     precision=lax.Precision.HIGHEST) + params["br"][0][None, :, None]
    return out + res


# ----------------------------------- main -----------------------------------

if __name__ == "__main__":
    B, Cin, Cout, T, D, K, G = 2, 8, 16, 16, 32, 3, 8

    key = jax.random.PRNGKey(0)
    keys = jax.random.split(key, 10)

    params = {
        # conv weights stored as [K, Cin, Cout] (kernel layout)
        "w0": 0.1 * jax.random.normal(keys[0], (K, Cin, Cout), jnp.float32),
        "b0": 0.1 * jax.random.normal(keys[1], (1, Cout), jnp.float32),
        "g0_w": jnp.ones((1, Cout), jnp.float32),
        "g0_b": jnp.zeros((1, Cout), jnp.float32),
        "wc": 0.1 * jax.random.normal(keys[2], (D, 2 * Cout), jnp.float32),
        "bc": 0.1 * jax.random.normal(keys[3], (1, 2 * Cout), jnp.float32),
        "w1": 0.1 * jax.random.normal(keys[4], (K, Cout, Cout), jnp.float32),
        "b1": 0.1 * jax.random.normal(keys[5], (1, Cout), jnp.float32),
        "g1_w": jnp.ones((1, Cout), jnp.float32),
        "g1_b": jnp.zeros((1, Cout), jnp.float32),
        # residual 1x1 conv (Cin != Cout here); if Cin == Cout pass eye / zeros
        "wr": (0.1 * jax.random.normal(keys[6], (Cin, Cout), jnp.float32)
               if Cin != Cout else jnp.eye(Cin, dtype=jnp.float32)),
        "br": (0.1 * jax.random.normal(keys[7], (1, Cout), jnp.float32)
               if Cin != Cout else jnp.zeros((1, Cout), jnp.float32)),
    }

    x = jax.random.normal(keys[8], (B, Cin, T), jnp.float32)     # PyTorch NCW
    cond = jax.random.normal(keys[9], (B, D), jnp.float32)

    ref = jax.block_until_ready(_ref_forward(x, cond, params, n_groups=G, kernel_size=K))

    # f32 MXU operands: strict check against the reference
    out = jax.block_until_ready(conditional_residual_block_1d(
        x, cond, params, n_groups=G, kernel_size=K, compute_dtype=jnp.float32))
    assert out.shape == (B, Cout, T), out.shape
    assert jnp.allclose(out, ref, rtol=1e-3, atol=1e-3), float(jnp.max(jnp.abs(out - ref)))

    # bf16 MXU operands (default fast path on v5e/v6e/v7x; f32 accumulation,
    # GN statistics and residual GEMM): looser tolerance for operand rounding
    out_bf16 = jax.block_until_ready(conditional_residual_block_1d(
        x, cond, params, n_groups=G, kernel_size=K, compute_dtype=jnp.bfloat16))
    assert jnp.allclose(out_bf16, ref, rtol=5e-2, atol=5e-2), \
        float(jnp.max(jnp.abs(out_bf16 - ref)))

    print("KERNEL_OK")
</pallas_src>

<mosaic_0001>
module attributes {stable_mosaic.version = 11 : i64} {
  func.func @crb1d_kernel(%arg0: i32, %arg1: memref<2x18x128xf32, #tpu.memory_space<vmem>>, %arg2: memref<2x1x128xf32, #tpu.memory_space<vmem>>, %arg3: memref<2x1x128xf32, #tpu.memory_space<vmem>>, %arg4: memref<3x128x128xf32, #tpu.memory_space<vmem>>, %arg5: memref<1x128xf32, #tpu.memory_space<vmem>>, %arg6: memref<1x128xf32, #tpu.memory_space<vmem>>, %arg7: memref<1x128xf32, #tpu.memory_space<vmem>>, %arg8: memref<3x128x128xf32, #tpu.memory_space<vmem>>, %arg9: memref<1x128xf32, #tpu.memory_space<vmem>>, %arg10: memref<1x128xf32, #tpu.memory_space<vmem>>, %arg11: memref<1x128xf32, #tpu.memory_space<vmem>>, %arg12: memref<128x128xf32, #tpu.memory_space<vmem>>, %arg13: memref<1x128xf32, #tpu.memory_space<vmem>>, %arg14: memref<128x8xf32, #tpu.memory_space<vmem>>, %arg15: memref<8x128xf32, #tpu.memory_space<vmem>>, %arg16: memref<2x16x128xf32, #tpu.memory_space<vmem>>, %arg17: memref<2x18x128xf32, #tpu.memory_space<vmem>>) attributes {dimension_semantics = [#tpu.dimension_semantics<parallel>], iteration_bounds = array<i64: 1>, scalar_prefetch = 0 : i64, scratch_operands = 1 : i64, tpu.core_type = #tpu.core_type<tc>, window_params = [{transform_indices = @transform_0, window_bounds = array<i64: 2, 18, 128>}, {transform_indices = @transform_1, window_bounds = array<i64: 2, 1, 128>}, {transform_indices = @transform_2, window_bounds = array<i64: 2, 1, 128>}, {pipeline_mode = #tpu.pipeline_mode<synchronous>, transform_indices = @transform_3, window_bounds = array<i64: 3, 128, 128>}, {pipeline_mode = #tpu.pipeline_mode<synchronous>, transform_indices = @transform_4, window_bounds = array<i64: 1, 128>}, {pipeline_mode = #tpu.pipeline_mode<synchronous>, transform_indices = @transform_5, window_bounds = array<i64: 1, 128>}, {pipeline_mode = #tpu.pipeline_mode<synchronous>, transform_indices = @transform_6, window_bounds = array<i64: 1, 128>}, {pipeline_mode = #tpu.pipeline_mode<synchronous>, transform_indices = @transform_7, window_bounds = array<i64: 3, 128, 128>}, {pipeline_mode = #tpu.pipeline_mode<synchronous>, transform_indices = @transform_8, window_bounds = array<i64: 1, 128>}, {pipeline_mode = #tpu.pipeline_mode<synchronous>, transform_indices = @transform_9, window_bounds = array<i64: 1, 128>}, {pipeline_mode = #tpu.pipeline_mode<synchronous>, transform_indices = @transform_10, window_bounds = array<i64: 1, 128>}, {pipeline_mode = #tpu.pipeline_mode<synchronous>, transform_indices = @transform_11, window_bounds = array<i64: 128, 128>}, {pipeline_mode = #tpu.pipeline_mode<synchronous>, transform_indices = @transform_12, window_bounds = array<i64: 1, 128>}, {pipeline_mode = #tpu.pipeline_mode<synchronous>, transform_indices = @transform_13, window_bounds = array<i64: 128, 8>}, {pipeline_mode = #tpu.pipeline_mode<synchronous>, transform_indices = @transform_14, window_bounds = array<i64: 8, 128>}, {transform_indices = @transform_15, window_bounds = array<i64: 2, 16, 128>}]} {
    %c0 = arith.constant 0 : index
    %c0_0 = arith.constant 0 : index
    %c0_1 = arith.constant 0 : index
    %0 = vector.load %arg1[%c0, %c0_0, %c0_1] : memref<2x18x128xf32, #tpu.memory_space<vmem>>, vector<2x16x128xf32>
    %1 = vector.shape_cast %0 : vector<2x16x128xf32> to vector<32x128xf32>
    %c0_2 = arith.constant 0 : index
    %c0_3 = arith.constant 0 : index
    %c0_4 = arith.constant 0 : index
    %2 = vector.load %arg4[%c0_2, %c0_3, %c0_4] : memref<3x128x128xf32, #tpu.memory_space<vmem>>, vector<1x128x128xf32>
    %3 = vector.shape_cast %2 : vector<1x128x128xf32> to vector<128x128xf32>
    %cst = arith.constant dense<0.000000e+00> : vector<32x128xf32>
    %4 = tpu.matmul %1, %3, %cst {dimension_numbers = #tpu.dot_dimension_numbers<[1], [0], [0], [1], [0, 0, 1, 1], [], []>} : vector<32x128xf32>, vector<128x128xf32>, vector<32x128xf32> -> vector<32x128xf32>
    %c0_5 = arith.constant 0 : index
    %c1 = arith.constant 1 : index
    %c0_6 = arith.constant 0 : index
    %5 = vector.load %arg1[%c0_5, %c1, %c0_6] : memref<2x18x128xf32, #tpu.memory_space<vmem>>, vector<2x16x128xf32>
    %6 = vector.shape_cast %5 : vector<2x16x128xf32> to vector<32x128xf32>
    %c1_7 = arith.constant 1 : index
    %c0_8 = arith.constant 0 : index
    %c0_9 = arith.constant 0 : index
    %7 = vector.load %arg4[%c1_7, %c0_8, %c0_9] : memref<3x128x128xf32, #tpu.memory_space<vmem>>, vector<1x128x128xf32>
    %8 = vector.shape_cast %7 : vector<1x128x128xf32> to vector<128x128xf32>
    %cst_10 = arith.constant dense<0.000000e+00> : vector<32x128xf32>
    %9 = tpu.matmul %6, %8, %cst_10 {dimension_numbers = #tpu.dot_dimension_numbers<[1], [0], [0], [1], [0, 0, 1, 1], [], []>} : vector<32x128xf32>, vector<128x128xf32>, vector<32x128xf32> -> vector<32x128xf32>
    %10 = arith.addf %4, %9 : vector<32x128xf32>
    %c0_11 = arith.constant 0 : index
    %c2 = arith.constant 2 : index
    %c0_12 = arith.constant 0 : index
    %11 = vector.load %arg1[%c0_11, %c2, %c0_12] : memref<2x18x128xf32, #tpu.memory_space<vmem>>, vector<2x16x128xf32>
    %12 = vector.shape_cast %11 : vector<2x16x128xf32> to vector<32x128xf32>
    %c2_13 = arith.constant 2 : index
    %c0_14 = arith.constant 0 : index
    %c0_15 = arith.constant 0 : index
    %13 = vector.load %arg4[%c2_13, %c0_14, %c0_15] : memref<3x128x128xf32, #tpu.memory_space<vmem>>, vector<1x128x128xf32>
    %14 = vector.shape_cast %13 : vector<1x128x128xf32> to vector<128x128xf32>
    %cst_16 = arith.constant dense<0.000000e+00> : vector<32x128xf32>
    %15 = tpu.matmul %12, %14, %cst_16 {dimension_numbers = #tpu.dot_dimension_numbers<[1], [0], [0], [1], [0, 0, 1, 1], [], []>} : vector<32x128xf32>, vector<128x128xf32>, vector<32x128xf32> -> vector<32x128xf32>
    %16 = arith.addf %10, %15 : vector<32x128xf32>
    %c0_17 = arith.constant 0 : index
    %c0_18 = arith.constant 0 : index
    %17 = vector.load %arg5[%c0_17, %c0_18] : memref<1x128xf32, #tpu.memory_space<vmem>>, vector<1x128xf32>
    %18 = vector.broadcast %17 : vector<1x128xf32> to vector<32x128xf32>
    %19 = arith.addf %16, %18 : vector<32x128xf32>
    %20 = vector.shape_cast %19 : vector<32x128xf32> to vector<2x16x128xf32>
    %cst_19 = arith.constant dense<0.000000e+00> : vector<2x128xf32>
    %21 = vector.multi_reduction <add>, %20, %cst_19 [1] : vector<2x16x128xf32> to vector<2x128xf32>
    %22 = arith.mulf %20, %20 : vector<2x16x128xf32>
    %cst_20 = arith.constant dense<0.000000e+00> : vector<2x128xf32>
    %23 = vector.multi_reduction <add>, %22, %cst_20 [1] : vector<2x16x128xf32> to vector<2x128xf32>
    %24 = tpu.concatenate %21, %23 in 0 : vector<2x128xf32>, vector<2x128xf32> -> vector<4x128xf32>
    %c0_21 = arith.constant 0 : index
    %c0_22 = arith.constant 0 : index
    %25 = vector.load %arg14[%c0_21, %c0_22] : memref<128x8xf32, #tpu.memory_space<vmem>>, vector<128x8xf32>
    %cst_23 = arith.constant dense<0.000000e+00> : vector<4x8xf32>
    %26 = tpu.matmul %24, %25, %cst_23 {dimension_numbers = #tpu.dot_dimension_numbers<[1], [0], [0], [1], [0, 0, 1, 1], [], []>} : vector<4x128xf32>, vector<128x8xf32>, vector<4x8xf32> -> vector<4x8xf32>
    %27 = vector.extract_strided_slice %26 {offsets = [0, 0], sizes = [2, 8], strides = [1, 1]} : vector<4x8xf32> to vector<2x8xf32>
    %cst_24 = arith.constant 3.125000e-02 : f32
    %28 = vector.broadcast %cst_24 : f32 to vector<2x8xf32>
    %29 = arith.mulf %27, %28 : vector<2x8xf32>
    %30 = vector.extract_strided_slice %26 {offsets = [2, 0], sizes = [2, 8], strides = [1, 1]} : vector<4x8xf32> to vector<2x8xf32>
    %cst_25 = arith.constant 3.125000e-02 : f32
    %31 = vector.broadcast %cst_25 : f32 to vector<2x8xf32>
    %32 = arith.mulf %30, %31 : vector<2x8xf32>
    %33 = arith.mulf %29, %29 : vector<2x8xf32>
    %34 = arith.subf %32, %33 : vector<2x8xf32>
    %cst_26 = arith.constant 0.000000e+00 : f32
    %35 = vector.broadcast %cst_26 : f32 to vector<2x8xf32>
    %36 = arith.maximumf %34, %35 : vector<2x8xf32>
    %cst_27 = arith.constant 9.99999974E-6 : f32
    %37 = vector.broadcast %cst_27 : f32 to vector<2x8xf32>
    %38 = arith.addf %36, %37 : vector<2x8xf32>
    %39 = math.rsqrt %38 : vector<2x8xf32>
    %40 = tpu.concatenate %29, %39 in 0 : vector<2x8xf32>, vector<2x8xf32> -> vector<4x8xf32>
    %c0_28 = arith.constant 0 : index
    %c0_29 = arith.constant 0 : index
    %41 = vector.load %arg15[%c0_28, %c0_29] : memref<8x128xf32, #tpu.memory_space<vmem>>, vector<8x128xf32>
    %cst_30 = arith.constant dense<0.000000e+00> : vector<4x128xf32>
    %42 = tpu.matmul %40, %41, %cst_30 {dimension_numbers = #tpu.dot_dimension_numbers<[1], [0], [0], [1], [0, 0, 1, 1], [], []>} : vector<4x8xf32>, vector<8x128xf32>, vector<4x128xf32> -> vector<4x128xf32>
    %43 = vector.extract_strided_slice %42 {offsets = [0, 0], sizes = [2, 128], strides = [1, 1]} : vector<4x128xf32> to vector<2x128xf32>
    %44 = vector.shape_cast %43 : vector<2x128xf32> to vector<2x1x128xf32>
    %45 = vector.extract_strided_slice %42 {offsets = [2, 0], sizes = [2, 128], strides = [1, 1]} : vector<4x128xf32> to vector<2x128xf32>
    %46 = vector.shape_cast %45 : vector<2x128xf32> to vector<2x1x128xf32>
    %c0_31 = arith.constant 0 : index
    %c0_32 = arith.constant 0 : index
    %47 = vector.load %arg6[%c0_31, %c0_32] : memref<1x128xf32, #tpu.memory_space<vmem>>, vector<1x128xf32>
    %48 = vector.shape_cast %47 : vector<1x128xf32> to vector<1x1x128xf32>
    %49 = vector.broadcast %48 : vector<1x1x128xf32> to vector<2x1x128xf32>
    %50 = arith.mulf %46, %49 : vector<2x1x128xf32>
    %c0_33 = arith.constant 0 : index
    %c0_34 = arith.constant 0 : index
    %51 = vector.load %arg7[%c0_33, %c0_34] : memref<1x128xf32, #tpu.memory_space<vmem>>, vector<1x128xf32>
    %52 = arith.mulf %44, %50 : vector<2x1x128xf32>
    %53 = vector.shape_cast %51 : vector<1x128xf32> to vector<1x1x128xf32>
    %54 = vector.broadcast %53 : vector<1x1x128xf32> to vector<2x1x128xf32>
    %55 = arith.subf %54, %52 : vector<2x1x128xf32>
    %56 = vector.broadcast %50 : vector<2x1x128xf32> to vector<2x16x128xf32>
    %57 = arith.mulf %20, %56 : vector<2x16x128xf32>
    %58 = vector.broadcast %55 : vector<2x1x128xf32> to vector<2x16x128xf32>
    %59 = arith.addf %57, %58 : vector<2x16x128xf32>
    %cst_35 = arith.constant 2.000000e+01 : f32
    %60 = vector.broadcast %cst_35 : f32 to vector<2x16x128xf32>
    %61 = arith.minimumf %59, %60 : vector<2x16x128xf32>
    %62 = math.exp %61 : vector<2x16x128xf32>
    %cst_36 = arith.constant 2.000000e+00 : f32
    %63 = vector.broadcast %cst_36 : f32 to vector<2x16x128xf32>
    %64 = arith.addf %62, %63 : vector<2x16x128xf32>
    %65 = arith.mulf %62, %64 : vector<2x16x128xf32>
    %66 = arith.mulf %59, %65 : vector<2x16x128xf32>
    %cst_37 = arith.constant 2.000000e+00 : f32
    %67 = vector.broadcast %cst_37 : f32 to vector<2x16x128xf32>
    %68 = arith.addf %65, %67 : vector<2x16x128xf32>
    %69 = tpu.reciprocal %68 : vector<2x16x128xf32> -> vector<2x16x128xf32>
    %70 = arith.mulf %66, %69 : vector<2x16x128xf32>
    %cst_38 = arith.constant 2.000000e+01 : f32
    %71 = vector.broadcast %cst_38 : f32 to vector<2x16x128xf32>
    %72 = arith.cmpf ogt, %59, %71 : vector<2x16x128xf32>
    %73 = arith.select %72, %59, %70 : vector<2x16x128xi1>, vector<2x16x128xf32>
    %c0_39 = arith.constant 0 : index
    %c0_40 = arith.constant 0 : index
    %c0_41 = arith.constant 0 : index
    %74 = vector.load %arg2[%c0_39, %c0_40, %c0_41] : memref<2x1x128xf32, #tpu.memory_space<vmem>>, vector<2x1x128xf32>
    %75 = vector.broadcast %74 : vector<2x1x128xf32> to vector<2x16x128xf32>
    %76 = arith.mulf %75, %73 : vector<2x16x128xf32>
    %c0_42 = arith.constant 0 : index
    %c0_43 = arith.constant 0 : index
    %c0_44 = arith.constant 0 : index
    %77 = vector.load %arg3[%c0_42, %c0_43, %c0_44] : memref<2x1x128xf32, #tpu.memory_space<vmem>>, vector<2x1x128xf32>
    %78 = vector.broadcast %77 : vector<2x1x128xf32> to vector<2x16x128xf32>
    %79 = arith.addf %76, %78 : vector<2x16x128xf32>
    %cst_45 = arith.constant 0.000000e+00 : f32
    %80 = vector.broadcast %cst_45 : f32 to vector<2x1x128xf32>
    %c0_46 = arith.constant 0 : index
    %c0_47 = arith.constant 0 : index
    %c0_48 = arith.constant 0 : index
    %81 = vector.load %arg17[%c0_46, %c0_47, %c0_48] : memref<2x18x128xf32, #tpu.memory_space<vmem>>, vector<2x1x128xf32>
    tpu.vector_store %arg17[%c0_46, %c0_47, %c0_48], %80 {strides = array<i32>} : memref<2x18x128xf32, #tpu.memory_space<vmem>>, vector<2x1x128xf32>,
    %c0_49 = arith.constant 0 : index
    %c17 = arith.constant 17 : index
    %c0_50 = arith.constant 0 : index
    %82 = vector.load %arg17[%c0_49, %c17, %c0_50] : memref<2x18x128xf32, #tpu.memory_space<vmem>>, vector<2x1x128xf32>
    tpu.vector_store %arg17[%c0_49, %c17, %c0_50], %80 {strides = array<i32>} : memref<2x18x128xf32, #tpu.memory_space<vmem>>, vector<2x1x128xf32>,
    %c0_51 = arith.constant 0 : index
    %c1_52 = arith.constant 1 : index
    %c0_53 = arith.constant 0 : index
    %83 = vector.load %arg17[%c0_51, %c1_52, %c0_53] : memref<2x18x128xf32, #tpu.memory_space<vmem>>, vector<2x16x128xf32>
    tpu.vector_store %arg17[%c0_51, %c1_52, %c0_53], %79 {strides = array<i32>} : memref<2x18x128xf32, #tpu.memory_space<vmem>>, vector<2x16x128xf32>,
    %c0_54 = arith.constant 0 : index
    %c0_55 = arith.constant 0 : index
    %c0_56 = arith.constant 0 : index
    %84 = vector.load %arg17[%c0_54, %c0_55, %c0_56] : memref<2x18x128xf32, #tpu.memory_space<vmem>>, vector<2x16x128xf32>
    %85 = vector.shape_cast %84 : vector<2x16x128xf32> to vector<32x128xf32>
    %c0_57 = arith.constant 0 : index
    %c0_58 = arith.constant 0 : index
    %c0_59 = arith.constant 0 : index
    %86 = vector.load %arg8[%c0_57, %c0_58, %c0_59] : memref<3x128x128xf32, #tpu.memory_space<vmem>>, vector<1x128x128xf32>
    %87 = vector.shape_cast %86 : vector<1x128x128xf32> to vector<128x128xf32>
    %cst_60 = arith.constant dense<0.000000e+00> : vector<32x128xf32>
    %88 = tpu.matmul %85, %87, %cst_60 {dimension_numbers = #tpu.dot_dimension_numbers<[1], [0], [0], [1], [0, 0, 1, 1], [], []>} : vector<32x128xf32>, vector<128x128xf32>, vector<32x128xf32> -> vector<32x128xf32>
    %c0_61 = arith.constant 0 : index
    %c1_62 = arith.constant 1 : index
    %c0_63 = arith.constant 0 : index
    %89 = vector.load %arg17[%c0_61, %c1_62, %c0_63] : memref<2x18x128xf32, #tpu.memory_space<vmem>>, vector<2x16x128xf32>
    %90 = vector.shape_cast %89 : vector<2x16x128xf32> to vector<32x128xf32>
    %c1_64 = arith.constant 1 : index
    %c0_65 = arith.constant 0 : index
    %c0_66 = arith.constant 0 : index
    %91 = vector.load %arg8[%c1_64, %c0_65, %c0_66] : memref<3x128x128xf32, #tpu.memory_space<vmem>>, vector<1x128x128xf32>
    %92 = vector.shape_cast %91 : vector<1x128x128xf32> to vector<128x128xf32>
    %cst_67 = arith.constant dense<0.000000e+00> : vector<32x128xf32>
    %93 = tpu.matmul %90, %92, %cst_67 {dimension_numbers = #tpu.dot_dimension_numbers<[1], [0], [0], [1], [0, 0, 1, 1], [], []>} : vector<32x128xf32>, vector<128x128xf32>, vector<32x128xf32> -> vector<32x128xf32>
    %94 = arith.addf %88, %93 : vector<32x128xf32>
    %c0_68 = arith.constant 0 : index
    %c2_69 = arith.constant 2 : index
    %c0_70 = arith.constant 0 : index
    %95 = vector.load %arg17[%c0_68, %c2_69, %c0_70] : memref<2x18x128xf32, #tpu.memory_space<vmem>>, vector<2x16x128xf32>
    %96 = vector.shape_cast %95 : vector<2x16x128xf32> to vector<32x128xf32>
    %c2_71 = arith.constant 2 : index
    %c0_72 = arith.constant 0 : index
    %c0_73 = arith.constant 0 : index
    %97 = vector.load %arg8[%c2_71, %c0_72, %c0_73] : memref<3x128x128xf32, #tpu.memory_space<vmem>>, vector<1x128x128xf32>
    %98 = vector.shape_cast %97 : vector<1x128x128xf32> to vector<128x128xf32>
    %cst_74 = arith.constant dense<0.000000e+00> : vector<32x128xf32>
    %99 = tpu.matmul %96, %98, %cst_74 {dimension_numbers = #tpu.dot_dimension_numbers<[1], [0], [0], [1], [0, 0, 1, 1], [], []>} : vector<32x128xf32>, vector<128x128xf32>, vector<32x128xf32> -> vector<32x128xf32>
    %100 = arith.addf %94, %99 : vector<32x128xf32>
    %c0_75 = arith.constant 0 : index
    %c0_76 = arith.constant 0 : index
    %101 = vector.load %arg9[%c0_75, %c0_76] : memref<1x128xf32, #tpu.memory_space<vmem>>, vector<1x128xf32>
    %102 = vector.broadcast %101 : vector<1x128xf32> to vector<32x128xf32>
    %103 = arith.addf %100, %102 : vector<32x128xf32>
    %104 = vector.shape_cast %103 : vector<32x128xf32> to vector<2x16x128xf32>
    %cst_77 = arith.constant dense<0.000000e+00> : vector<2x128xf32>
    %105 = vector.multi_reduction <add>, %104, %cst_77 [1] : vector<2x16x128xf32> to vector<2x128xf32>
    %106 = arith.mulf %104, %104 : vector<2x16x128xf32>
    %cst_78 = arith.constant dense<0.000000e+00> : vector<2x128xf32>
    %107 = vector.multi_reduction <add>, %106, %cst_78 [1] : vector<2x16x128xf32> to vector<2x128xf32>
    %108 = tpu.concatenate %105, %107 in 0 : vector<2x128xf32>, vector<2x128xf32> -> vector<4x128xf32>
    %c0_79 = arith.constant 0 : index
    %c0_80 = arith.constant 0 : index
    %109 = vector.load %arg14[%c0_79, %c0_80] : memref<128x8xf32, #tpu.memory_space<vmem>>, vector<128x8xf32>
    %cst_81 = arith.constant dense<0.000000e+00> : vector<4x8xf32>
    %110 = tpu.matmul %108, %109, %cst_81 {dimension_numbers = #tpu.dot_dimension_numbers<[1], [0], [0], [1], [0, 0, 1, 1], [], []>} : vector<4x128xf32>, vector<128x8xf32>, vector<4x8xf32> -> vector<4x8xf32>
    %111 = vector.extract_strided_slice %110 {offsets = [0, 0], sizes = [2, 8], strides = [1, 1]} : vector<4x8xf32> to vector<2x8xf32>
    %cst_82 = arith.constant 3.125000e-02 : f32
    %112 = vector.broadcast %cst_82 : f32 to vector<2x8xf32>
    %113 = arith.mulf %111, %112 : vector<2x8xf32>
    %114 = vector.extract_strided_slice %110 {offsets = [2, 0], sizes = [2, 8], strides = [1, 1]} : vector<4x8xf32> to vector<2x8xf32>
    %cst_83 = arith.constant 3.125000e-02 : f32
    %115 = vector.broadcast %cst_83 : f32 to vector<2x8xf32>
    %116 = arith.mulf %114, %115 : vector<2x8xf32>
    %117 = arith.mulf %113, %113 : vector<2x8xf32>
    %118 = arith.subf %116, %117 : vector<2x8xf32>
    %cst_84 = arith.constant 0.000000e+00 : f32
    %119 = vector.broadcast %cst_84 : f32 to vector<2x8xf32>
    %120 = arith.maximumf %118, %119 : vector<2x8xf32>
    %cst_85 = arith.constant 9.99999974E-6 : f32
    %121 = vector.broadcast %cst_85 : f32 to vector<2x8xf32>
    %122 = arith.addf %120, %121 : vector<2x8xf32>
    %123 = math.rsqrt %122 : vector<2x8xf32>
    %124 = tpu.concatenate %113, %123 in 0 : vector<2x8xf32>, vector<2x8xf32> -> vector<4x8xf32>
    %c0_86 = arith.constant 0 : index
    %c0_87 = arith.constant 0 : index
    %125 = vector.load %arg15[%c0_86, %c0_87] : memref<8x128xf32, #tpu.memory_space<vmem>>, vector<8x128xf32>
    %cst_88 = arith.constant dense<0.000000e+00> : vector<4x128xf32>
    %126 = tpu.matmul %124, %125, %cst_88 {dimension_numbers = #tpu.dot_dimension_numbers<[1], [0], [0], [1], [0, 0, 1, 1], [], []>} : vector<4x8xf32>, vector<8x128xf32>, vector<4x128xf32> -> vector<4x128xf32>
    %127 = vector.extract_strided_slice %126 {offsets = [0, 0], sizes = [2, 128], strides = [1, 1]} : vector<4x128xf32> to vector<2x128xf32>
    %128 = vector.shape_cast %127 : vector<2x128xf32> to vector<2x1x128xf32>
    %129 = vector.extract_strided_slice %126 {offsets = [2, 0], sizes = [2, 128], strides = [1, 1]} : vector<4x128xf32> to vector<2x128xf32>
    %130 = vector.shape_cast %129 : vector<2x128xf32> to vector<2x1x128xf32>
    %c0_89 = arith.constant 0 : index
    %c0_90 = arith.constant 0 : index
    %131 = vector.load %arg10[%c0_89, %c0_90] : memref<1x128xf32, #tpu.memory_space<vmem>>, vector<1x128xf32>
    %132 = vector.shape_cast %131 : vector<1x128xf32> to vector<1x1x128xf32>
    %133 = vector.broadcast %132 : vector<1x1x128xf32> to vector<2x1x128xf32>
    %134 = arith.mulf %130, %133 : vector<2x1x128xf32>
    %c0_91 = arith.constant 0 : index
    %c0_92 = arith.constant 0 : index
    %135 = vector.load %arg11[%c0_91, %c0_92] : memref<1x128xf32, #tpu.memory_space<vmem>>, vector<1x128xf32>
    %136 = arith.mulf %128, %134 : vector<2x1x128xf32>
    %137 = vector.shape_cast %135 : vector<1x128xf32> to vector<1x1x128xf32>
    %138 = vector.broadcast %137 : vector<1x1x128xf32> to vector<2x1x128xf32>
    %139 = arith.subf %138, %136 : vector<2x1x128xf32>
    %140 = vector.broadcast %134 : vector<2x1x128xf32> to vector<2x16x128xf32>
    %141 = arith.mulf %104, %140 : vector<2x16x128xf32>
    %142 = vector.broadcast %139 : vector<2x1x128xf32> to vector<2x16x128xf32>
    %143 = arith.addf %141, %142 : vector<2x16x128xf32>
    %cst_93 = arith.constant 2.000000e+01 : f32
    %144 = vector.broadcast %cst_93 : f32 to vector<2x16x128xf32>
    %145 = arith.minimumf %143, %144 : vector<2x16x128xf32>
    %146 = math.exp %145 : vector<2x16x128xf32>
    %cst_94 = arith.constant 2.000000e+00 : f32
    %147 = vector.broadcast %cst_94 : f32 to vector<2x16x128xf32>
    %148 = arith.addf %146, %147 : vector<2x16x128xf32>
    %149 = arith.mulf %146, %148 : vector<2x16x128xf32>
    %150 = arith.mulf %143, %149 : vector<2x16x128xf32>
    %cst_95 = arith.constant 2.000000e+00 : f32
    %151 = vector.broadcast %cst_95 : f32 to vector<2x16x128xf32>
    %152 = arith.addf %149, %151 : vector<2x16x128xf32>
    %153 = tpu.reciprocal %152 : vector<2x16x128xf32> -> vector<2x16x128xf32>
    %154 = arith.mulf %150, %153 : vector<2x16x128xf32>
    %cst_96 = arith.constant 2.000000e+01 : f32
    %155 = vector.broadcast %cst_96 : f32 to vector<2x16x128xf32>
    %156 = arith.cmpf ogt, %143, %155 : vector<2x16x128xf32>
    %157 = arith.select %156, %143, %154 : vector<2x16x128xi1>, vector<2x16x128xf32>
    %c0_97 = arith.constant 0 : index
    %c1_98 = arith.constant 1 : index
    %c0_99 = arith.constant 0 : index
    %158 = vector.load %arg1[%c0_97, %c1_98, %c0_99] : memref<2x18x128xf32, #tpu.memory_space<vmem>>, vector<2x16x128xf32>
    %159 = vector.shape_cast %158 : vector<2x16x128xf32> to vector<32x128xf32>
    %c0_100 = arith.constant 0 : index
    %c0_101 = arith.constant 0 : index
    %160 = vector.load %arg12[%c0_100, %c0_101] : memref<128x128xf32, #tpu.memory_space<vmem>>, vector<128x128xf32>
    %cst_102 = arith.constant dense<0.000000e+00> : vector<32x128xf32>
    %161 = tpu.matmul %159, %160, %cst_102 {dimension_numbers = #tpu.dot_dimension_numbers<[1], [0], [0], [1], [0, 0, 1, 1], [], []>} : vector<32x128xf32>, vector<128x128xf32>, vector<32x128xf32> -> vector<32x128xf32>
    %c0_103 = arith.constant 0 : index
    %c0_104 = arith.constant 0 : index
    %162 = vector.load %arg13[%c0_103, %c0_104] : memref<1x128xf32, #tpu.memory_space<vmem>>, vector<1x128xf32>
    %163 = vector.broadcast %162 : vector<1x128xf32> to vector<32x128xf32>
    %164 = arith.addf %161, %163 : vector<32x128xf32>
    %165 = vector.shape_cast %164 : vector<32x128xf32> to vector<2x16x128xf32>
    %166 = arith.addf %157, %165 : vector<2x16x128xf32>
    %c0_105 = arith.constant 0 : index
    %c0_106 = arith.constant 0 : index
    %c0_107 = arith.constant 0 : index
    %167 = vector.load %arg16[%c0_105, %c0_106, %c0_107] : memref<2x16x128xf32, #tpu.memory_space<vmem>>, vector<2x16x128xf32>
    tpu.vector_store %arg16[%c0_105, %c0_106, %c0_107], %166 {strides = array<i32>} : memref<2x16x128xf32, #tpu.memory_space<vmem>>, vector<2x16x128xf32>,
    return
  }
  func.func @transform_0(%arg0: i32) -> (i32, i32, i32) {
    %c0_i32 = arith.constant 0 : i32
    %c0_i32_0 = arith.constant 0 : i32
    %c0_i32_1 = arith.constant 0 : i32
    return %arg0, %c0_i32, %c0_i32_0 : i32, i32, i32
  }
  func.func @transform_1(%arg0: i32) -> (i32, i32, i32) {
    %c0_i32 = arith.constant 0 : i32
    %c0_i32_0 = arith.constant 0 : i32
    %c0_i32_1 = arith.constant 0 : i32
    return %arg0, %c0_i32, %c0_i32_0 : i32, i32, i32
  }
  func.func @transform_2(%arg0: i32) -> (i32, i32, i32) {
    %c0_i32 = arith.constant 0 : i32
    %c0_i32_0 = arith.constant 0 : i32
    %c0_i32_1 = arith.constant 0 : i32
    return %arg0, %c0_i32, %c0_i32_0 : i32, i32, i32
  }
  func.func @transform_3(%arg0: i32) -> (i32, i32, i32) {
    %c0_i32 = arith.constant 0 : i32
    %c0_i32_0 = arith.constant 0 : i32
    %c0_i32_1 = arith.constant 0 : i32
    %c0_i32_2 = arith.constant 0 : i32
    return %c0_i32, %c0_i32_0, %c0_i32_1 : i32, i32, i32
  }
  func.func @transform_4(%arg0: i32) -> (i32, i32) {
    %c0_i32 = arith.constant 0 : i32
    %c0_i32_0 = arith.constant 0 : i32
    %c0_i32_1 = arith.constant 0 : i32
    return %c0_i32, %c0_i32_0 : i32, i32
  }
  func.func @transform_5(%arg0: i32) -> (i32, i32) {
    %c0_i32 = arith.constant 0 : i32
    %c0_i32_0 = arith.constant 0 : i32
    %c0_i32_1 = arith.constant 0 : i32
    return %c0_i32, %c0_i32_0 : i32, i32
  }
  func.func @transform_6(%arg0: i32) -> (i32, i32) {
    %c0_i32 = arith.constant 0 : i32
    %c0_i32_0 = arith.constant 0 : i32
    %c0_i32_1 = arith.constant 0 : i32
    return %c0_i32, %c0_i32_0 : i32, i32
  }
  func.func @transform_7(%arg0: i32) -> (i32, i32, i32) {
    %c0_i32 = arith.constant 0 : i32
    %c0_i32_0 = arith.constant 0 : i32
    %c0_i32_1 = arith.constant 0 : i32
    %c0_i32_2 = arith.constant 0 : i32
    return %c0_i32, %c0_i32_0, %c0_i32_1 : i32, i32, i32
  }
  func.func @transform_8(%arg0: i32) -> (i32, i32) {
    %c0_i32 = arith.constant 0 : i32
    %c0_i32_0 = arith.constant 0 : i32
    %c0_i32_1 = arith.constant 0 : i32
    return %c0_i32, %c0_i32_0 : i32, i32
  }
  func.func @transform_9(%arg0: i32) -> (i32, i32) {
    %c0_i32 = arith.constant 0 : i32
    %c0_i32_0 = arith.constant 0 : i32
    %c0_i32_1 = arith.constant 0 : i32
    return %c0_i32, %c0_i32_0 : i32, i32
  }
  func.func @transform_10(%arg0: i32) -> (i32, i32) {
    %c0_i32 = arith.constant 0 : i32
    %c0_i32_0 = arith.constant 0 : i32
    %c0_i32_1 = arith.constant 0 : i32
    return %c0_i32, %c0_i32_0 : i32, i32
  }
  func.func @transform_11(%arg0: i32) -> (i32, i32) {
    %c0_i32 = arith.constant 0 : i32
    %c0_i32_0 = arith.constant 0 : i32
    %c0_i32_1 = arith.constant 0 : i32
    return %c0_i32, %c0_i32_0 : i32, i32
  }
  func.func @transform_12(%arg0: i32) -> (i32, i32) {
    %c0_i32 = arith.constant 0 : i32
    %c0_i32_0 = arith.constant 0 : i32
    %c0_i32_1 = arith.constant 0 : i32
    return %c0_i32, %c0_i32_0 : i32, i32
  }
  func.func @transform_13(%arg0: i32) -> (i32, i32) {
    %c0_i32 = arith.constant 0 : i32
    %c0_i32_0 = arith.constant 0 : i32
    %c0_i32_1 = arith.constant 0 : i32
    return %c0_i32, %c0_i32_0 : i32, i32
  }
  func.func @transform_14(%arg0: i32) -> (i32, i32) {
    %c0_i32 = arith.constant 0 : i32
    %c0_i32_0 = arith.constant 0 : i32
    %c0_i32_1 = arith.constant 0 : i32
    return %c0_i32, %c0_i32_0 : i32, i32
  }
  func.func @transform_15(%arg0: i32) -> (i32, i32, i32) {
    %c0_i32 = arith.constant 0 : i32
    %c0_i32_0 = arith.constant 0 : i32
    %c0_i32_1 = arith.constant 0 : i32
    return %arg0, %c0_i32, %c0_i32_0 : i32, i32, i32
  }
}

module attributes {stable_mosaic.version = 11 : i64} {
  func.func @crb1d_kernel(%arg0: i32, %arg1: memref<2x18x128xf32, #tpu.memory_space<vmem>>, %arg2: memref<2x1x128xf32, #tpu.memory_space<vmem>>, %arg3: memref<2x1x128xf32, #tpu.memory_space<vmem>>, %arg4: memref<3x128x128xf32, #tpu.memory_space<vmem>>, %arg5: memref<1x128xf32, #tpu.memory_space<vmem>>, %arg6: memref<1x128xf32, #tpu.memory_space<vmem>>, %arg7: memref<1x128xf32, #tpu.memory_space<vmem>>, %arg8: memref<3x128x128xf32, #tpu.memory_space<vmem>>, %arg9: memref<1x128xf32, #tpu.memory_space<vmem>>, %arg10: memref<1x128xf32, #tpu.memory_space<vmem>>, %arg11: memref<1x128xf32, #tpu.memory_space<vmem>>, %arg12: memref<128x128xf32, #tpu.memory_space<vmem>>, %arg13: memref<1x128xf32, #tpu.memory_space<vmem>>, %arg14: memref<128x8xf32, #tpu.memory_space<vmem>>, %arg15: memref<8x128xf32, #tpu.memory_space<vmem>>, %arg16: memref<2x16x128xf32, #tpu.memory_space<vmem>>, %arg17: memref<2x18x128xf32, #tpu.memory_space<vmem>>) attributes {dimension_semantics = [#tpu.dimension_semantics<parallel>], iteration_bounds = array<i64: 1>, scalar_prefetch = 0 : i64, scratch_operands = 1 : i64, tpu.core_type = #tpu.core_type<tc>, window_params = [{transform_indices = @transform_0, window_bounds = array<i64: 2, 18, 128>}, {transform_indices = @transform_1, window_bounds = array<i64: 2, 1, 128>}, {transform_indices = @transform_2, window_bounds = array<i64: 2, 1, 128>}, {pipeline_mode = #tpu.pipeline_mode<synchronous>, transform_indices = @transform_3, window_bounds = array<i64: 3, 128, 128>}, {pipeline_mode = #tpu.pipeline_mode<synchronous>, transform_indices = @transform_4, window_bounds = array<i64: 1, 128>}, {pipeline_mode = #tpu.pipeline_mode<synchronous>, transform_indices = @transform_5, window_bounds = array<i64: 1, 128>}, {pipeline_mode = #tpu.pipeline_mode<synchronous>, transform_indices = @transform_6, window_bounds = array<i64: 1, 128>}, {pipeline_mode = #tpu.pipeline_mode<synchronous>, transform_indices = @transform_7, window_bounds = array<i64: 3, 128, 128>}, {pipeline_mode = #tpu.pipeline_mode<synchronous>, transform_indices = @transform_8, window_bounds = array<i64: 1, 128>}, {pipeline_mode = #tpu.pipeline_mode<synchronous>, transform_indices = @transform_9, window_bounds = array<i64: 1, 128>}, {pipeline_mode = #tpu.pipeline_mode<synchronous>, transform_indices = @transform_10, window_bounds = array<i64: 1, 128>}, {pipeline_mode = #tpu.pipeline_mode<synchronous>, transform_indices = @transform_11, window_bounds = array<i64: 128, 128>}, {pipeline_mode = #tpu.pipeline_mode<synchronous>, transform_indices = @transform_12, window_bounds = array<i64: 1, 128>}, {pipeline_mode = #tpu.pipeline_mode<synchronous>, transform_indices = @transform_13, window_bounds = array<i64: 128, 8>}, {pipeline_mode = #tpu.pipeline_mode<synchronous>, transform_indices = @transform_14, window_bounds = array<i64: 8, 128>}, {transform_indices = @transform_15, window_bounds = array<i64: 2, 16, 128>}]} {
    %c0 = arith.constant 0 : index
    %c0_0 = arith.constant 0 : index
    %c0_1 = arith.constant 0 : index
    %0 = vector.load %arg1[%c0, %c0_0, %c0_1] : memref<2x18x128xf32, #tpu.memory_space<vmem>>, vector<2x16x128xf32>
    %1 = vector.shape_cast %0 : vector<2x16x128xf32> to vector<32x128xf32>
    %c0_2 = arith.constant 0 : index
    %c0_3 = arith.constant 0 : index
    %c0_4 = arith.constant 0 : index
    %2 = vector.load %arg4[%c0_2, %c0_3, %c0_4] : memref<3x128x128xf32, #tpu.memory_space<vmem>>, vector<1x128x128xf32>
    %3 = vector.shape_cast %2 : vector<1x128x128xf32> to vector<128x128xf32>
    %cst = arith.constant dense<0.000000e+00> : vector<32x128xf32>
    %4 = tpu.matmul %1, %3, %cst {dimension_numbers = #tpu.dot_dimension_numbers<[1], [0], [0], [1], [0, 0, 1, 1], [], []>} : vector<32x128xf32>, vector<128x128xf32>, vector<32x128xf32> -> vector<32x128xf32>
    %c0_5 = arith.constant 0 : index
    %c1 = arith.constant 1 : index
    %c0_6 = arith.constant 0 : index
    %5 = vector.load %arg1[%c0_5, %c1, %c0_6] : memref<2x18x128xf32, #tpu.memory_space<vmem>>, vector<2x16x128xf32>
    %6 = vector.shape_cast %5 : vector<2x16x128xf32> to vector<32x128xf32>
    %c1_7 = arith.constant 1 : index
    %c0_8 = arith.constant 0 : index
    %c0_9 = arith.constant 0 : index
    %7 = vector.load %arg4[%c1_7, %c0_8, %c0_9] : memref<3x128x128xf32, #tpu.memory_space<vmem>>, vector<1x128x128xf32>
    %8 = vector.shape_cast %7 : vector<1x128x128xf32> to vector<128x128xf32>
    %cst_10 = arith.constant dense<0.000000e+00> : vector<32x128xf32>
    %9 = tpu.matmul %6, %8, %cst_10 {dimension_numbers = #tpu.dot_dimension_numbers<[1], [0], [0], [1], [0, 0, 1, 1], [], []>} : vector<32x128xf32>, vector<128x128xf32>, vector<32x128xf32> -> vector<32x128xf32>
    %10 = arith.addf %4, %9 : vector<32x128xf32>
    %c0_11 = arith.constant 0 : index
    %c2 = arith.constant 2 : index
    %c0_12 = arith.constant 0 : index
    %11 = vector.load %arg1[%c0_11, %c2, %c0_12] : memref<2x18x128xf32, #tpu.memory_space<vmem>>, vector<2x16x128xf32>
    %12 = vector.shape_cast %11 : vector<2x16x128xf32> to vector<32x128xf32>
    %c2_13 = arith.constant 2 : index
    %c0_14 = arith.constant 0 : index
    %c0_15 = arith.constant 0 : index
    %13 = vector.load %arg4[%c2_13, %c0_14, %c0_15] : memref<3x128x128xf32, #tpu.memory_space<vmem>>, vector<1x128x128xf32>
    %14 = vector.shape_cast %13 : vector<1x128x128xf32> to vector<128x128xf32>
    %cst_16 = arith.constant dense<0.000000e+00> : vector<32x128xf32>
    %15 = tpu.matmul %12, %14, %cst_16 {dimension_numbers = #tpu.dot_dimension_numbers<[1], [0], [0], [1], [0, 0, 1, 1], [], []>} : vector<32x128xf32>, vector<128x128xf32>, vector<32x128xf32> -> vector<32x128xf32>
    %16 = arith.addf %10, %15 : vector<32x128xf32>
    %c0_17 = arith.constant 0 : index
    %c0_18 = arith.constant 0 : index
    %17 = vector.load %arg5[%c0_17, %c0_18] : memref<1x128xf32, #tpu.memory_space<vmem>>, vector<1x128xf32>
    %18 = vector.broadcast %17 : vector<1x128xf32> to vector<32x128xf32>
    %19 = arith.addf %16, %18 : vector<32x128xf32>
    %20 = vector.shape_cast %19 : vector<32x128xf32> to vector<2x16x128xf32>
    %cst_19 = arith.constant dense<0.000000e+00> : vector<2x128xf32>
    %21 = vector.multi_reduction <add>, %20, %cst_19 [1] : vector<2x16x128xf32> to vector<2x128xf32>
    %22 = arith.mulf %20, %20 : vector<2x16x128xf32>
    %cst_20 = arith.constant dense<0.000000e+00> : vector<2x128xf32>
    %23 = vector.multi_reduction <add>, %22, %cst_20 [1] : vector<2x16x128xf32> to vector<2x128xf32>
    %24 = tpu.concatenate %21, %23 in 0 : vector<2x128xf32>, vector<2x128xf32> -> vector<4x128xf32>
    %c0_21 = arith.constant 0 : index
    %c0_22 = arith.constant 0 : index
    %25 = vector.load %arg14[%c0_21, %c0_22] : memref<128x8xf32, #tpu.memory_space<vmem>>, vector<128x8xf32>
    %cst_23 = arith.constant dense<0.000000e+00> : vector<4x8xf32>
    %26 = tpu.matmul %24, %25, %cst_23 {dimension_numbers = #tpu.dot_dimension_numbers<[1], [0], [0], [1], [0, 0, 1, 1], [], []>} : vector<4x128xf32>, vector<128x8xf32>, vector<4x8xf32> -> vector<4x8xf32>
    %27 = vector.extract_strided_slice %26 {offsets = [0, 0], sizes = [2, 8], strides = [1, 1]} : vector<4x8xf32> to vector<2x8xf32>
    %cst_24 = arith.constant 3.125000e-02 : f32
    %28 = vector.broadcast %cst_24 : f32 to vector<2x8xf32>
    %29 = arith.mulf %27, %28 : vector<2x8xf32>
    %30 = vector.extract_strided_slice %26 {offsets = [2, 0], sizes = [2, 8], strides = [1, 1]} : vector<4x8xf32> to vector<2x8xf32>
    %cst_25 = arith.constant 3.125000e-02 : f32
    %31 = vector.broadcast %cst_25 : f32 to vector<2x8xf32>
    %32 = arith.mulf %30, %31 : vector<2x8xf32>
    %33 = arith.mulf %29, %29 : vector<2x8xf32>
    %34 = arith.subf %32, %33 : vector<2x8xf32>
    %cst_26 = arith.constant 0.000000e+00 : f32
    %35 = vector.broadcast %cst_26 : f32 to vector<2x8xf32>
    %36 = arith.maximumf %34, %35 : vector<2x8xf32>
    %cst_27 = arith.constant 9.99999974E-6 : f32
    %37 = vector.broadcast %cst_27 : f32 to vector<2x8xf32>
    %38 = arith.addf %36, %37 : vector<2x8xf32>
    %39 = math.rsqrt %38 : vector<2x8xf32>
    %40 = tpu.concatenate %29, %39 in 0 : vector<2x8xf32>, vector<2x8xf32> -> vector<4x8xf32>
    %c0_28 = arith.constant 0 : index
    %c0_29 = arith.constant 0 : index
    %41 = vector.load %arg15[%c0_28, %c0_29] : memref<8x128xf32, #tpu.memory_space<vmem>>, vector<8x128xf32>
    %cst_30 = arith.constant dense<0.000000e+00> : vector<4x128xf32>
    %42 = tpu.matmul %40, %41, %cst_30 {dimension_numbers = #tpu.dot_dimension_numbers<[1], [0], [0], [1], [0, 0, 1, 1], [], []>} : vector<4x8xf32>, vector<8x128xf32>, vector<4x128xf32> -> vector<4x128xf32>
    %43 = vector.extract_strided_slice %42 {offsets = [0, 0], sizes = [2, 128], strides = [1, 1]} : vector<4x128xf32> to vector<2x128xf32>
    %44 = vector.shape_cast %43 : vector<2x128xf32> to vector<2x1x128xf32>
    %45 = vector.extract_strided_slice %42 {offsets = [2, 0], sizes = [2, 128], strides = [1, 1]} : vector<4x128xf32> to vector<2x128xf32>
    %46 = vector.shape_cast %45 : vector<2x128xf32> to vector<2x1x128xf32>
    %c0_31 = arith.constant 0 : index
    %c0_32 = arith.constant 0 : index
    %47 = vector.load %arg6[%c0_31, %c0_32] : memref<1x128xf32, #tpu.memory_space<vmem>>, vector<1x128xf32>
    %48 = vector.shape_cast %47 : vector<1x128xf32> to vector<1x1x128xf32>
    %49 = vector.broadcast %48 : vector<1x1x128xf32> to vector<2x1x128xf32>
    %50 = arith.mulf %46, %49 : vector<2x1x128xf32>
    %c0_33 = arith.constant 0 : index
    %c0_34 = arith.constant 0 : index
    %51 = vector.load %arg7[%c0_33, %c0_34] : memref<1x128xf32, #tpu.memory_space<vmem>>, vector<1x128xf32>
    %52 = arith.mulf %44, %50 : vector<2x1x128xf32>
    %53 = vector.shape_cast %51 : vector<1x128xf32> to vector<1x1x128xf32>
    %54 = vector.broadcast %53 : vector<1x1x128xf32> to vector<2x1x128xf32>
    %55 = arith.subf %54, %52 : vector<2x1x128xf32>
    %56 = vector.broadcast %50 : vector<2x1x128xf32> to vector<2x16x128xf32>
    %57 = arith.mulf %20, %56 : vector<2x16x128xf32>
    %58 = vector.broadcast %55 : vector<2x1x128xf32> to vector<2x16x128xf32>
    %59 = arith.addf %57, %58 : vector<2x16x128xf32>
    %cst_35 = arith.constant 2.000000e+01 : f32
    %60 = vector.broadcast %cst_35 : f32 to vector<2x16x128xf32>
    %61 = arith.minimumf %59, %60 : vector<2x16x128xf32>
    %62 = math.exp %61 : vector<2x16x128xf32>
    %cst_36 = arith.constant 2.000000e+00 : f32
    %63 = vector.broadcast %cst_36 : f32 to vector<2x16x128xf32>
    %64 = arith.addf %62, %63 : vector<2x16x128xf32>
    %65 = arith.mulf %62, %64 : vector<2x16x128xf32>
    %66 = arith.mulf %59, %65 : vector<2x16x128xf32>
    %cst_37 = arith.constant 2.000000e+00 : f32
    %67 = vector.broadcast %cst_37 : f32 to vector<2x16x128xf32>
    %68 = arith.addf %65, %67 : vector<2x16x128xf32>
    %69 = tpu.reciprocal %68 : vector<2x16x128xf32> -> vector<2x16x128xf32>
    %70 = arith.mulf %66, %69 : vector<2x16x128xf32>
    %cst_38 = arith.constant 2.000000e+01 : f32
    %71 = vector.broadcast %cst_38 : f32 to vector<2x16x128xf32>
    %72 = arith.cmpf ogt, %59, %71 : vector<2x16x128xf32>
    %73 = arith.select %72, %59, %70 : vector<2x16x128xi1>, vector<2x16x128xf32>
    %c0_39 = arith.constant 0 : index
    %c0_40 = arith.constant 0 : index
    %c0_41 = arith.constant 0 : index
    %74 = vector.load %arg2[%c0_39, %c0_40, %c0_41] : memref<2x1x128xf32, #tpu.memory_space<vmem>>, vector<2x1x128xf32>
    %75 = vector.broadcast %74 : vector<2x1x128xf32> to vector<2x16x128xf32>
    %76 = arith.mulf %75, %73 : vector<2x16x128xf32>
    %c0_42 = arith.constant 0 : index
    %c0_43 = arith.constant 0 : index
    %c0_44 = arith.constant 0 : index
    %77 = vector.load %arg3[%c0_42, %c0_43, %c0_44] : memref<2x1x128xf32, #tpu.memory_space<vmem>>, vector<2x1x128xf32>
    %78 = vector.broadcast %77 : vector<2x1x128xf32> to vector<2x16x128xf32>
    %79 = arith.addf %76, %78 : vector<2x16x128xf32>
    %cst_45 = arith.constant 0.000000e+00 : f32
    %80 = vector.broadcast %cst_45 : f32 to vector<2x1x128xf32>
    %c0_46 = arith.constant 0 : index
    %c0_47 = arith.constant 0 : index
    %c0_48 = arith.constant 0 : index
    %81 = vector.load %arg17[%c0_46, %c0_47, %c0_48] : memref<2x18x128xf32, #tpu.memory_space<vmem>>, vector<2x1x128xf32>
    tpu.vector_store %arg17[%c0_46, %c0_47, %c0_48], %80 {strides = array<i32>} : memref<2x18x128xf32, #tpu.memory_space<vmem>>, vector<2x1x128xf32>,
    %c0_49 = arith.constant 0 : index
    %c17 = arith.constant 17 : index
    %c0_50 = arith.constant 0 : index
    %82 = vector.load %arg17[%c0_49, %c17, %c0_50] : memref<2x18x128xf32, #tpu.memory_space<vmem>>, vector<2x1x128xf32>
    tpu.vector_store %arg17[%c0_49, %c17, %c0_50], %80 {strides = array<i32>} : memref<2x18x128xf32, #tpu.memory_space<vmem>>, vector<2x1x128xf32>,
    %c0_51 = arith.constant 0 : index
    %c1_52 = arith.constant 1 : index
    %c0_53 = arith.constant 0 : index
    %83 = vector.load %arg17[%c0_51, %c1_52, %c0_53] : memref<2x18x128xf32, #tpu.memory_space<vmem>>, vector<2x16x128xf32>
    tpu.vector_store %arg17[%c0_51, %c1_52, %c0_53], %79 {strides = array<i32>} : memref<2x18x128xf32, #tpu.memory_space<vmem>>, vector<2x16x128xf32>,
    %c0_54 = arith.constant 0 : index
    %c0_55 = arith.constant 0 : index
    %c0_56 = arith.constant 0 : index
    %84 = vector.load %arg17[%c0_54, %c0_55, %c0_56] : memref<2x18x128xf32, #tpu.memory_space<vmem>>, vector<2x16x128xf32>
    %85 = vector.shape_cast %84 : vector<2x16x128xf32> to vector<32x128xf32>
    %c0_57 = arith.constant 0 : index
    %c0_58 = arith.constant 0 : index
    %c0_59 = arith.constant 0 : index
    %86 = vector.load %arg8[%c0_57, %c0_58, %c0_59] : memref<3x128x128xf32, #tpu.memory_space<vmem>>, vector<1x128x128xf32>
    %87 = vector.shape_cast %86 : vector<1x128x128xf32> to vector<128x128xf32>
    %cst_60 = arith.constant dense<0.000000e+00> : vector<32x128xf32>
    %88 = tpu.matmul %85, %87, %cst_60 {dimension_numbers = #tpu.dot_dimension_numbers<[1], [0], [0], [1], [0, 0, 1, 1], [], []>} : vector<32x128xf32>, vector<128x128xf32>, vector<32x128xf32> -> vector<32x128xf32>
    %c0_61 = arith.constant 0 : index
    %c1_62 = arith.constant 1 : index
    %c0_63 = arith.constant 0 : index
    %89 = vector.load %arg17[%c0_61, %c1_62, %c0_63] : memref<2x18x128xf32, #tpu.memory_space<vmem>>, vector<2x16x128xf32>
    %90 = vector.shape_cast %89 : vector<2x16x128xf32> to vector<32x128xf32>
    %c1_64 = arith.constant 1 : index
    %c0_65 = arith.constant 0 : index
    %c0_66 = arith.constant 0 : index
    %91 = vector.load %arg8[%c1_64, %c0_65, %c0_66] : memref<3x128x128xf32, #tpu.memory_space<vmem>>, vector<1x128x128xf32>
    %92 = vector.shape_cast %91 : vector<1x128x128xf32> to vector<128x128xf32>
    %cst_67 = arith.constant dense<0.000000e+00> : vector<32x128xf32>
    %93 = tpu.matmul %90, %92, %cst_67 {dimension_numbers = #tpu.dot_dimension_numbers<[1], [0], [0], [1], [0, 0, 1, 1], [], []>} : vector<32x128xf32>, vector<128x128xf32>, vector<32x128xf32> -> vector<32x128xf32>
    %94 = arith.addf %88, %93 : vector<32x128xf32>
    %c0_68 = arith.constant 0 : index
    %c2_69 = arith.constant 2 : index
    %c0_70 = arith.constant 0 : index
    %95 = vector.load %arg17[%c0_68, %c2_69, %c0_70] : memref<2x18x128xf32, #tpu.memory_space<vmem>>, vector<2x16x128xf32>
    %96 = vector.shape_cast %95 : vector<2x16x128xf32> to vector<32x128xf32>
    %c2_71 = arith.constant 2 : index
    %c0_72 = arith.constant 0 : index
    %c0_73 = arith.constant 0 : index
    %97 = vector.load %arg8[%c2_71, %c0_72, %c0_73] : memref<3x128x128xf32, #tpu.memory_space<vmem>>, vector<1x128x128xf32>
    %98 = vector.shape_cast %97 : vector<1x128x128xf32> to vector<128x128xf32>
    %cst_74 = arith.constant dense<0.000000e+00> : vector<32x128xf32>
    %99 = tpu.matmul %96, %98, %cst_74 {dimension_numbers = #tpu.dot_dimension_numbers<[1], [0], [0], [1], [0, 0, 1, 1], [], []>} : vector<32x128xf32>, vector<128x128xf32>, vector<32x128xf32> -> vector<32x128xf32>
    %100 = arith.addf %94, %99 : vector<32x128xf32>
    %c0_75 = arith.constant 0 : index
    %c0_76 = arith.constant 0 : index
    %101 = vector.load %arg9[%c0_75, %c0_76] : memref<1x128xf32, #tpu.memory_space<vmem>>, vector<1x128xf32>
    %102 = vector.broadcast %101 : vector<1x128xf32> to vector<32x128xf32>
    %103 = arith.addf %100, %102 : vector<32x128xf32>
    %104 = vector.shape_cast %103 : vector<32x128xf32> to vector<2x16x128xf32>
    %cst_77 = arith.constant dense<0.000000e+00> : vector<2x128xf32>
    %105 = vector.multi_reduction <add>, %104, %cst_77 [1] : vector<2x16x128xf32> to vector<2x128xf32>
    %106 = arith.mulf %104, %104 : vector<2x16x128xf32>
    %cst_78 = arith.constant dense<0.000000e+00> : vector<2x128xf32>
    %107 = vector.multi_reduction <add>, %106, %cst_78 [1] : vector<2x16x128xf32> to vector<2x128xf32>
    %108 = tpu.concatenate %105, %107 in 0 : vector<2x128xf32>, vector<2x128xf32> -> vector<4x128xf32>
    %c0_79 = arith.constant 0 : index
    %c0_80 = arith.constant 0 : index
    %109 = vector.load %arg14[%c0_79, %c0_80] : memref<128x8xf32, #tpu.memory_space<vmem>>, vector<128x8xf32>
    %cst_81 = arith.constant dense<0.000000e+00> : vector<4x8xf32>
    %110 = tpu.matmul %108, %109, %cst_81 {dimension_numbers = #tpu.dot_dimension_numbers<[1], [0], [0], [1], [0, 0, 1, 1], [], []>} : vector<4x128xf32>, vector<128x8xf32>, vector<4x8xf32> -> vector<4x8xf32>
    %111 = vector.extract_strided_slice %110 {offsets = [0, 0], sizes = [2, 8], strides = [1, 1]} : vector<4x8xf32> to vector<2x8xf32>
    %cst_82 = arith.constant 3.125000e-02 : f32
    %112 = vector.broadcast %cst_82 : f32 to vector<2x8xf32>
    %113 = arith.mulf %111, %112 : vector<2x8xf32>
    %114 = vector.extract_strided_slice %110 {offsets = [2, 0], sizes = [2, 8], strides = [1, 1]} : vector<4x8xf32> to vector<2x8xf32>
    %cst_83 = arith.constant 3.125000e-02 : f32
    %115 = vector.broadcast %cst_83 : f32 to vector<2x8xf32>
    %116 = arith.mulf %114, %115 : vector<2x8xf32>
    %117 = arith.mulf %113, %113 : vector<2x8xf32>
    %118 = arith.subf %116, %117 : vector<2x8xf32>
    %cst_84 = arith.constant 0.000000e+00 : f32
    %119 = vector.broadcast %cst_84 : f32 to vector<2x8xf32>
    %120 = arith.maximumf %118, %119 : vector<2x8xf32>
    %cst_85 = arith.constant 9.99999974E-6 : f32
    %121 = vector.broadcast %cst_85 : f32 to vector<2x8xf32>
    %122 = arith.addf %120, %121 : vector<2x8xf32>
    %123 = math.rsqrt %122 : vector<2x8xf32>
    %124 = tpu.concatenate %113, %123 in 0 : vector<2x8xf32>, vector<2x8xf32> -> vector<4x8xf32>
    %c0_86 = arith.constant 0 : index
    %c0_87 = arith.constant 0 : index
    %125 = vector.load %arg15[%c0_86, %c0_87] : memref<8x128xf32, #tpu.memory_space<vmem>>, vector<8x128xf32>
    %cst_88 = arith.constant dense<0.000000e+00> : vector<4x128xf32>
    %126 = tpu.matmul %124, %125, %cst_88 {dimension_numbers = #tpu.dot_dimension_numbers<[1], [0], [0], [1], [0, 0, 1, 1], [], []>} : vector<4x8xf32>, vector<8x128xf32>, vector<4x128xf32> -> vector<4x128xf32>
    %127 = vector.extract_strided_slice %126 {offsets = [0, 0], sizes = [2, 128], strides = [1, 1]} : vector<4x128xf32> to vector<2x128xf32>
    %128 = vector.shape_cast %127 : vector<2x128xf32> to vector<2x1x128xf32>
    %129 = vector.extract_strided_slice %126 {offsets = [2, 0], sizes = [2, 128], strides = [1, 1]} : vector<4x128xf32> to vector<2x128xf32>
    %130 = vector.shape_cast %129 : vector<2x128xf32> to vector<2x1x128xf32>
    %c0_89 = arith.constant 0 : index
    %c0_90 = arith.constant 0 : index
    %131 = vector.load %arg10[%c0_89, %c0_90] : memref<1x128xf32, #tpu.memory_space<vmem>>, vector<1x128xf32>
    %132 = vector.shape_cast %131 : vector<1x128xf32> to vector<1x1x128xf32>
    %133 = vector.broadcast %132 : vector<1x1x128xf32> to vector<2x1x128xf32>
    %134 = arith.mulf %130, %133 : vector<2x1x128xf32>
    %c0_91 = arith.constant 0 : index
    %c0_92 = arith.constant 0 : index
    %135 = vector.load %arg11[%c0_91, %c0_92] : memref<1x128xf32, #tpu.memory_space<vmem>>, vector<1x128xf32>
    %136 = arith.mulf %128, %134 : vector<2x1x128xf32>
    %137 = vector.shape_cast %135 : vector<1x128xf32> to vector<1x1x128xf32>
    %138 = vector.broadcast %137 : vector<1x1x128xf32> to vector<2x1x128xf32>
    %139 = arith.subf %138, %136 : vector<2x1x128xf32>
    %140 = vector.broadcast %134 : vector<2x1x128xf32> to vector<2x16x128xf32>
    %141 = arith.mulf %104, %140 : vector<2x16x128xf32>
    %142 = vector.broadcast %139 : vector<2x1x128xf32> to vector<2x16x128xf32>
    %143 = arith.addf %141, %142 : vector<2x16x128xf32>
    %cst_93 = arith.constant 2.000000e+01 : f32
    %144 = vector.broadcast %cst_93 : f32 to vector<2x16x128xf32>
    %145 = arith.minimumf %143, %144 : vector<2x16x128xf32>
    %146 = math.exp %145 : vector<2x16x128xf32>
    %cst_94 = arith.constant 2.000000e+00 : f32
    %147 = vector.broadcast %cst_94 : f32 to vector<2x16x128xf32>
    %148 = arith.addf %146, %147 : vector<2x16x128xf32>
    %149 = arith.mulf %146, %148 : vector<2x16x128xf32>
    %150 = arith.mulf %143, %149 : vector<2x16x128xf32>
    %cst_95 = arith.constant 2.000000e+00 : f32
    %151 = vector.broadcast %cst_95 : f32 to vector<2x16x128xf32>
    %152 = arith.addf %149, %151 : vector<2x16x128xf32>
    %153 = tpu.reciprocal %152 : vector<2x16x128xf32> -> vector<2x16x128xf32>
    %154 = arith.mulf %150, %153 : vector<2x16x128xf32>
    %cst_96 = arith.constant 2.000000e+01 : f32
    %155 = vector.broadcast %cst_96 : f32 to vector<2x16x128xf32>
    %156 = arith.cmpf ogt, %143, %155 : vector<2x16x128xf32>
    %157 = arith.select %156, %143, %154 : vector<2x16x128xi1>, vector<2x16x128xf32>
    %c0_97 = arith.constant 0 : index
    %c1_98 = arith.constant 1 : index
    %c0_99 = arith.constant 0 : index
    %158 = vector.load %arg1[%c0_97, %c1_98, %c0_99] : memref<2x18x128xf32, #tpu.memory_space<vmem>>, vector<2x16x128xf32>
    %159 = vector.shape_cast %158 : vector<2x16x128xf32> to vector<32x128xf32>
    %c0_100 = arith.constant 0 : index
    %c0_101 = arith.constant 0 : index
    %160 = vector.load %arg12[%c0_100, %c0_101] : memref<128x128xf32, #tpu.memory_space<vmem>>, vector<128x128xf32>
    %cst_102 = arith.constant dense<0.000000e+00> : vector<32x128xf32>
    %161 = tpu.matmul %159, %160, %cst_102 {dimension_numbers = #tpu.dot_dimension_numbers<[1], [0], [0], [1], [0, 0, 1, 1], [], []>} : vector<32x128xf32>, vector<128x128xf32>, vector<32x128xf32> -> vector<32x128xf32>
    %c0_103 = arith.constant 0 : index
    %c0_104 = arith.constant 0 : index
    %162 = vector.load %arg13[%c0_103, %c0_104] : memref<1x128xf32, #tpu.memory_space<vmem>>, vector<1x128xf32>
    %163 = vector.broadcast %162 : vector<1x128xf32> to vector<32x128xf32>
    %164 = arith.addf %161, %163 : vector<32x128xf32>
    %165 = vector.shape_cast %164 : vector<32x128xf32> to vector<2x16x128xf32>
    %166 = arith.addf %157, %165 : vector<2x16x128xf32>
    %c0_105 = arith.constant 0 : index
    %c0_106 = arith.constant 0 : index
    %c0_107 = arith.constant 0 : index
    %167 = vector.load %arg16[%c0_105, %c0_106, %c0_107] : memref<2x16x128xf32, #tpu.memory_space<vmem>>, vector<2x16x128xf32>
    tpu.vector_store %arg16[%c0_105, %c0_106, %c0_107], %166 {strides = array<i32>} : memref<2x16x128xf32, #tpu.memory_space<vmem>>, vector<2x16x128xf32>,
    return
  }
  func.func @transform_0(%arg0: i32) -> (i32, i32, i32) {
    %c0_i32 = arith.constant 0 : i32
    %c0_i32_0 = arith.constant 0 : i32
    %c0_i32_1 = arith.constant 0 : i32
    return %arg0, %c0_i32, %c0_i32_0 : i32, i32, i32
  }
  func.func @transform_1(%arg0: i32) -> (i32, i32, i32) {
    %c0_i32 = arith.constant 0 : i32
    %c0_i32_0 = arith.constant 0 : i32
    %c0_i32_1 = arith.constant 0 : i32
    return %arg0, %c0_i32, %c0_i32_0 : i32, i32, i32
  }
  func.func @transform_2(%arg0: i32) -> (i32, i32, i32) {
    %c0_i32 = arith.constant 0 : i32
    %c0_i32_0 = arith.constant 0 : i32
    %c0_i32_1 = arith.constant 0 : i32
    return %arg0, %c0_i32, %c0_i32_0 : i32, i32, i32
  }
  func.func @transform_3(%arg0: i32) -> (i32, i32, i32) {
    %c0_i32 = arith.constant 0 : i32
    %c0_i32_0 = arith.constant 0 : i32
    %c0_i32_1 = arith.constant 0 : i32
    %c0_i32_2 = arith.constant 0 : i32
    return %c0_i32, %c0_i32_0, %c0_i32_1 : i32, i32, i32
  }
  func.func @transform_4(%arg0: i32) -> (i32, i32) {
    %c0_i32 = arith.constant 0 : i32
    %c0_i32_0 = arith.constant 0 : i32
    %c0_i32_1 = arith.constant 0 : i32
    return %c0_i32, %c0_i32_0 : i32, i32
  }
  func.func @transform_5(%arg0: i32) -> (i32, i32) {
    %c0_i32 = arith.constant 0 : i32
    %c0_i32_0 = arith.constant 0 : i32
    %c0_i32_1 = arith.constant 0 : i32
    return %c0_i32, %c0_i32_0 : i32, i32
  }
  func.func @transform_6(%arg0: i32) -> (i32, i32) {
    %c0_i32 = arith.constant 0 : i32
    %c0_i32_0 = arith.constant 0 : i32
    %c0_i32_1 = arith.constant 0 : i32
    return %c0_i32, %c0_i32_0 : i32, i32
  }
  func.func @transform_7(%arg0: i32) -> (i32, i32, i32) {
    %c0_i32 = arith.constant 0 : i32
    %c0_i32_0 = arith.constant 0 : i32
    %c0_i32_1 = arith.constant 0 : i32
    %c0_i32_2 = arith.constant 0 : i32
    return %c0_i32, %c0_i32_0, %c0_i32_1 : i32, i32, i32
  }
  func.func @transform_8(%arg0: i32) -> (i32, i32) {
    %c0_i32 = arith.constant 0 : i32
    %c0_i32_0 = arith.constant 0 : i32
    %c0_i32_1 = arith.constant 0 : i32
    return %c0_i32, %c0_i32_0 : i32, i32
  }
  func.func @transform_9(%arg0: i32) -> (i32, i32) {
    %c0_i32 = arith.constant 0 : i32
    %c0_i32_0 = arith.constant 0 : i32
    %c0_i32_1 = arith.constant 0 : i32
    return %c0_i32, %c0_i32_0 : i32, i32
  }
  func.func @transform_10(%arg0: i32) -> (i32, i32) {
    %c0_i32 = arith.constant 0 : i32
    %c0_i32_0 = arith.constant 0 : i32
    %c0_i32_1 = arith.constant 0 : i32
    return %c0_i32, %c0_i32_0 : i32, i32
  }
  func.func @transform_11(%arg0: i32) -> (i32, i32) {
    %c0_i32 = arith.constant 0 : i32
    %c0_i32_0 = arith.constant 0 : i32
    %c0_i32_1 = arith.constant 0 : i32
    return %c0_i32, %c0_i32_0 : i32, i32
  }
  func.func @transform_12(%arg0: i32) -> (i32, i32) {
    %c0_i32 = arith.constant 0 : i32
    %c0_i32_0 = arith.constant 0 : i32
    %c0_i32_1 = arith.constant 0 : i32
    return %c0_i32, %c0_i32_0 : i32, i32
  }
  func.func @transform_13(%arg0: i32) -> (i32, i32) {
    %c0_i32 = arith.constant 0 : i32
    %c0_i32_0 = arith.constant 0 : i32
    %c0_i32_1 = arith.constant 0 : i32
    return %c0_i32, %c0_i32_0 : i32, i32
  }
  func.func @transform_14(%arg0: i32) -> (i32, i32) {
    %c0_i32 = arith.constant 0 : i32
    %c0_i32_0 = arith.constant 0 : i32
    %c0_i32_1 = arith.constant 0 : i32
    return %c0_i32, %c0_i32_0 : i32, i32
  }
  func.func @transform_15(%arg0: i32) -> (i32, i32, i32) {
    %c0_i32 = arith.constant 0 : i32
    %c0_i32_0 = arith.constant 0 : i32
    %c0_i32_1 = arith.constant 0 : i32
    return %arg0, %c0_i32, %c0_i32_0 : i32, i32, i32
  }
}

</mosaic_0001>

<llo_original>
// kernel: tpu_custom_call.1
$region0: #{tpu_custom_call.1}
  #allocation0 [shape = 'u32[]', space=smem, size = 0x4, offset = 0x4, fixed_abs, tag = 'smem constant byte address 0x4 - core index']
  #allocation1 [shape = 'u32[144,128]{1,0:T(1,128)}', space=vmem, size = 0x12000, scoped, tag = 'internal scratch']
  #allocation2 [shape = 'f32[2,18,128]{2,1,0:T(8,128)}', space=vmem, size = 0x6000, scoped, tag = 'scratch operand']
  %s0 = inlined_call_operand.vmem [shape: f32[2,18,128], index: 0, kind: input, shape index: {}]
  %s1 = inlined_call_operand.vmem [shape: f32[2,1,128], index: 1, kind: input, shape index: {}]
  %s2 = inlined_call_operand.vmem [shape: f32[2,1,128], index: 2, kind: input, shape index: {}]
  %s3 = inlined_call_operand.hbm [shape: f32[3,128,128], index: 3, kind: input, shape index: {}]
  %s4 = inlined_call_operand.vmem [shape: f32[1,128], index: 4, kind: input, shape index: {}]
  %s5 = inlined_call_operand.vmem [shape: f32[1,128], index: 5, kind: input, shape index: {}]
  %s6 = inlined_call_operand.vmem [shape: f32[1,128], index: 6, kind: input, shape index: {}]
  %s7 = inlined_call_operand.hbm [shape: f32[3,128,128], index: 7, kind: input, shape index: {}]
  %s8 = inlined_call_operand.vmem [shape: f32[1,128], index: 8, kind: input, shape index: {}]
  %s9 = inlined_call_operand.vmem [shape: f32[1,128], index: 9, kind: input, shape index: {}]
  %s10 = inlined_call_operand.vmem [shape: f32[1,128], index: 10, kind: input, shape index: {}]
  %s11 = inlined_call_operand.vmem [shape: f32[128,128], index: 11, kind: input, shape index: {}]
  %s12 = inlined_call_operand.vmem [shape: f32[1,128], index: 12, kind: input, shape index: {}]
  %s13 = inlined_call_operand.vmem [shape: f32[128,8], index: 13, kind: input, shape index: {}]
  %s14 = inlined_call_operand.vmem [shape: f32[8,128], index: 14, kind: input, shape index: {}]
  %s15 = inlined_call_operand.hbm [shape: f32[2,16,128], index: 15, kind: output, shape index: {}]
  %s16 = sld [smem:[#allocation0]]
  $region78: #{tpu_custom_call.1} parent=0
    _
  %s18 = ssub.s32 1, %s16
  %s19 = scalar_select 0, %s18, %s16
  $region1: #{tpu_custom_call.1} parent=0
    #allocation3 [shape = 'u8[196608]{0}', space=vmem, size = 0x30000, scoped, tag = 'input window, operand 3, single buffered']
    #allocation4 [shape = 's32[1]{0}', space=sflag, size = 0x4, scoped, tag = 'scoped memory for tpu_custom_call.1']
    #allocation5 [shape = 's32[1]{0}', space=sflag, size = 0x4, scoped, tag = 'scoped memory for tpu_custom_call.1']
    #allocation6 [shape = 'u8[196608]{0}', space=vmem, size = 0x30000, scoped, tag = 'input window, operand 7, single buffered']
    #allocation7 [shape = 's32[1]{0}', space=sflag, size = 0x4, scoped, tag = 'scoped memory for tpu_custom_call.1']
    #allocation8 [shape = 'u8[16384]{0}', space=vmem, size = 0x4000, scoped, tag = 'output window, operand 0, single buffered']
    %20 = vsyncpa [#allocation4], 0
    %21 = vsyncpa [#allocation7], 0
    %22 = vsyncpa [#allocation5], 0
    // Predicated region
    $region2: #{tpu_custom_call.1} parent=1 // pred_check
      _
    $region3: #{tpu_custom_call.1} parent=1 // pred_check_branch
      %24 = sbr.rel (0) target = $region5
    $region4: #{tpu_custom_call.1} parent=1 // pred_region
      _
    $region5: #{tpu_custom_call.1} parent=1 // pred_fallthru
      _
    // Predicated region
    $region6: #{tpu_custom_call.1} parent=1 // pred_check
      _
    $region7: #{tpu_custom_call.1} parent=1 // pred_check_branch
      %26 = sbr.rel (0) target = $region9
    $region8: #{tpu_custom_call.1} parent=1 // pred_region
      _
    $region9: #{tpu_custom_call.1} parent=1 // pred_fallthru
      _
    // Predicated region
    $region10: #{tpu_custom_call.1} parent=1 // pred_check
      _
    $region11: #{tpu_custom_call.1} parent=1 // pred_check_branch
      %28 = sbr.rel (0) target = $region13
    $region12: #{tpu_custom_call.1} parent=1 // pred_region
      _
    $region13: #{tpu_custom_call.1} parent=1 // pred_fallthru
      _
    // Predicated region
    $region14: #{tpu_custom_call.1} parent=1 // pred_check
      _
    $region15: #{tpu_custom_call.1} parent=1 // pred_check_branch
      %30 = sbr.rel (0) target = $region17
    $region16: #{tpu_custom_call.1} parent=1 // pred_region
      %s32 = ssub.s32 6144, 6144
      %33 = vsyncadd [#allocation4], %s32
      %s34 = sshll.u32 [#allocation3], 4
      %s35 = int_to_ptr.vmem [resolvable:$true] %s34
      %40 = dma.hbm_to_vmem [thread:$0]  %s3, 6144, %s35, [#allocation4], 128, 128, 8
    $region17: #{tpu_custom_call.1} parent=1 // pred_fallthru
      _
    // Predicated region
    $region18: #{tpu_custom_call.1} parent=1 // pred_check
      _
    $region19: #{tpu_custom_call.1} parent=1 // pred_check_branch
      %42 = sbr.rel (0) target = $region21
    $region20: #{tpu_custom_call.1} parent=1 // pred_region
      _
    $region21: #{tpu_custom_call.1} parent=1 // pred_fallthru
      _
    // Predicated region
    $region22: #{tpu_custom_call.1} parent=1 // pred_check
      _
    $region23: #{tpu_custom_call.1} parent=1 // pred_check_branch
      %44 = sbr.rel (0) target = $region25
    $region24: #{tpu_custom_call.1} parent=1 // pred_region
      _
    $region25: #{tpu_custom_call.1} parent=1 // pred_fallthru
      _
    // Predicated region
    $region26: #{tpu_custom_call.1} parent=1 // pred_check
      _
    $region27: #{tpu_custom_call.1} parent=1 // pred_check_branch
      %46 = sbr.rel (0) target = $region29
    $region28: #{tpu_custom_call.1} parent=1 // pred_region
      _
    $region29: #{tpu_custom_call.1} parent=1 // pred_fallthru
      _
    // Predicated region
    $region30: #{tpu_custom_call.1} parent=1 // pred_check
      _
    $region31: #{tpu_custom_call.1} parent=1 // pred_check_branch
      %48 = sbr.rel (0) target = $region33
    $region32: #{tpu_custom_call.1} parent=1 // pred_region
      %s50 = ssub.s32 6144, 6144
      %51 = vsyncadd [#allocation7], %s50
      %s52 = sshll.u32 [#allocation6], 4
      %s53 = int_to_ptr.vmem [resolvable:$true] %s52
      %58 = dma.hbm_to_vmem [thread:$0]  %s7, 6144, %s53, [#allocation7], 128, 128, 8
    $region33: #{tpu_custom_call.1} parent=1 // pred_fallthru
      _
    // Predicated region
    $region34: #{tpu_custom_call.1} parent=1 // pred_check
      _
    $region35: #{tpu_custom_call.1} parent=1 // pred_check_branch
      %60 = sbr.rel (0) target = $region37
    $region36: #{tpu_custom_call.1} parent=1 // pred_region
      _
    $region37: #{tpu_custom_call.1} parent=1 // pred_fallthru
      _
    // Predicated region
    $region38: #{tpu_custom_call.1} parent=1 // pred_check
      _
    $region39: #{tpu_custom_call.1} parent=1 // pred_check_branch
      %62 = sbr.rel (0) target = $region41
    $region40: #{tpu_custom_call.1} parent=1 // pred_region
      _
    $region41: #{tpu_custom_call.1} parent=1 // pred_fallthru
      _
    // Predicated region
    $region42: #{tpu_custom_call.1} parent=1 // pred_check
      _
    $region43: #{tpu_custom_call.1} parent=1 // pred_check_branch
      %64 = sbr.rel (0) target = $region45
    $region44: #{tpu_custom_call.1} parent=1 // pred_region
      _
    $region45: #{tpu_custom_call.1} parent=1 // pred_fallthru
      _
    // Predicated region
    $region46: #{tpu_custom_call.1} parent=1 // pred_check
      _
    $region47: #{tpu_custom_call.1} parent=1 // pred_check_branch
      %66 = sbr.rel (0) target = $region49
    $region48: #{tpu_custom_call.1} parent=1 // pred_region
      _
    $region49: #{tpu_custom_call.1} parent=1 // pred_fallthru
      _
    // Predicated region
    $region50: #{tpu_custom_call.1} parent=1 // pred_check
      _
    $region51: #{tpu_custom_call.1} parent=1 // pred_check_branch
      %68 = sbr.rel (0) target = $region53
    $region52: #{tpu_custom_call.1} parent=1 // pred_region
      _
    $region53: #{tpu_custom_call.1} parent=1 // pred_fallthru
      _
    // Predicated region
    $region54: #{tpu_custom_call.1} parent=1 // pred_check
      _
    $region55: #{tpu_custom_call.1} parent=1 // pred_check_branch
      %70 = sbr.rel (0) target = $region57
    $region56: #{tpu_custom_call.1} parent=1 // pred_region
      _
    $region57: #{tpu_custom_call.1} parent=1 // pred_fallthru
      _
    // Predicated region
    $region58: #{tpu_custom_call.1} parent=1 // pred_check
      _
    $region59: #{tpu_custom_call.1} parent=1 // pred_check_branch
      %72 = sbr.rel (0) target = $region61
    $region60: #{tpu_custom_call.1} parent=1 // pred_region
      _
    $region61: #{tpu_custom_call.1} parent=1 // pred_fallthru
      _
    // Predicated region
    $region62: #{tpu_custom_call.1} parent=1 // pred_check
      _
    $region63: #{tpu_custom_call.1} parent=1 // pred_check_branch
      %74 = sbr.rel (0) target = $region65
    $region64: #{tpu_custom_call.1} parent=1 // pred_region
      %75 = dma.done [#allocation4], 6144
    $region65: #{tpu_custom_call.1} parent=1 // pred_fallthru
      _
    // Predicated region
    $region66: #{tpu_custom_call.1} parent=1 // pred_check
      _
    $region67: #{tpu_custom_call.1} parent=1 // pred_check_branch
      %77 = sbr.rel (0) target = $region69
    $region68: #{tpu_custom_call.1} parent=1 // pred_region
      %78 = dma.done [#allocation7], 6144
    $region69: #{tpu_custom_call.1} parent=1 // pred_fallthru
      _
    %v79 = vld [vmem:[%s0] sm:$0xff]
    %v80 = vld [vmem:[%s0 + $0x8] sm:$0xff]
    %v81 = vld [vmem:[%s0 + $0x18] sm:$0xff]
    %v82 = vld [vmem:[%s0 + $0x20] sm:$0xff]
    %v83 = vld [vmem:[#allocation3] sm:$0xff]
    %v84 = vld [vmem:[#allocation3 + $0x8] sm:$0xff]
    %v85 = vld [vmem:[#allocation3 + $0x10] sm:$0xff]
    %v86 = vld [vmem:[#allocation3 + $0x18] sm:$0xff]
    %v87 = vld [vmem:[#allocation3 + $0x20] sm:$0xff]
    %v88 = vld [vmem:[#allocation3 + $0x28] sm:$0xff]
    %v89 = vld [vmem:[#allocation3 + $0x30] sm:$0xff]
    %v90 = vld [vmem:[#allocation3 + $0x38] sm:$0xff]
    %v91 = vld [vmem:[#allocation3 + $0x40] sm:$0xff]
    %v92 = vld [vmem:[#allocation3 + $0x48] sm:$0xff]
    %v93 = vld [vmem:[#allocation3 + $0x50] sm:$0xff]
    %v94 = vld [vmem:[#allocation3 + $0x58] sm:$0xff]
    %v95 = vld [vmem:[#allocation3 + $0x60] sm:$0xff]
    %v96 = vld [vmem:[#allocation3 + $0x68] sm:$0xff]
    %v97 = vld [vmem:[#allocation3 + $0x70] sm:$0xff]
    %v98 = vld [vmem:[#allocation3 + $0x78] sm:$0xff]
    %v99 = vld [vmem:[%s0 + $0x1] sm:$0xff]
    %v100 = vld [vmem:[%s0 + $0x9] sm:$0xff]
    %v101 = vld [vmem:[%s0 + $0x19] sm:$0xff]
    %v102 = vld [vmem:[%s0 + $0x21] sm:$0xff]
    %s103 = scalar_lea.vmem [#allocation3], 128
    %v104 = vld [vmem:[%s103] sm:$0xff]
    %v105 = vld [vmem:[%s103 + $0x8] sm:$0xff]
    %v106 = vld [vmem:[%s103 + $0x10] sm:$0xff]
    %v107 = vld [vmem:[%s103 + $0x18] sm:$0xff]
    %v108 = vld [vmem:[%s103 + $0x20] sm:$0xff]
    %v109 = vld [vmem:[%s103 + $0x28] sm:$0xff]
    %v110 = vld [vmem:[%s103 + $0x30] sm:$0xff]
    %v111 = vld [vmem:[%s103 + $0x38] sm:$0xff]
    %v112 = vld [vmem:[%s103 + $0x40] sm:$0xff]
    %v113 = vld [vmem:[%s103 + $0x48] sm:$0xff]
    %v114 = vld [vmem:[%s103 + $0x50] sm:$0xff]
    %v115 = vld [vmem:[%s103 + $0x58] sm:$0xff]
    %v116 = vld [vmem:[%s103 + $0x60] sm:$0xff]
    %v117 = vld [vmem:[%s103 + $0x68] sm:$0xff]
    %v118 = vld [vmem:[%s103 + $0x70] sm:$0xff]
    %v119 = vld [vmem:[%s103 + $0x78] sm:$0xff]
    %120 = vmatprep.subr.mxu0 0.0
    %121 = vmatpush1.msra.mxu0 %v104
    %122 = vmatprep.subr.mxu0 0.0
    %123 = vmatpush1.msra.mxu0 %v105
    %124 = vmatprep.subr.mxu0 0.0
    %125 = vmatpush1.msra.mxu0 %v106
    %126 = vmatprep.subr.mxu0 0.0
    %127 = vmatpush1.msra.mxu0 %v107
    %128 = vmatprep.subr.mxu0 0.0
    %129 = vmatpush1.msra.mxu0 %v108
    %130 = vmatprep.subr.mxu0 0.0
    %131 = vmatpush1.msra.mxu0 %v109
    %132 = vmatprep.subr.mxu0 0.0
    %133 = vmatpush1.msra.mxu0 %v110
    %134 = vmatprep.subr.mxu0 0.0
    %135 = vmatpush1.msra.mxu0 %v111
    %136 = vmatprep.subr.mxu0 0.0
    %137 = vmatpush1.msra.mxu0 %v112
    %138 = vmatprep.subr.mxu0 0.0
    %139 = vmatpush1.msra.mxu0 %v113
    %140 = vmatprep.subr.mxu0 0.0
    %141 = vmatpush1.msra.mxu0 %v114
    %142 = vmatprep.subr.mxu0 0.0
    %143 = vmatpush1.msra.mxu0 %v115
    %144 = vmatprep.subr.mxu0 0.0
    %145 = vmatpush1.msra.mxu0 %v116
    %146 = vmatprep.subr.mxu0 0.0
    %147 = vmatpush1.msra.mxu0 %v117
    %148 = vmatprep.subr.mxu0 0.0
    %149 = vmatpush1.msra.mxu0 %v118
    %150 = vmatprep.subr.mxu0 0.0
    %151 = vmatpush1.msra.mxu0 %v119
    %152 = vmatprep.subr.mxu0 0.0
    %153 = vmatpush1.msra.mxu0 0.0
    %154 = vmatprep.subr.mxu0 0.0
    %155 = vmatpush1.msra.mxu0 0.0
    %156 = vmatprep.subr.mxu0 0.0
    %157 = vmatpush1.msra.mxu0 0.0
    %158 = vmatprep.subr.mxu0 0.0
    %159 = vmatpush1.msra.mxu0 0.0
    %160 = vmatprep.subr.mxu0 0.0
    %161 = vmatpush1.msra.mxu0 0.0
    %162 = vmatprep.subr.mxu0 0.0
    %163 = vmatpush1.msra.mxu0 0.0
    %164 = vmatprep.subr.mxu0 0.0
    %165 = vmatpush1.msra.mxu0 0.0
    %166 = vmatprep.subr.mxu0 0.0
    %167 = vmatpush1.msra.mxu0 0.0
    %168 = vmatprep.subr.mxu0 0.0
    %169 = vmatpush1.msra.mxu0 0.0
    %170 = vmatprep.subr.mxu0 0.0
    %171 = vmatpush1.msra.mxu0 0.0
    %172 = vmatprep.subr.mxu0 0.0
    %173 = vmatpush1.msra.mxu0 0.0
    %174 = vmatprep.subr.mxu0 0.0
    %175 = vmatpush1.msra.mxu0 0.0
    %176 = vmatprep.subr.mxu0 0.0
    %177 = vmatpush1.msra.mxu0 0.0
    %178 = vmatprep.subr.mxu0 0.0
    %179 = vmatpush1.msra.mxu0 0.0
    %180 = vmatprep.subr.mxu0 0.0
    %181 = vmatpush1.msra.mxu0 0.0
    %182 = vmatprep.subr.mxu0 0.0
    %183 = vmatpush1.msra.mxu0 0.0
    %184 = vmatprep.mubr.f32.mxu0 0.0
    %185 = vmatmul.mubr.f32.gmra.mrb[0].mxu0 %v99
    %v186 = vpop.f32.mrb[0].mxu0
    %v187 = vadd.f32 0.0, %v186
    %v188 = vpop.f32.mrb[0].mxu0
    %189 = vmatprep.mubr.f32.mxu0 0.0
    %190 = vmatmul.mubr.f32.gmra.mrb[0].mxu0 %v100
    %v191 = vpop.f32.mrb[0].mxu0
    %v192 = vadd.f32 0.0, %v191
    %v193 = vpop.f32.mrb[0].mxu0
    %194 = vmatprep.mubr.f32.mxu0 0.0
    %195 = vmatmul.mubr.f32.gmra.mrb[0].mxu0 %v101
    %v196 = vpop.f32.mrb[0].mxu0
    %v197 = vadd.f32 0.0, %v196
    %v198 = vpop.f32.mrb[0].mxu0
    %199 = vmatprep.mubr.f32.mxu0 0.0
    %200 = vmatmul.mubr.f32.gmra.mrb[0].mxu0 %v102
    %v201 = vpop.f32.mrb[0].mxu0
    %v202 = vadd.f32 0.0, %v201
    %v203 = vpop.f32.mrb[0].mxu0
    %204 = vdwg.mxu0
    %205 = vmatprep.subr.mxu0 0.0
    %206 = vmatpush1.msra.mxu0 %v83
    %207 = vmatprep.subr.mxu0 0.0
    %208 = vmatpush1.msra.mxu0 %v84
    %209 = vmatprep.subr.mxu0 0.0
    %210 = vmatpush1.msra.mxu0 %v85
    %211 = vmatprep.subr.mxu0 0.0
    %212 = vmatpush1.msra.mxu0 %v86
    %213 = vmatprep.subr.mxu0 0.0
    %214 = vmatpush1.msra.mxu0 %v87
    %215 = vmatprep.subr.mxu0 0.0
    %216 = vmatpush1.msra.mxu0 %v88
    %217 = vmatprep.subr.mxu0 0.0
    %218 = vmatpush1.msra.mxu0 %v89
    %219 = vmatprep.subr.mxu0 0.0
    %220 = vmatpush1.msra.mxu0 %v90
    %221 = vmatprep.subr.mxu0 0.0
    %222 = vmatpush1.msra.mxu0 %v91
    %223 = vmatprep.subr.mxu0 0.0
    %224 = vmatpush1.msra.mxu0 %v92
    %225 = vmatprep.subr.mxu0 0.0
    %226 = vmatpush1.msra.mxu0 %v93
    %227 = vmatprep.subr.mxu0 0.0
    %228 = vmatpush1.msra.mxu0 %v94
    %229 = vmatprep.subr.mxu0 0.0
    %230 = vmatpush1.msra.mxu0 %v95
    %231 = vmatprep.subr.mxu0 0.0
    %232 = vmatpush1.msra.mxu0 %v96
    %233 = vmatprep.subr.mxu0 0.0
    %234 = vmatpush1.msra.mxu0 %v97
    %235 = vmatprep.subr.mxu0 0.0
    %236 = vmatpush1.msra.mxu0 %v98
    %237 = vmatprep.subr.mxu0 0.0
    %238 = vmatpush1.msra.mxu0 0.0
    %239 = vmatprep.subr.mxu0 0.0
    %240 = vmatpush1.msra.mxu0 0.0
    %241 = vmatprep.subr.mxu0 0.0
    %242 = vmatpush1.msra.mxu0 0.0
    %243 = vmatprep.subr.mxu0 0.0
    %244 = vmatpush1.msra.mxu0 0.0
    %245 = vmatprep.subr.mxu0 0.0
    %246 = vmatpush1.msra.mxu0 0.0
    %247 = vmatprep.subr.mxu0 0.0
    %248 = vmatpush1.msra.mxu0 0.0
    %249 = vmatprep.subr.mxu0 0.0
    %250 = vmatpush1.msra.mxu0 0.0
    %251 = vmatprep.subr.mxu0 0.0
    %252 = vmatpush1.msra.mxu0 0.0
    %253 = vmatprep.subr.mxu0 0.0
    %254 = vmatpush1.msra.mxu0 0.0
    %255 = vmatprep.subr.mxu0 0.0
    %256 = vmatpush1.msra.mxu0 0.0
    %257 = vmatprep.subr.mxu0 0.0
    %258 = vmatpush1.msra.mxu0 0.0
    %259 = vmatprep.subr.mxu0 0.0
    %260 = vmatpush1.msra.mxu0 0.0
    %261 = vmatprep.subr.mxu0 0.0
    %262 = vmatpush1.msra.mxu0 0.0
    %263 = vmatprep.subr.mxu0 0.0
    %264 = vmatpush1.msra.mxu0 0.0
    %265 = vmatprep.subr.mxu0 0.0
    %266 = vmatpush1.msra.mxu0 0.0
    %267 = vmatprep.subr.mxu0 0.0
    %268 = vmatpush1.msra.mxu0 0.0
    %269 = vmatprep.mubr.f32.mxu0 0.0
    %270 = vmatmul.mubr.f32.gmra.mrb[0].mxu0 %v79
    %v271 = vpop.f32.mrb[0].mxu0
    %v272 = vadd.f32 %v187, %v271
    %v273 = vpop.f32.mrb[0].mxu0
    %274 = vmatprep.mubr.f32.mxu0 0.0
    %275 = vmatmul.mubr.f32.gmra.mrb[0].mxu0 %v80
    %v276 = vpop.f32.mrb[0].mxu0
    %v277 = vadd.f32 %v192, %v276
    %v278 = vpop.f32.mrb[0].mxu0
    %279 = vmatprep.mubr.f32.mxu0 0.0
    %280 = vmatmul.mubr.f32.gmra.mrb[0].mxu0 %v81
    %v281 = vpop.f32.mrb[0].mxu0
    %v282 = vadd.f32 %v197, %v281
    %v283 = vpop.f32.mrb[0].mxu0
    %284 = vmatprep.mubr.f32.mxu0 0.0
    %285 = vmatmul.mubr.f32.gmra.mrb[0].mxu0 %v82
    %v286 = vpop.f32.mrb[0].mxu0
    %v287 = vadd.f32 %v202, %v286
    %v288 = vpop.f32.mrb[0].mxu0
    %289 = vdwg.mxu0
    %v290 = vld [vmem:[%s0 + $0x2] sm:$0xff]
    %v291 = vld [vmem:[%s0 + $0xa] sm:$0xff]
    %v292 = vld [vmem:[%s0 + $0x1a] sm:$0xff]
    %v293 = vld [vmem:[%s0 + $0x22] sm:$0xff]
    %s294 = scalar_lea.vmem [#allocation3], 256
    %v295 = vld [vmem:[%s294] sm:$0xff]
    %v296 = vld [vmem:[%s294 + $0x8] sm:$0xff]
    %v297 = vld [vmem:[%s294 + $0x10] sm:$0xff]
    %v298 = vld [vmem:[%s294 + $0x18] sm:$0xff]
    %v299 = vld [vmem:[%s294 + $0x20] sm:$0xff]
    %v300 = vld [vmem:[%s294 + $0x28] sm:$0xff]
    %v301 = vld [vmem:[%s294 + $0x30] sm:$0xff]
    %v302 = vld [vmem:[%s294 + $0x38] sm:$0xff]
    %v303 = vld [vmem:[%s294 + $0x40] sm:$0xff]
    %v304 = vld [vmem:[%s294 + $0x48] sm:$0xff]
    %v305 = vld [vmem:[%s294 + $0x50] sm:$0xff]
    %v306 = vld [vmem:[%s294 + $0x58] sm:$0xff]
    %v307 = vld [vmem:[%s294 + $0x60] sm:$0xff]
    %v308 = vld [vmem:[%s294 + $0x68] sm:$0xff]
    %v309 = vld [vmem:[%s294 + $0x70] sm:$0xff]
    %v310 = vld [vmem:[%s294 + $0x78] sm:$0xff]
    %311 = vmatprep.subr.mxu0 0.0
    %312 = vmatpush1.msra.mxu0 %v295
    %313 = vmatprep.subr.mxu0 0.0
    %314 = vmatpush1.msra.mxu0 %v296
    %315 = vmatprep.subr.mxu0 0.0
    %316 = vmatpush1.msra.mxu0 %v297
    %317 = vmatprep.subr.mxu0 0.0
    %318 = vmatpush1.msra.mxu0 %v298
    %319 = vmatprep.subr.mxu0 0.0
    %320 = vmatpush1.msra.mxu0 %v299
    %321 = vmatprep.subr.mxu0 0.0
    %322 = vmatpush1.msra.mxu0 %v300
    %323 = vmatprep.subr.mxu0 0.0
    %324 = vmatpush1.msra.mxu0 %v301
    %325 = vmatprep.subr.mxu0 0.0
    %326 = vmatpush1.msra.mxu0 %v302
    %327 = vmatprep.subr.mxu0 0.0
    %328 = vmatpush1.msra.mxu0 %v303
    %329 = vmatprep.subr.mxu0 0.0
    %330 = vmatpush1.msra.mxu0 %v304
    %331 = vmatprep.subr.mxu0 0.0
    %332 = vmatpush1.msra.mxu0 %v305
    %333 = vmatprep.subr.mxu0 0.0
    %334 = vmatpush1.msra.mxu0 %v306
    %335 = vmatprep.subr.mxu0 0.0
    %336 = vmatpush1.msra.mxu0 %v307
    %337 = vmatprep.subr.mxu0 0.0
    %338 = vmatpush1.msra.mxu0 %v308
    %339 = vmatprep.subr.mxu0 0.0
    %340 = vmatpush1.msra.mxu0 %v309
    %341 = vmatprep.subr.mxu0 0.0
    %342 = vmatpush1.msra.mxu0 %v310
    %343 = vmatprep.subr.mxu0 0.0
    %344 = vmatpush1.msra.mxu0 0.0
    %345 = vmatprep.subr.mxu0 0.0
    %346 = vmatpush1.msra.mxu0 0.0
    %347 = vmatprep.subr.mxu0 0.0
    %348 = vmatpush1.msra.mxu0 0.0
    %349 = vmatprep.subr.mxu0 0.0
    %350 = vmatpush1.msra.mxu0 0.0
    %351 = vmatprep.subr.mxu0 0.0
    %352 = vmatpush1.msra.mxu0 0.0
    %353 = vmatprep.subr.mxu0 0.0
    %354 = vmatpush1.msra.mxu0 0.0
    %355 = vmatprep.subr.mxu0 0.0
    %356 = vmatpush1.msra.mxu0 0.0
    %357 = vmatprep.subr.mxu0 0.0
    %358 = vmatpush1.msra.mxu0 0.0
    %359 = vmatprep.subr.mxu0 0.0
    %360 = vmatpush1.msra.mxu0 0.0
    %361 = vmatprep.subr.mxu0 0.0
    %362 = vmatpush1.msra.mxu0 0.0
    %363 = vmatprep.subr.mxu0 0.0
    %364 = vmatpush1.msra.mxu0 0.0
    %365 = vmatprep.subr.mxu0 0.0
    %366 = vmatpush1.msra.mxu0 0.0
    %367 = vmatprep.subr.mxu0 0.0
    %368 = vmatpush1.msra.mxu0 0.0
    %369 = vmatprep.subr.mxu0 0.0
    %370 = vmatpush1.msra.mxu0 0.0
    %371 = vmatprep.subr.mxu0 0.0
    %372 = vmatpush1.msra.mxu0 0.0
    %373 = vmatprep.subr.mxu0 0.0
    %374 = vmatpush1.msra.mxu0 0.0
    %375 = vmatprep.mubr.f32.mxu0 0.0
    %376 = vmatmul.mubr.f32.gmra.mrb[0].mxu0 %v290
    %v377 = vpop.f32.mrb[0].mxu0
    %v378 = vadd.f32 0.0, %v377
    %v379 = vpop.f32.mrb[0].mxu0
    %380 = vmatprep.mubr.f32.mxu0 0.0
    %381 = vmatmul.mubr.f32.gmra.mrb[0].mxu0 %v291
    %v382 = vpop.f32.mrb[0].mxu0
    %v383 = vadd.f32 0.0, %v382
    %v384 = vpop.f32.mrb[0].mxu0
    %385 = vmatprep.mubr.f32.mxu0 0.0
    %386 = vmatmul.mubr.f32.gmra.mrb[0].mxu0 %v292
    %v387 = vpop.f32.mrb[0].mxu0
    %v388 = vadd.f32 0.0, %v387
    %v389 = vpop.f32.mrb[0].mxu0
    %390 = vmatprep.mubr.f32.mxu0 0.0
    %391 = vmatmul.mubr.f32.gmra.mrb[0].mxu0 %v293
    %v392 = vpop.f32.mrb[0].mxu0
    %v393 = vadd.f32 0.0, %v392
    %v394 = vpop.f32.mrb[0].mxu0
    %395 = vdwg.mxu0
    %v396 = vadd.f32 %v272, %v378
    %v397 = vadd.f32 %v277, %v383
    %v398 = vadd.f32 %v282, %v388
    %v399 = vadd.f32 %v287, %v393
    %v400 = vld [vmem:[%s4] sm:$0x1]
    %v402 = vlaneseq
    %v403 = vshrl.u32 %v402, 7
    %v404 = vsub.s32 0, %v403
    %v405 = vrot.slane %v400, %v404
    %v407 = vadd.f32 %v396, %v405
    %v408 = vadd.f32 %v397, %v405
    %v409 = vadd.f32 %v398, %v405
    %v410 = vadd.f32 %v399, %v405
    %v411 = vadd.f32 %v407, %v408
    %v412 = vrot.slane %v411, 4
    %v413 = vadd.f32 %v411, %v412
    %v414 = vrot.slane %v413, 2
    %v415 = vadd.f32 %v413, %v414
    %v416 = vrot.slane %v415, 1
    %v417 = vadd.f32 %v415, %v416
    %v418 = vadd.f32 %v409, %v410
    %v419 = vrot.slane %v418, 4
    %v420 = vadd.f32 %v418, %v419
    %v421 = vrot.slane %v420, 2
    %v422 = vadd.f32 %v420, %v421
    %v423 = vrot.slane %v422, 1
    %v424 = vadd.f32 %v422, %v423
    %v425 = vmul.f32 %v407, %v407
    %v426 = vmul.f32 %v408, %v408
    %v427 = vmul.f32 %v409, %v409
    %v428 = vmul.f32 %v410, %v410
    %v429 = vadd.f32 %v425, %v426
    %v430 = vrot.slane %v429, 4
    %v431 = vadd.f32 %v429, %v430
    %v432 = vrot.slane %v431, 2
    %v433 = vadd.f32 %v431, %v432
    %v434 = vrot.slane %v433, 1
    %v435 = vadd.f32 %v433, %v434
    %v436 = vadd.f32 %v427, %v428
    %v437 = vrot.slane %v436, 4
    %v438 = vadd.f32 %v436, %v437
    %v439 = vrot.slane %v438, 2
    %v440 = vadd.f32 %v438, %v439
    %v441 = vrot.slane %v440, 1
    %v442 = vadd.f32 %v440, %v441
    %vm445 = vcmask 1041409
    %v446 = vsel %vm445, %v424, %v417
    %vm450 = vcmask 1043459
    %v451 = vsel %vm450, %v442, %v435
    %vm453 = vcmask 1041408
    %v454 = vsel %vm453, %v446, %v451
    %v455 = vld [vmem:[%s13] sm:$0xff]
    %v456 = vld [vmem:[%s13 + $0x8] sm:$0xff]
    %v457 = vld [vmem:[%s13 + $0x10] sm:$0xff]
    %v458 = vld [vmem:[%s13 + $0x18] sm:$0xff]
    %v459 = vld [vmem:[%s13 + $0x20] sm:$0xff]
    %v460 = vld [vmem:[%s13 + $0x28] sm:$0xff]
    %v461 = vld [vmem:[%s13 + $0x30] sm:$0xff]
    %v462 = vld [vmem:[%s13 + $0x38] sm:$0xff]
    %v463 = vld [vmem:[%s13 + $0x40] sm:$0xff]
    %v464 = vld [vmem:[%s13 + $0x48] sm:$0xff]
    %v465 = vld [vmem:[%s13 + $0x50] sm:$0xff]
    %v466 = vld [vmem:[%s13 + $0x58] sm:$0xff]
    %v467 = vld [vmem:[%s13 + $0x60] sm:$0xff]
    %v468 = vld [vmem:[%s13 + $0x68] sm:$0xff]
    %v469 = vld [vmem:[%s13 + $0x70] sm:$0xff]
    %v470 = vld [vmem:[%s13 + $0x78] sm:$0xff]
    %471 = vmatprep.subr.mxu0 0.0
    %472 = vmatpush1.msra.mxu0 %v455
    %473 = vmatprep.subr.mxu0 0.0
    %474 = vmatpush1.msra.mxu0 %v456
    %475 = vmatprep.subr.mxu0 0.0
    %476 = vmatpush1.msra.mxu0 %v457
    %477 = vmatprep.subr.mxu0 0.0
    %478 = vmatpush1.msra.mxu0 %v458
    %479 = vmatprep.subr.mxu0 0.0
    %480 = vmatpush1.msra.mxu0 %v459
    %481 = vmatprep.subr.mxu0 0.0
    %482 = vmatpush1.msra.mxu0 %v460
    %483 = vmatprep.subr.mxu0 0.0
    %484 = vmatpush1.msra.mxu0 %v461
    %485 = vmatprep.subr.mxu0 0.0
    %486 = vmatpush1.msra.mxu0 %v462
    %487 = vmatprep.subr.mxu0 0.0
    %488 = vmatpush1.msra.mxu0 %v463
    %489 = vmatprep.subr.mxu0 0.0
    %490 = vmatpush1.msra.mxu0 %v464
    %491 = vmatprep.subr.mxu0 0.0
    %492 = vmatpush1.msra.mxu0 %v465
    %493 = vmatprep.subr.mxu0 0.0
    %494 = vmatpush1.msra.mxu0 %v466
    %495 = vmatprep.subr.mxu0 0.0
    %496 = vmatpush1.msra.mxu0 %v467
    %497 = vmatprep.subr.mxu0 0.0
    %498 = vmatpush1.msra.mxu0 %v468
    %499 = vmatprep.subr.mxu0 0.0
    %500 = vmatpush1.msra.mxu0 %v469
    %501 = vmatprep.subr.mxu0 0.0
    %502 = vmatpush1.msra.mxu0 %v470
    %503 = vmatprep.subr.mxu0 0.0
    %504 = vmatpush1.msra.mxu0 0.0
    %505 = vmatprep.subr.mxu0 0.0
    %506 = vmatpush1.msra.mxu0 0.0
    %507 = vmatprep.subr.mxu0 0.0
    %508 = vmatpush1.msra.mxu0 0.0
    %509 = vmatprep.subr.mxu0 0.0
    %510 = vmatpush1.msra.mxu0 0.0
    %511 = vmatprep.subr.mxu0 0.0
    %512 = vmatpush1.msra.mxu0 0.0
    %513 = vmatprep.subr.mxu0 0.0
    %514 = vmatpush1.msra.mxu0 0.0
    %515 = vmatprep.subr.mxu0 0.0
    %516 = vmatpush1.msra.mxu0 0.0
    %517 = vmatprep.subr.mxu0 0.0
    %518 = vmatpush1.msra.mxu0 0.0
    %519 = vmatprep.subr.mxu0 0.0
    %520 = vmatpush1.msra.mxu0 0.0
    %521 = vmatprep.subr.mxu0 0.0
    %522 = vmatpush1.msra.mxu0 0.0
    %523 = vmatprep.subr.mxu0 0.0
    %524 = vmatpush1.msra.mxu0 0.0
    %525 = vmatprep.subr.mxu0 0.0
    %526 = vmatpush1.msra.mxu0 0.0
    %527 = vmatprep.subr.mxu0 0.0
    %528 = vmatpush1.msra.mxu0 0.0
    %529 = vmatprep.subr.mxu0 0.0
    %530 = vmatpush1.msra.mxu0 0.0
    %531 = vmatprep.subr.mxu0 0.0
    %532 = vmatpush1.msra.mxu0 0.0
    %533 = vmatprep.subr.mxu0 0.0
    %534 = vmatpush1.msra.mxu0 0.0
    %535 = vmatprep.mubr.f32.mxu0 0.0
    %536 = vmatmul.mubr.f32.gmra.mrb[0].mxu0 %v454
    %v537 = vpop.f32.mrb[0].mxu0
    %v538 = vadd.f32 0.0, %v537
    %v539 = vpop.f32.mrb[0].mxu0
    %540 = vdwg.mxu0
    %v541 = vmul.f32 %v538, 0.03125
    %v542 = vmul.f32 %v541, %v541
    %v544 = vrot.slane %v542, 6
    %v546 = vsub.f32 %v541, %v544
    %v547 = vmax.f32 %v546, 0.0
    %v548 = vadd.f32 %v547, 1e-05
    %v549 = vrsqrt.pop %v548
    %v550 = vsel %vm453, %v541, %v549
    %v551 = vld [vmem:[%s14] sm:$0xff]
    %vm552 = vcmask 64512
    %v554 = vsel %vm552, %v550, 0
    %556 = vmatprep.subr.mxu0 0.0
    %557 = vmatpush1.msra.mxu0 %v551
    %558 = vmatprep.subr.mxu0 0.0
    %559 = vmatpush1.msra.mxu0 0.0
    %560 = vmatprep.subr.mxu0 0.0
    %561 = vmatpush1.msra.mxu0 0.0
    %562 = vmatprep.subr.mxu0 0.0
    %563 = vmatpush1.msra.mxu0 0.0
    %564 = vmatprep.subr.mxu0 0.0
    %565 = vmatpush1.msra.mxu0 0.0
    %566 = vmatprep.subr.mxu0 0.0
    %567 = vmatpush1.msra.mxu0 0.0
    %568 = vmatprep.subr.mxu0 0.0
    %569 = vmatpush1.msra.mxu0 0.0
    %570 = vmatprep.subr.mxu0 0.0
    %571 = vmatpush1.msra.mxu0 0.0
    %572 = vmatprep.subr.mxu0 0.0
    %573 = vmatpush1.msra.mxu0 0.0
    %574 = vmatprep.subr.mxu0 0.0
    %575 = vmatpush1.msra.mxu0 0.0
    %576 = vmatprep.subr.mxu0 0.0
    %577 = vmatpush1.msra.mxu0 0.0
    %578 = vmatprep.subr.mxu0 0.0
    %579 = vmatpush1.msra.mxu0 0.0
    %580 = vmatprep.subr.mxu0 0.0
    %581 = vmatpush1.msra.mxu0 0.0
    %582 = vmatprep.subr.mxu0 0.0
    %583 = vmatpush1.msra.mxu0 0.0
    %584 = vmatprep.subr.mxu0 0.0
    %585 = vmatpush1.msra.mxu0 0.0
    %586 = vmatprep.subr.mxu0 0.0
    %587 = vmatpush1.msra.mxu0 0.0
    %588 = vmatprep.subr.mxu0 0.0
    %589 = vmatpush1.msra.mxu0 0.0
    %590 = vmatprep.subr.mxu0 0.0
    %591 = vmatpush1.msra.mxu0 0.0
    %592 = vmatprep.subr.mxu0 0.0
    %593 = vmatpush1.msra.mxu0 0.0
    %594 = vmatprep.subr.mxu0 0.0
    %595 = vmatpush1.msra.mxu0 0.0
    %596 = vmatprep.subr.mxu0 0.0
    %597 = vmatpush1.msra.mxu0 0.0
    %598 = vmatprep.subr.mxu0 0.0
    %599 = vmatpush1.msra.mxu0 0.0
    %600 = vmatprep.subr.mxu0 0.0
    %601 = vmatpush1.msra.mxu0 0.0
    %602 = vmatprep.subr.mxu0 0.0
    %603 = vmatpush1.msra.mxu0 0.0
    %604 = vmatprep.subr.mxu0 0.0
    %605 = vmatpush1.msra.mxu0 0.0
    %606 = vmatprep.subr.mxu0 0.0
    %607 = vmatpush1.msra.mxu0 0.0
    %608 = vmatprep.subr.mxu0 0.0
    %609 = vmatpush1.msra.mxu0 0.0
    %610 = vmatprep.subr.mxu0 0.0
    %611 = vmatpush1.msra.mxu0 0.0
    %612 = vmatprep.subr.mxu0 0.0
    %613 = vmatpush1.msra.mxu0 0.0
    %614 = vmatprep.subr.mxu0 0.0
    %615 = vmatpush1.msra.mxu0 0.0
    %616 = vmatprep.subr.mxu0 0.0
    %617 = vmatpush1.msra.mxu0 0.0
    %618 = vmatprep.subr.mxu0 0.0
    %619 = vmatpush1.msra.mxu0 0.0
    %620 = vmatprep.mubr.f32.mxu0 0.0
    %621 = vmatmul.mubr.f32.gmra.mrb[0].mxu0 %v554
    %v622 = vpop.f32.mrb[0].mxu0
    %v623 = vadd.f32 0.0, %v622
    %v624 = vpop.f32.mrb[0].mxu0
    %625 = vdwg.mxu0
    %v628 = vunpack.c.l.s4 1966171168
    %v629 = vunpack.c.0.s8 %v628
    %v630 = vlaneseq
    %v631 = vshrl.u32 %v630, 7
    %v632 = vsub.s32 %v629, %v631
    %v633 = vrot.slane %v623, %v632
    %v634 = vcombine.high %v633, %v633
    %v636 = vunpack.c.l.s4 1966171168
    %v637 = vunpack.c.0.s8 %v636
    %v638 = vlaneseq
    %v639 = vshrl.u32 %v638, 7
    %v640 = vsub.s32 %v637, %v639
    %v641 = vrot.slane %v633, %v640
    %v643 = vunpack.c.l.s4 1966171168
    %v644 = vunpack.c.0.s8 %v643
    %v645 = vlaneseq
    %v646 = vshrl.u32 %v645, 7
    %v647 = vsub.s32 %v644, %v646
    %v648 = vrot.slane %v634, %v647
    %v651 = vcombine.high %v641, %v641
    %v652 = vcombine.high %v648, %v648
    %v655 = vld [vmem:[%s5] sm:$0x1]
    %v656 = vmul.f32 %v651, %v655
    %v657 = vmul.f32 %v652, %v655
    %v658 = vld [vmem:[%s6] sm:$0x1]
    %v659 = vmul.f32 %v641, %v656
    %v660 = vmul.f32 %v648, %v657
    %v661 = vsub.f32 %v658, %v659
    %v662 = vsub.f32 %v658, %v660
    %v665 = vlaneseq
    %v666 = vshrl.u32 %v665, 7
    %v667 = vsub.s32 0, %v666
    %v668 = vrot.slane %v656, %v667
    %v669 = vlaneseq
    %v670 = vshrl.u32 %v669, 7
    %v671 = vsub.s32 0, %v670
    %v672 = vrot.slane %v657, %v671
    %v675 = vmul.f32 %v407, %v668
    %v676 = vmul.f32 %v408, %v668
    %v677 = vmul.f32 %v409, %v672
    %v678 = vmul.f32 %v410, %v672
    %v681 = vlaneseq
    %v682 = vshrl.u32 %v681, 7
    %v683 = vsub.s32 0, %v682
    %v684 = vrot.slane %v661, %v683
    %v685 = vlaneseq
    %v686 = vshrl.u32 %v685, 7
    %v687 = vsub.s32 0, %v686
    %v688 = vrot.slane %v662, %v687
    %v691 = vadd.f32 %v675, %v684
    %v692 = vadd.f32 %v676, %v684
    %v693 = vadd.f32 %v677, %v688
    %v694 = vadd.f32 %v678, %v688
    %v695 = vmin.f32 %v691, 20.0
    %v696 = vmin.f32 %v692, 20.0
    %v697 = vmin.f32 %v693, 20.0
    %v698 = vmin.f32 %v694, 20.0
    %v699 = vmul.f32 %v695, 1.442695
    %v700 = vpow.pop %v699
    %v701 = vmul.f32 %v696, 1.442695
    %v702 = vpow.pop %v701
    %v703 = vmul.f32 %v697, 1.442695
    %v704 = vpow.pop %v703
    %v705 = vmul.f32 %v698, 1.442695
    %v706 = vpow.pop %v705
    %v707 = vadd.f32 %v700, 2.0
    %v708 = vadd.f32 %v702, 2.0
    %v709 = vadd.f32 %v704, 2.0
    %v710 = vadd.f32 %v706, 2.0
    %v711 = vmul.f32 %v700, %v707
    %v712 = vmul.f32 %v702, %v708
    %v713 = vmul.f32 %v704, %v709
    %v714 = vmul.f32 %v706, %v710
    %v715 = vmul.f32 %v691, %v711
    %v716 = vmul.f32 %v692, %v712
    %v717 = vmul.f32 %v693, %v713
    %v718 = vmul.f32 %v694, %v714
    %v719 = vadd.f32 %v711, 2.0
    %v720 = vadd.f32 %v712, 2.0
    %v721 = vadd.f32 %v713, 2.0
    %v722 = vadd.f32 %v714, 2.0
    %v723 = vrcp.pop %v719
    %v724 = vrcp.pop %v720
    %v725 = vrcp.pop %v721
    %v726 = vrcp.pop %v722
    %v727 = vmul.f32 %v715, %v723
    %v728 = vmul.f32 %v716, %v724
    %v729 = vmul.f32 %v717, %v725
    %v730 = vmul.f32 %v718, %v726
    %vm731 = vcmp.gt.f32.partialorder %v691, 20.0
    %vm732 = vcmp.gt.f32.partialorder %v692, 20.0
    %vm733 = vcmp.gt.f32.partialorder %v693, 20.0
    %vm734 = vcmp.gt.f32.partialorder %v694, 20.0
    %v735 = vsel %vm731, %v691, %v727
    %v736 = vsel %vm732, %v692, %v728
    %v737 = vsel %vm733, %v693, %v729
    %v738 = vsel %vm734, %v694, %v730
    %v739 = vld [vmem:[%s1] sm:$0x1]
    %v740 = vld [vmem:[%s1 + $0x1] sm:$0x1]
    %v743 = vlaneseq
    %v744 = vshrl.u32 %v743, 7
    %v745 = vsub.s32 0, %v744
    %v746 = vrot.slane %v739, %v745
    %v747 = vlaneseq
    %v748 = vshrl.u32 %v747, 7
    %v749 = vsub.s32 0, %v748
    %v750 = vrot.slane %v740, %v749
    %v753 = vmul.f32 %v746, %v735
    %v754 = vmul.f32 %v746, %v736
    %v755 = vmul.f32 %v750, %v737
    %v756 = vmul.f32 %v750, %v738
    %v757 = vld [vmem:[%s2] sm:$0x1]
    %v758 = vld [vmem:[%s2 + $0x1] sm:$0x1]
    %v761 = vlaneseq
    %v762 = vshrl.u32 %v761, 7
    %v763 = vsub.s32 0, %v762
    %v764 = vrot.slane %v757, %v763
    %v765 = vlaneseq
    %v766 = vshrl.u32 %v765, 7
    %v767 = vsub.s32 0, %v766
    %v768 = vrot.slane %v758, %v767
    %v771 = vadd.f32 %v753, %v764
    %v772 = vadd.f32 %v754, %v764
    %v773 = vadd.f32 %v755, %v768
    %v774 = vadd.f32 %v756, %v768
    %775 = vst [vmem:[#allocation2] sm:$0x1] 0.0
    %776 = vst [vmem:[#allocation2 + $0x18] sm:$0x1] 0.0
    %777 = vst [vmem:[#allocation2 + $0x11] sm:$0x1] 0.0
    %778 = vst [vmem:[#allocation2 + $0x29] sm:$0x1] 0.0
    %779 = vst [vmem:[#allocation2 + $0x1] sm:$0xff] %v771
    %780 = vst [vmem:[#allocation2 + $0x9] sm:$0xff] %v772
    %781 = vst [vmem:[#allocation2 + $0x19] sm:$0xff] %v773
    %782 = vst [vmem:[#allocation2 + $0x21] sm:$0xff] %v774
    %v783 = vld [vmem:[#allocation2] sm:$0xff]
    %v784 = vld [vmem:[#allocation2 + $0x8] sm:$0xff]
    %v785 = vld [vmem:[#allocation2 + $0x18] sm:$0xff]
    %v786 = vld [vmem:[#allocation2 + $0x20] sm:$0xff]
    %v787 = vld [vmem:[#allocation6] sm:$0xff]
    %v788 = vld [vmem:[#allocation6 + $0x8] sm:$0xff]
    %v789 = vld [vmem:[#allocation6 + $0x10] sm:$0xff]
    %v790 = vld [vmem:[#allocation6 + $0x18] sm:$0xff]
    %v791 = vld [vmem:[#allocation6 + $0x20] sm:$0xff]
    %v792 = vld [vmem:[#allocation6 + $0x28] sm:$0xff]
    %v793 = vld [vmem:[#allocation6 + $0x30] sm:$0xff]
    %v794 = vld [vmem:[#allocation6 + $0x38] sm:$0xff]
    %v795 = vld [vmem:[#allocation6 + $0x40] sm:$0xff]
    %v796 = vld [vmem:[#allocation6 + $0x48] sm:$0xff]
    %v797 = vld [vmem:[#allocation6 + $0x50] sm:$0xff]
    %v798 = vld [vmem:[#allocation6 + $0x58] sm:$0xff]
    %v799 = vld [vmem:[#allocation6 + $0x60] sm:$0xff]
    %v800 = vld [vmem:[#allocation6 + $0x68] sm:$0xff]
    %v801 = vld [vmem:[#allocation6 + $0x70] sm:$0xff]
    %v802 = vld [vmem:[#allocation6 + $0x78] sm:$0xff]
    %v803 = vld [vmem:[#allocation2 + $0x1] sm:$0xff]
    %v804 = vld [vmem:[#allocation2 + $0x9] sm:$0xff]
    %v805 = vld [vmem:[#allocation2 + $0x19] sm:$0xff]
    %v806 = vld [vmem:[#allocation2 + $0x21] sm:$0xff]
    %s807 = scalar_lea.vmem [#allocation6], 128
    %v808 = vld [vmem:[%s807] sm:$0xff]
    %v809 = vld [vmem:[%s807 + $0x8] sm:$0xff]
    %v810 = vld [vmem:[%s807 + $0x10] sm:$0xff]
    %v811 = vld [vmem:[%s807 + $0x18] sm:$0xff]
    %v812 = vld [vmem:[%s807 + $0x20] sm:$0xff]
    %v813 = vld [vmem:[%s807 + $0x28] sm:$0xff]
    %v814 = vld [vmem:[%s807 + $0x30] sm:$0xff]
    %v815 = vld [vmem:[%s807 + $0x38] sm:$0xff]
    %v816 = vld [vmem:[%s807 + $0x40] sm:$0xff]
    %v817 = vld [vmem:[%s807 + $0x48] sm:$0xff]
    %v818 = vld [vmem:[%s807 + $0x50] sm:$0xff]
    %v819 = vld [vmem:[%s807 + $0x58] sm:$0xff]
    %v820 = vld [vmem:[%s807 + $0x60] sm:$0xff]
    %v821 = vld [vmem:[%s807 + $0x68] sm:$0xff]
    %v822 = vld [vmem:[%s807 + $0x70] sm:$0xff]
    %v823 = vld [vmem:[%s807 + $0x78] sm:$0xff]
    %824 = vmatprep.subr.mxu0 0.0
    %825 = vmatpush1.msra.mxu0 %v808
    %826 = vmatprep.subr.mxu0 0.0
    %827 = vmatpush1.msra.mxu0 %v809
    %828 = vmatprep.subr.mxu0 0.0
    %829 = vmatpush1.msra.mxu0 %v810
    %830 = vmatprep.subr.mxu0 0.0
    %831 = vmatpush1.msra.mxu0 %v811
    %832 = vmatprep.subr.mxu0 0.0
    %833 = vmatpush1.msra.mxu0 %v812
    %834 = vmatprep.subr.mxu0 0.0
    %835 = vmatpush1.msra.mxu0 %v813
    %836 = vmatprep.subr.mxu0 0.0
    %837 = vmatpush1.msra.mxu0 %v814
    %838 = vmatprep.subr.mxu0 0.0
    %839 = vmatpush1.msra.mxu0 %v815
    %840 = vmatprep.subr.mxu0 0.0
    %841 = vmatpush1.msra.mxu0 %v816
    %842 = vmatprep.subr.mxu0 0.0
    %843 = vmatpush1.msra.mxu0 %v817
    %844 = vmatprep.subr.mxu0 0.0
    %845 = vmatpush1.msra.mxu0 %v818
    %846 = vmatprep.subr.mxu0 0.0
    %847 = vmatpush1.msra.mxu0 %v819
    %848 = vmatprep.subr.mxu0 0.0
    %849 = vmatpush1.msra.mxu0 %v820
    %850 = vmatprep.subr.mxu0 0.0
    %851 = vmatpush1.msra.mxu0 %v821
    %852 = vmatprep.subr.mxu0 0.0
    %853 = vmatpush1.msra.mxu0 %v822
    %854 = vmatprep.subr.mxu0 0.0
    %855 = vmatpush1.msra.mxu0 %v823
    %856 = vmatprep.subr.mxu0 0.0
    %857 = vmatpush1.msra.mxu0 0.0
    %858 = vmatprep.subr.mxu0 0.0
    %859 = vmatpush1.msra.mxu0 0.0
    %860 = vmatprep.subr.mxu0 0.0
    %861 = vmatpush1.msra.mxu0 0.0
    %862 = vmatprep.subr.mxu0 0.0
    %863 = vmatpush1.msra.mxu0 0.0
    %864 = vmatprep.subr.mxu0 0.0
    %865 = vmatpush1.msra.mxu0 0.0
    %866 = vmatprep.subr.mxu0 0.0
    %867 = vmatpush1.msra.mxu0 0.0
    %868 = vmatprep.subr.mxu0 0.0
    %869 = vmatpush1.msra.mxu0 0.0
    %870 = vmatprep.subr.mxu0 0.0
    %871 = vmatpush1.msra.mxu0 0.0
    %872 = vmatprep.subr.mxu0 0.0
    %873 = vmatpush1.msra.mxu0 0.0
    %874 = vmatprep.subr.mxu0 0.0
    %875 = vmatpush1.msra.mxu0 0.0
    %876 = vmatprep.subr.mxu0 0.0
    %877 = vmatpush1.msra.mxu0 0.0
    %878 = vmatprep.subr.mxu0 0.0
    %879 = vmatpush1.msra.mxu0 0.0
    %880 = vmatprep.subr.mxu0 0.0
    %881 = vmatpush1.msra.mxu0 0.0
    %882 = vmatprep.subr.mxu0 0.0
    %883 = vmatpush1.msra.mxu0 0.0
    %884 = vmatprep.subr.mxu0 0.0
    %885 = vmatpush1.msra.mxu0 0.0
    %886 = vmatprep.subr.mxu0 0.0
    %887 = vmatpush1.msra.mxu0 0.0
    %888 = vmatprep.mubr.f32.mxu0 0.0
    %889 = vmatmul.mubr.f32.gmra.mrb[0].mxu0 %v803
    %v890 = vpop.f32.mrb[0].mxu0
    %v891 = vadd.f32 0.0, %v890
    %v892 = vpop.f32.mrb[0].mxu0
    %893 = vmatprep.mubr.f32.mxu0 0.0
    %894 = vmatmul.mubr.f32.gmra.mrb[0].mxu0 %v804
    %v895 = vpop.f32.mrb[0].mxu0
    %v896 = vadd.f32 0.0, %v895
    %v897 = vpop.f32.mrb[0].mxu0
    %898 = vmatprep.mubr.f32.mxu0 0.0
    %899 = vmatmul.mubr.f32.gmra.mrb[0].mxu0 %v805
    %v900 = vpop.f32.mrb[0].mxu0
    %v901 = vadd.f32 0.0, %v900
    %v902 = vpop.f32.mrb[0].mxu0
    %903 = vmatprep.mubr.f32.mxu0 0.0
    %904 = vmatmul.mubr.f32.gmra.mrb[0].mxu0 %v806
    %v905 = vpop.f32.mrb[0].mxu0
    %v906 = vadd.f32 0.0, %v905
    %v907 = vpop.f32.mrb[0].mxu0
    %908 = vdwg.mxu0
    %909 = vmatprep.subr.mxu0 0.0
    %910 = vmatpush1.msra.mxu0 %v787
    %911 = vmatprep.subr.mxu0 0.0
    %912 = vmatpush1.msra.mxu0 %v788
    %913 = vmatprep.subr.mxu0 0.0
    %914 = vmatpush1.msra.mxu0 %v789
    %915 = vmatprep.subr.mxu0 0.0
    %916 = vmatpush1.msra.mxu0 %v790
    %917 = vmatprep.subr.mxu0 0.0
    %918 = vmatpush1.msra.mxu0 %v791
    %919 = vmatprep.subr.mxu0 0.0
    %920 = vmatpush1.msra.mxu0 %v792
    %921 = vmatprep.subr.mxu0 0.0
    %922 = vmatpush1.msra.mxu0 %v793
    %923 = vmatprep.subr.mxu0 0.0
    %924 = vmatpush1.msra.mxu0 %v794
    %925 = vmatprep.subr.mxu0 0.0
    %926 = vmatpush1.msra.mxu0 %v795
    %927 = vmatprep.subr.mxu0 0.0
    %928 = vmatpush1.msra.mxu0 %v796
    %929 = vmatprep.subr.mxu0 0.0
    %930 = vmatpush1.msra.mxu0 %v797
    %931 = vmatprep.subr.mxu0 0.0
    %932 = vmatpush1.msra.mxu0 %v798
    %933 = vmatprep.subr.mxu0 0.0
    %934 = vmatpush1.msra.mxu0 %v799
    %935 = vmatprep.subr.mxu0 0.0
    %936 = vmatpush1.msra.mxu0 %v800
    %937 = vmatprep.subr.mxu0 0.0
    %938 = vmatpush1.msra.mxu0 %v801
    %939 = vmatprep.subr.mxu0 0.0
    %940 = vmatpush1.msra.mxu0 %v802
    %941 = vmatprep.subr.mxu0 0.0
    %942 = vmatpush1.msra.mxu0 0.0
    %943 = vmatprep.subr.mxu0 0.0
    %944 = vmatpush1.msra.mxu0 0.0
    %945 = vmatprep.subr.mxu0 0.0
    %946 = vmatpush1.msra.mxu0 0.0
    %947 = vmatprep.subr.mxu0 0.0
    %948 = vmatpush1.msra.mxu0 0.0
    %949 = vmatprep.subr.mxu0 0.0
    %950 = vmatpush1.msra.mxu0 0.0
    %951 = vmatprep.subr.mxu0 0.0
    %952 = vmatpush1.msra.mxu0 0.0
    %953 = vmatprep.subr.mxu0 0.0
    %954 = vmatpush1.msra.mxu0 0.0
    %955 = vmatprep.subr.mxu0 0.0
    %956 = vmatpush1.msra.mxu0 0.0
    %957 = vmatprep.subr.mxu0 0.0
    %958 = vmatpush1.msra.mxu0 0.0
    %959 = vmatprep.subr.mxu0 0.0
    %960 = vmatpush1.msra.mxu0 0.0
    %961 = vmatprep.subr.mxu0 0.0
    %962 = vmatpush1.msra.mxu0 0.0
    %963 = vmatprep.subr.mxu0 0.0
    %964 = vmatpush1.msra.mxu0 0.0
    %965 = vmatprep.subr.mxu0 0.0
    %966 = vmatpush1.msra.mxu0 0.0
    %967 = vmatprep.subr.mxu0 0.0
    %968 = vmatpush1.msra.mxu0 0.0
    %969 = vmatprep.subr.mxu0 0.0
    %970 = vmatpush1.msra.mxu0 0.0
    %971 = vmatprep.subr.mxu0 0.0
    %972 = vmatpush1.msra.mxu0 0.0
    %973 = vmatprep.mubr.f32.mxu0 0.0
    %974 = vmatmul.mubr.f32.gmra.mrb[0].mxu0 %v783
    %v975 = vpop.f32.mrb[0].mxu0
    %v976 = vadd.f32 %v891, %v975
    %v977 = vpop.f32.mrb[0].mxu0
    %978 = vmatprep.mubr.f32.mxu0 0.0
    %979 = vmatmul.mubr.f32.gmra.mrb[0].mxu0 %v784
    %v980 = vpop.f32.mrb[0].mxu0
    %v981 = vadd.f32 %v896, %v980
    %v982 = vpop.f32.mrb[0].mxu0
    %983 = vmatprep.mubr.f32.mxu0 0.0
    %984 = vmatmul.mubr.f32.gmra.mrb[0].mxu0 %v785
    %v985 = vpop.f32.mrb[0].mxu0
    %v986 = vadd.f32 %v901, %v985
    %v987 = vpop.f32.mrb[0].mxu0
    %988 = vmatprep.mubr.f32.mxu0 0.0
    %989 = vmatmul.mubr.f32.gmra.mrb[0].mxu0 %v786
    %v990 = vpop.f32.mrb[0].mxu0
    %v991 = vadd.f32 %v906, %v990
    %v992 = vpop.f32.mrb[0].mxu0
    %993 = vdwg.mxu0
    %v994 = vld [vmem:[#allocation2 + $0x2] sm:$0xff]
    %v995 = vld [vmem:[#allocation2 + $0xa] sm:$0xff]
    %v996 = vld [vmem:[#allocation2 + $0x1a] sm:$0xff]
    %v997 = vld [vmem:[#allocation2 + $0x22] sm:$0xff]
    %s998 = scalar_lea.vmem [#allocation6], 256
    %v999 = vld [vmem:[%s998] sm:$0xff]
    %v1000 = vld [vmem:[%s998 + $0x8] sm:$0xff]
    %v1001 = vld [vmem:[%s998 + $0x10] sm:$0xff]
    %v1002 = vld [vmem:[%s998 + $0x18] sm:$0xff]
    %v1003 = vld [vmem:[%s998 + $0x20] sm:$0xff]
    %v1004 = vld [vmem:[%s998 + $0x28] sm:$0xff]
    %v1005 = vld [vmem:[%s998 + $0x30] sm:$0xff]
    %v1006 = vld [vmem:[%s998 + $0x38] sm:$0xff]
    %v1007 = vld [vmem:[%s998 + $0x40] sm:$0xff]
    %v1008 = vld [vmem:[%s998 + $0x48] sm:$0xff]
    %v1009 = vld [vmem:[%s998 + $0x50] sm:$0xff]
    %v1010 = vld [vmem:[%s998 + $0x58] sm:$0xff]
    %v1011 = vld [vmem:[%s998 + $0x60] sm:$0xff]
    %v1012 = vld [vmem:[%s998 + $0x68] sm:$0xff]
    %v1013 = vld [vmem:[%s998 + $0x70] sm:$0xff]
    %v1014 = vld [vmem:[%s998 + $0x78] sm:$0xff]
    %1015 = vmatprep.subr.mxu0 0.0
    %1016 = vmatpush1.msra.mxu0 %v999
    %1017 = vmatprep.subr.mxu0 0.0
    %1018 = vmatpush1.msra.mxu0 %v1000
    %1019 = vmatprep.subr.mxu0 0.0
    %1020 = vmatpush1.msra.mxu0 %v1001
    %1021 = vmatprep.subr.mxu0 0.0
    %1022 = vmatpush1.msra.mxu0 %v1002
    %1023 = vmatprep.subr.mxu0 0.0
    %1024 = vmatpush1.msra.mxu0 %v1003
    %1025 = vmatprep.subr.mxu0 0.0
    %1026 = vmatpush1.msra.mxu0 %v1004
    %1027 = vmatprep.subr.mxu0 0.0
    %1028 = vmatpush1.msra.mxu0 %v1005
    %1029 = vmatprep.subr.mxu0 0.0
    %1030 = vmatpush1.msra.mxu0 %v1006
    %1031 = vmatprep.subr.mxu0 0.0
    %1032 = vmatpush1.msra.mxu0 %v1007
    %1033 = vmatprep.subr.mxu0 0.0
    %1034 = vmatpush1.msra.mxu0 %v1008
    %1035 = vmatprep.subr.mxu0 0.0
    %1036 = vmatpush1.msra.mxu0 %v1009
    %1037 = vmatprep.subr.mxu0 0.0
    %1038 = vmatpush1.msra.mxu0 %v1010
    %1039 = vmatprep.subr.mxu0 0.0
    %1040 = vmatpush1.msra.mxu0 %v1011
    %1041 = vmatprep.subr.mxu0 0.0
    %1042 = vmatpush1.msra.mxu0 %v1012
    %1043 = vmatprep.subr.mxu0 0.0
    %1044 = vmatpush1.msra.mxu0 %v1013
    %1045 = vmatprep.subr.mxu0 0.0
    %1046 = vmatpush1.msra.mxu0 %v1014
    %1047 = vmatprep.subr.mxu0 0.0
    %1048 = vmatpush1.msra.mxu0 0.0
    %1049 = vmatprep.subr.mxu0 0.0
    %1050 = vmatpush1.msra.mxu0 0.0
    %1051 = vmatprep.subr.mxu0 0.0
    %1052 = vmatpush1.msra.mxu0 0.0
    %1053 = vmatprep.subr.mxu0 0.0
    %1054 = vmatpush1.msra.mxu0 0.0
    %1055 = vmatprep.subr.mxu0 0.0
    %1056 = vmatpush1.msra.mxu0 0.0
    %1057 = vmatprep.subr.mxu0 0.0
    %1058 = vmatpush1.msra.mxu0 0.0
    %1059 = vmatprep.subr.mxu0 0.0
    %1060 = vmatpush1.msra.mxu0 0.0
    %1061 = vmatprep.subr.mxu0 0.0
    %1062 = vmatpush1.msra.mxu0 0.0
    %1063 = vmatprep.subr.mxu0 0.0
    %1064 = vmatpush1.msra.mxu0 0.0
    %1065 = vmatprep.subr.mxu0 0.0
    %1066 = vmatpush1.msra.mxu0 0.0
    %1067 = vmatprep.subr.mxu0 0.0
    %1068 = vmatpush1.msra.mxu0 0.0
    %1069 = vmatprep.subr.mxu0 0.0
    %1070 = vmatpush1.msra.mxu0 0.0
    %1071 = vmatprep.subr.mxu0 0.0
    %1072 = vmatpush1.msra.mxu0 0.0
    %1073 = vmatprep.subr.mxu0 0.0
    %1074 = vmatpush1.msra.mxu0 0.0
    %1075 = vmatprep.subr.mxu0 0.0
    %1076 = vmatpush1.msra.mxu0 0.0
    %1077 = vmatprep.subr.mxu0 0.0
    %1078 = vmatpush1.msra.mxu0 0.0
    %1079 = vmatprep.mubr.f32.mxu0 0.0
    %1080 = vmatmul.mubr.f32.gmra.mrb[0].mxu0 %v994
    %v1081 = vpop.f32.mrb[0].mxu0
    %v1082 = vadd.f32 0.0, %v1081
    %v1083 = vpop.f32.mrb[0].mxu0
    %1084 = vmatprep.mubr.f32.mxu0 0.0
    %1085 = vmatmul.mubr.f32.gmra.mrb[0].mxu0 %v995
    %v1086 = vpop.f32.mrb[0].mxu0
    %v1087 = vadd.f32 0.0, %v1086
    %v1088 = vpop.f32.mrb[0].mxu0
    %1089 = vmatprep.mubr.f32.mxu0 0.0
    %1090 = vmatmul.mubr.f32.gmra.mrb[0].mxu0 %v996
    %v1091 = vpop.f32.mrb[0].mxu0
    %v1092 = vadd.f32 0.0, %v1091
    %v1093 = vpop.f32.mrb[0].mxu0
    %1094 = vmatprep.mubr.f32.mxu0 0.0
    %1095 = vmatmul.mubr.f32.gmra.mrb[0].mxu0 %v997
    %v1096 = vpop.f32.mrb[0].mxu0
    %v1097 = vadd.f32 0.0, %v1096
    %v1098 = vpop.f32.mrb[0].mxu0
    %1099 = vdwg.mxu0
    %v1100 = vadd.f32 %v976, %v1082
    %v1101 = vadd.f32 %v981, %v1087
    %v1102 = vadd.f32 %v986, %v1092
    %v1103 = vadd.f32 %v991, %v1097
    %v1104 = vld [vmem:[%s8] sm:$0x1]
    %v1106 = vlaneseq
    %v1107 = vshrl.u32 %v1106, 7
    %v1108 = vsub.s32 0, %v1107
    %v1109 = vrot.slane %v1104, %v1108
    %v1111 = vadd.f32 %v1100, %v1109
    %v1112 = vadd.f32 %v1101, %v1109
    %v1113 = vadd.f32 %v1102, %v1109
    %v1114 = vadd.f32 %v1103, %v1109
    %v1115 = vadd.f32 %v1111, %v1112
    %v1116 = vrot.slane %v1115, 4
    %v1117 = vadd.f32 %v1115, %v1116
    %v1118 = vrot.slane %v1117, 2
    %v1119 = vadd.f32 %v1117, %v1118
    %v1120 = vrot.slane %v1119, 1
    %v1121 = vadd.f32 %v1119, %v1120
    %v1122 = vadd.f32 %v1113, %v1114
    %v1123 = vrot.slane %v1122, 4
    %v1124 = vadd.f32 %v1122, %v1123
    %v1125 = vrot.slane %v1124, 2
    %v1126 = vadd.f32 %v1124, %v1125
    %v1127 = vrot.slane %v1126, 1
    %v1128 = vadd.f32 %v1126, %v1127
    %v1129 = vmul.f32 %v1111, %v1111
    %v1130 = vmul.f32 %v1112, %v1112
    %v1131 = vmul.f32 %v1113, %v1113
    %v1132 = vmul.f32 %v1114, %v1114
    %v1133 = vadd.f32 %v1129, %v1130
    %v1134 = vrot.slane %v1133, 4
    %v1135 = vadd.f32 %v1133, %v1134
    %v1136 = vrot.slane %v1135, 2
    %v1137 = vadd.f32 %v1135, %v1136
    %v1138 = vrot.slane %v1137, 1
    %v1139 = vadd.f32 %v1137, %v1138
    %v1140 = vadd.f32 %v1131, %v1132
    %v1141 = vrot.slane %v1140, 4
    %v1142 = vadd.f32 %v1140, %v1141
    %v1143 = vrot.slane %v1142, 2
    %v1144 = vadd.f32 %v1142, %v1143
    %v1145 = vrot.slane %v1144, 1
    %v1146 = vadd.f32 %v1144, %v1145
    %v1149 = vsel %vm445, %v1128, %v1121
    %v1153 = vsel %vm450, %v1146, %v1139
    %v1155 = vsel %vm453, %v1149, %v1153
    %v1156 = vld [vmem:[%s13] sm:$0xff]
    %v1157 = vld [vmem:[%s13 + $0x8] sm:$0xff]
    %v1158 = vld [vmem:[%s13 + $0x10] sm:$0xff]
    %v1159 = vld [vmem:[%s13 + $0x18] sm:$0xff]
    %v1160 = vld [vmem:[%s13 + $0x20] sm:$0xff]
    %v1161 = vld [vmem:[%s13 + $0x28] sm:$0xff]
    %v1162 = vld [vmem:[%s13 + $0x30] sm:$0xff]
    %v1163 = vld [vmem:[%s13 + $0x38] sm:$0xff]
    %v1164 = vld [vmem:[%s13 + $0x40] sm:$0xff]
    %v1165 = vld [vmem:[%s13 + $0x48] sm:$0xff]
    %v1166 = vld [vmem:[%s13 + $0x50] sm:$0xff]
    %v1167 = vld [vmem:[%s13 + $0x58] sm:$0xff]
    %v1168 = vld [vmem:[%s13 + $0x60] sm:$0xff]
    %v1169 = vld [vmem:[%s13 + $0x68] sm:$0xff]
    %v1170 = vld [vmem:[%s13 + $0x70] sm:$0xff]
    %v1171 = vld [vmem:[%s13 + $0x78] sm:$0xff]
    %1172 = vmatprep.subr.mxu0 0.0
    %1173 = vmatpush1.msra.mxu0 %v1156
    %1174 = vmatprep.subr.mxu0 0.0
    %1175 = vmatpush1.msra.mxu0 %v1157
    %1176 = vmatprep.subr.mxu0 0.0
    %1177 = vmatpush1.msra.mxu0 %v1158
    %1178 = vmatprep.subr.mxu0 0.0
    %1179 = vmatpush1.msra.mxu0 %v1159
    %1180 = vmatprep.subr.mxu0 0.0
    %1181 = vmatpush1.msra.mxu0 %v1160
    %1182 = vmatprep.subr.mxu0 0.0
    %1183 = vmatpush1.msra.mxu0 %v1161
    %1184 = vmatprep.subr.mxu0 0.0
    %1185 = vmatpush1.msra.mxu0 %v1162
    %1186 = vmatprep.subr.mxu0 0.0
    %1187 = vmatpush1.msra.mxu0 %v1163
    %1188 = vmatprep.subr.mxu0 0.0
    %1189 = vmatpush1.msra.mxu0 %v1164
    %1190 = vmatprep.subr.mxu0 0.0
    %1191 = vmatpush1.msra.mxu0 %v1165
    %1192 = vmatprep.subr.mxu0 0.0
    %1193 = vmatpush1.msra.mxu0 %v1166
    %1194 = vmatprep.subr.mxu0 0.0
    %1195 = vmatpush1.msra.mxu0 %v1167
    %1196 = vmatprep.subr.mxu0 0.0
    %1197 = vmatpush1.msra.mxu0 %v1168
    %1198 = vmatprep.subr.mxu0 0.0
    %1199 = vmatpush1.msra.mxu0 %v1169
    %1200 = vmatprep.subr.mxu0 0.0
    %1201 = vmatpush1.msra.mxu0 %v1170
    %1202 = vmatprep.subr.mxu0 0.0
    %1203 = vmatpush1.msra.mxu0 %v1171
    %1204 = vmatprep.subr.mxu0 0.0
    %1205 = vmatpush1.msra.mxu0 0.0
    %1206 = vmatprep.subr.mxu0 0.0
    %1207 = vmatpush1.msra.mxu0 0.0
    %1208 = vmatprep.subr.mxu0 0.0
    %1209 = vmatpush1.msra.mxu0 0.0
    %1210 = vmatprep.subr.mxu0 0.0
    %1211 = vmatpush1.msra.mxu0 0.0
    %1212 = vmatprep.subr.mxu0 0.0
    %1213 = vmatpush1.msra.mxu0 0.0
    %1214 = vmatprep.subr.mxu0 0.0
    %1215 = vmatpush1.msra.mxu0 0.0
    %1216 = vmatprep.subr.mxu0 0.0
    %1217 = vmatpush1.msra.mxu0 0.0
    %1218 = vmatprep.subr.mxu0 0.0
    %1219 = vmatpush1.msra.mxu0 0.0
    %1220 = vmatprep.subr.mxu0 0.0
    %1221 = vmatpush1.msra.mxu0 0.0
    %1222 = vmatprep.subr.mxu0 0.0
    %1223 = vmatpush1.msra.mxu0 0.0
    %1224 = vmatprep.subr.mxu0 0.0
    %1225 = vmatpush1.msra.mxu0 0.0
    %1226 = vmatprep.subr.mxu0 0.0
    %1227 = vmatpush1.msra.mxu0 0.0
    %1228 = vmatprep.subr.mxu0 0.0
    %1229 = vmatpush1.msra.mxu0 0.0
    %1230 = vmatprep.subr.mxu0 0.0
    %1231 = vmatpush1.msra.mxu0 0.0
    %1232 = vmatprep.subr.mxu0 0.0
    %1233 = vmatpush1.msra.mxu0 0.0
    %1234 = vmatprep.subr.mxu0 0.0
    %1235 = vmatpush1.msra.mxu0 0.0
    %1236 = vmatprep.mubr.f32.mxu0 0.0
    %1237 = vmatmul.mubr.f32.gmra.mrb[0].mxu0 %v1155
    %v1238 = vpop.f32.mrb[0].mxu0
    %v1239 = vadd.f32 0.0, %v1238
    %v1240 = vpop.f32.mrb[0].mxu0
    %1241 = vdwg.mxu0
    %v1242 = vmul.f32 %v1239, 0.03125
    %v1243 = vmul.f32 %v1242, %v1242
    %v1245 = vrot.slane %v1243, 6
    %v1247 = vsub.f32 %v1242, %v1245
    %v1248 = vmax.f32 %v1247, 0.0
    %v1249 = vadd.f32 %v1248, 1e-05
    %v1250 = vrsqrt.pop %v1249
    %v1251 = vsel %vm453, %v1242, %v1250
    %v1252 = vld [vmem:[%s14] sm:$0xff]
    %v1254 = vsel %vm552, %v1251, 0
    %1256 = vmatprep.subr.mxu0 0.0
    %1257 = vmatpush1.msra.mxu0 %v1252
    %1258 = vmatprep.subr.mxu0 0.0
    %1259 = vmatpush1.msra.mxu0 0.0
    %1260 = vmatprep.subr.mxu0 0.0
    %1261 = vmatpush1.msra.mxu0 0.0
    %1262 = vmatprep.subr.mxu0 0.0
    %1263 = vmatpush1.msra.mxu0 0.0
    %1264 = vmatprep.subr.mxu0 0.0
    %1265 = vmatpush1.msra.mxu0 0.0
    %1266 = vmatprep.subr.mxu0 0.0
    %1267 = vmatpush1.msra.mxu0 0.0
    %1268 = vmatprep.subr.mxu0 0.0
    %1269 = vmatpush1.msra.mxu0 0.0
    %1270 = vmatprep.subr.mxu0 0.0
    %1271 = vmatpush1.msra.mxu0 0.0
    %1272 = vmatprep.subr.mxu0 0.0
    %1273 = vmatpush1.msra.mxu0 0.0
    %1274 = vmatprep.subr.mxu0 0.0
    %1275 = vmatpush1.msra.mxu0 0.0
    %1276 = vmatprep.subr.mxu0 0.0
    %1277 = vmatpush1.msra.mxu0 0.0
    %1278 = vmatprep.subr.mxu0 0.0
    %1279 = vmatpush1.msra.mxu0 0.0
    %1280 = vmatprep.subr.mxu0 0.0
    %1281 = vmatpush1.msra.mxu0 0.0
    %1282 = vmatprep.subr.mxu0 0.0
    %1283 = vmatpush1.msra.mxu0 0.0
    %1284 = vmatprep.subr.mxu0 0.0
    %1285 = vmatpush1.msra.mxu0 0.0
    %1286 = vmatprep.subr.mxu0 0.0
    %1287 = vmatpush1.msra.mxu0 0.0
    %1288 = vmatprep.subr.mxu0 0.0
    %1289 = vmatpush1.msra.mxu0 0.0
    %1290 = vmatprep.subr.mxu0 0.0
    %1291 = vmatpush1.msra.mxu0 0.0
    %1292 = vmatprep.subr.mxu0 0.0
    %1293 = vmatpush1.msra.mxu0 0.0
    %1294 = vmatprep.subr.mxu0 0.0
    %1295 = vmatpush1.msra.mxu0 0.0
    %1296 = vmatprep.subr.mxu0 0.0
    %1297 = vmatpush1.msra.mxu0 0.0
    %1298 = vmatprep.subr.mxu0 0.0
    %1299 = vmatpush1.msra.mxu0 0.0
    %1300 = vmatprep.subr.mxu0 0.0
    %1301 = vmatpush1.msra.mxu0 0.0
    %1302 = vmatprep.subr.mxu0 0.0
    %1303 = vmatpush1.msra.mxu0 0.0
    %1304 = vmatprep.subr.mxu0 0.0
    %1305 = vmatpush1.msra.mxu0 0.0
    %1306 = vmatprep.subr.mxu0 0.0
    %1307 = vmatpush1.msra.mxu0 0.0
    %1308 = vmatprep.subr.mxu0 0.0
    %1309 = vmatpush1.msra.mxu0 0.0
    %1310 = vmatprep.subr.mxu0 0.0
    %1311 = vmatpush1.msra.mxu0 0.0
    %1312 = vmatprep.subr.mxu0 0.0
    %1313 = vmatpush1.msra.mxu0 0.0
    %1314 = vmatprep.subr.mxu0 0.0
    %1315 = vmatpush1.msra.mxu0 0.0
    %1316 = vmatprep.subr.mxu0 0.0
    %1317 = vmatpush1.msra.mxu0 0.0
    %1318 = vmatprep.subr.mxu0 0.0
    %1319 = vmatpush1.msra.mxu0 0.0
    %1320 = vmatprep.mubr.f32.mxu0 0.0
    %1321 = vmatmul.mubr.f32.gmra.mrb[0].mxu0 %v1254
    %v1322 = vpop.f32.mrb[0].mxu0
    %v1323 = vadd.f32 0.0, %v1322
    %v1324 = vpop.f32.mrb[0].mxu0
    %1325 = vdwg.mxu0
    %v1328 = vunpack.c.l.s4 1966171168
    %v1329 = vunpack.c.0.s8 %v1328
    %v1330 = vlaneseq
    %v1331 = vshrl.u32 %v1330, 7
    %v1332 = vsub.s32 %v1329, %v1331
    %v1333 = vrot.slane %v1323, %v1332
    %v1334 = vcombine.high %v1333, %v1333
    %v1336 = vunpack.c.l.s4 1966171168
    %v1337 = vunpack.c.0.s8 %v1336
    %v1338 = vlaneseq
    %v1339 = vshrl.u32 %v1338, 7
    %v1340 = vsub.s32 %v1337, %v1339
    %v1341 = vrot.slane %v1333, %v1340
    %v1343 = vunpack.c.l.s4 1966171168
    %v1344 = vunpack.c.0.s8 %v1343
    %v1345 = vlaneseq
    %v1346 = vshrl.u32 %v1345, 7
    %v1347 = vsub.s32 %v1344, %v1346
    %v1348 = vrot.slane %v1334, %v1347
    %v1351 = vcombine.high %v1341, %v1341
    %v1352 = vcombine.high %v1348, %v1348
    %v1355 = vld [vmem:[%s9] sm:$0x1]
    %v1356 = vmul.f32 %v1351, %v1355
    %v1357 = vmul.f32 %v1352, %v1355
    %v1358 = vld [vmem:[%s10] sm:$0x1]
    %v1359 = vmul.f32 %v1341, %v1356
    %v1360 = vmul.f32 %v1348, %v1357
    %v1361 = vsub.f32 %v1358, %v1359
    %v1362 = vsub.f32 %v1358, %v1360
    %v1365 = vlaneseq
    %v1366 = vshrl.u32 %v1365, 7
    %v1367 = vsub.s32 0, %v1366
    %v1368 = vrot.slane %v1356, %v1367
    %v1369 = vlaneseq
    %v1370 = vshrl.u32 %v1369, 7
    %v1371 = vsub.s32 0, %v1370
    %v1372 = vrot.slane %v1357, %v1371
    %v1375 = vmul.f32 %v1111, %v1368
    %v1376 = vmul.f32 %v1112, %v1368
    %v1377 = vmul.f32 %v1113, %v1372
    %v1378 = vmul.f32 %v1114, %v1372
    %v1381 = vlaneseq
    %v1382 = vshrl.u32 %v1381, 7
    %v1383 = vsub.s32 0, %v1382
    %v1384 = vrot.slane %v1361, %v1383
    %v1385 = vlaneseq
    %v1386 = vshrl.u32 %v1385, 7
    %v1387 = vsub.s32 0, %v1386
    %v1388 = vrot.slane %v1362, %v1387
    %v1391 = vadd.f32 %v1375, %v1384
    %v1392 = vadd.f32 %v1376, %v1384
    %v1393 = vadd.f32 %v1377, %v1388
    %v1394 = vadd.f32 %v1378, %v1388
    %v1395 = vmin.f32 %v1391, 20.0
    %v1396 = vmin.f32 %v1392, 20.0
    %v1397 = vmin.f32 %v1393, 20.0
    %v1398 = vmin.f32 %v1394, 20.0
    %v1399 = vmul.f32 %v1395, 1.442695
    %v1400 = vpow.pop %v1399
    %v1401 = vmul.f32 %v1396, 1.442695
    %v1402 = vpow.pop %v1401
    %v1403 = vmul.f32 %v1397, 1.442695
    %v1404 = vpow.pop %v1403
    %v1405 = vmul.f32 %v1398, 1.442695
    %v1406 = vpow.pop %v1405
    %v1407 = vadd.f32 %v1400, 2.0
    %v1408 = vadd.f32 %v1402, 2.0
    %v1409 = vadd.f32 %v1404, 2.0
    %v1410 = vadd.f32 %v1406, 2.0
    %v1411 = vmul.f32 %v1400, %v1407
    %v1412 = vmul.f32 %v1402, %v1408
    %v1413 = vmul.f32 %v1404, %v1409
    %v1414 = vmul.f32 %v1406, %v1410
    %v1415 = vmul.f32 %v1391, %v1411
    %v1416 = vmul.f32 %v1392, %v1412
    %v1417 = vmul.f32 %v1393, %v1413
    %v1418 = vmul.f32 %v1394, %v1414
    %v1419 = vadd.f32 %v1411, 2.0
    %v1420 = vadd.f32 %v1412, 2.0
    %v1421 = vadd.f32 %v1413, 2.0
    %v1422 = vadd.f32 %v1414, 2.0
    %v1423 = vrcp.pop %v1419
    %v1424 = vrcp.pop %v1420
    %v1425 = vrcp.pop %v1421
    %v1426 = vrcp.pop %v1422
    %v1427 = vmul.f32 %v1415, %v1423
    %v1428 = vmul.f32 %v1416, %v1424
    %v1429 = vmul.f32 %v1417, %v1425
    %v1430 = vmul.f32 %v1418, %v1426
    %vm1431 = vcmp.gt.f32.partialorder %v1391, 20.0
    %vm1432 = vcmp.gt.f32.partialorder %v1392, 20.0
    %vm1433 = vcmp.gt.f32.partialorder %v1393, 20.0
    %vm1434 = vcmp.gt.f32.partialorder %v1394, 20.0
    %v1435 = vsel %vm1431, %v1391, %v1427
    %v1436 = vsel %vm1432, %v1392, %v1428
    %v1437 = vsel %vm1433, %v1393, %v1429
    %v1438 = vsel %vm1434, %v1394, %v1430
    %v1439 = vld [vmem:[%s0 + $0x1] sm:$0xff]
    %v1440 = vld [vmem:[%s0 + $0x9] sm:$0xff]
    %v1441 = vld [vmem:[%s0 + $0x19] sm:$0xff]
    %v1442 = vld [vmem:[%s0 + $0x21] sm:$0xff]
    %v1443 = vld [vmem:[%s11] sm:$0xff]
    %v1444 = vld [vmem:[%s11 + $0x8] sm:$0xff]
    %v1445 = vld [vmem:[%s11 + $0x10] sm:$0xff]
    %v1446 = vld [vmem:[%s11 + $0x18] sm:$0xff]
    %v1447 = vld [vmem:[%s11 + $0x20] sm:$0xff]
    %v1448 = vld [vmem:[%s11 + $0x28] sm:$0xff]
    %v1449 = vld [vmem:[%s11 + $0x30] sm:$0xff]
    %v1450 = vld [vmem:[%s11 + $0x38] sm:$0xff]
    %v1451 = vld [vmem:[%s11 + $0x40] sm:$0xff]
    %v1452 = vld [vmem:[%s11 + $0x48] sm:$0xff]
    %v1453 = vld [vmem:[%s11 + $0x50] sm:$0xff]
    %v1454 = vld [vmem:[%s11 + $0x58] sm:$0xff]
    %v1455 = vld [vmem:[%s11 + $0x60] sm:$0xff]
    %v1456 = vld [vmem:[%s11 + $0x68] sm:$0xff]
    %v1457 = vld [vmem:[%s11 + $0x70] sm:$0xff]
    %v1458 = vld [vmem:[%s11 + $0x78] sm:$0xff]
    %v1459 = vld [vmem:[%s12] sm:$0x1]
    %v1461 = vlaneseq
    %v1462 = vshrl.u32 %v1461, 7
    %v1463 = vsub.s32 0, %v1462
    %v1464 = vrot.slane %v1459, %v1463
    %1466 = vmatprep.subr.mxu0 0.0
    %1467 = vmatpush1.msra.mxu0 %v1443
    %1468 = vmatprep.subr.mxu0 0.0
    %1469 = vmatpush1.msra.mxu0 %v1444
    %1470 = vmatprep.subr.mxu0 0.0
    %1471 = vmatpush1.msra.mxu0 %v1445
    %1472 = vmatprep.subr.mxu0 0.0
    %1473 = vmatpush1.msra.mxu0 %v1446
    %1474 = vmatprep.subr.mxu0 0.0
    %1475 = vmatpush1.msra.mxu0 %v1447
    %1476 = vmatprep.subr.mxu0 0.0
    %1477 = vmatpush1.msra.mxu0 %v1448
    %1478 = vmatprep.subr.mxu0 0.0
    %1479 = vmatpush1.msra.mxu0 %v1449
    %1480 = vmatprep.subr.mxu0 0.0
    %1481 = vmatpush1.msra.mxu0 %v1450
    %1482 = vmatprep.subr.mxu0 0.0
    %1483 = vmatpush1.msra.mxu0 %v1451
    %1484 = vmatprep.subr.mxu0 0.0
    %1485 = vmatpush1.msra.mxu0 %v1452
    %1486 = vmatprep.subr.mxu0 0.0
    %1487 = vmatpush1.msra.mxu0 %v1453
    %1488 = vmatprep.subr.mxu0 0.0
    %1489 = vmatpush1.msra.mxu0 %v1454
    %1490 = vmatprep.subr.mxu0 0.0
    %1491 = vmatpush1.msra.mxu0 %v1455
    %1492 = vmatprep.subr.mxu0 0.0
    %1493 = vmatpush1.msra.mxu0 %v1456
    %1494 = vmatprep.subr.mxu0 0.0
    %1495 = vmatpush1.msra.mxu0 %v1457
    %1496 = vmatprep.subr.mxu0 0.0
    %1497 = vmatpush1.msra.mxu0 %v1458
    %1498 = vmatprep.subr.mxu0 0.0
    %1499 = vmatpush1.msra.mxu0 0.0
    %1500 = vmatprep.subr.mxu0 0.0
    %1501 = vmatpush1.msra.mxu0 0.0
    %1502 = vmatprep.subr.mxu0 0.0
    %1503 = vmatpush1.msra.mxu0 0.0
    %1504 = vmatprep.subr.mxu0 0.0
    %1505 = vmatpush1.msra.mxu0 0.0
    %1506 = vmatprep.subr.mxu0 0.0
    %1507 = vmatpush1.msra.mxu0 0.0
    %1508 = vmatprep.subr.mxu0 0.0
    %1509 = vmatpush1.msra.mxu0 0.0
    %1510 = vmatprep.subr.mxu0 0.0
    %1511 = vmatpush1.msra.mxu0 0.0
    %1512 = vmatprep.subr.mxu0 0.0
    %1513 = vmatpush1.msra.mxu0 0.0
    %1514 = vmatprep.subr.mxu0 0.0
    %1515 = vmatpush1.msra.mxu0 0.0
    %1516 = vmatprep.subr.mxu0 0.0
    %1517 = vmatpush1.msra.mxu0 0.0
    %1518 = vmatprep.subr.mxu0 0.0
    %1519 = vmatpush1.msra.mxu0 0.0
    %1520 = vmatprep.subr.mxu0 0.0
    %1521 = vmatpush1.msra.mxu0 0.0
    %1522 = vmatprep.subr.mxu0 0.0
    %1523 = vmatpush1.msra.mxu0 0.0
    %1524 = vmatprep.subr.mxu0 0.0
    %1525 = vmatpush1.msra.mxu0 0.0
    %1526 = vmatprep.subr.mxu0 0.0
    %1527 = vmatpush1.msra.mxu0 0.0
    %1528 = vmatprep.subr.mxu0 0.0
    %1529 = vmatpush1.msra.mxu0 0.0
    %1530 = vmatprep.mubr.f32.mxu0 0.0
    %1531 = vmatmul.mubr.f32.gmra.mrb[0].mxu0 %v1439
    %v1532 = vpop.f32.mrb[0].mxu0
    %v1533 = vadd.f32 %v1464, %v1532
    %v1534 = vpop.f32.mrb[0].mxu0
    %1535 = vmatprep.mubr.f32.mxu0 0.0
    %1536 = vmatmul.mubr.f32.gmra.mrb[0].mxu0 %v1440
    %v1537 = vpop.f32.mrb[0].mxu0
    %v1538 = vadd.f32 %v1464, %v1537
    %v1539 = vpop.f32.mrb[0].mxu0
    %1540 = vmatprep.mubr.f32.mxu0 0.0
    %1541 = vmatmul.mubr.f32.gmra.mrb[0].mxu0 %v1441
    %v1542 = vpop.f32.mrb[0].mxu0
    %v1543 = vadd.f32 %v1464, %v1542
    %v1544 = vpop.f32.mrb[0].mxu0
    %1545 = vmatprep.mubr.f32.mxu0 0.0
    %1546 = vmatmul.mubr.f32.gmra.mrb[0].mxu0 %v1442
    %v1547 = vpop.f32.mrb[0].mxu0
    %v1548 = vadd.f32 %v1464, %v1547
    %v1549 = vpop.f32.mrb[0].mxu0
    %1550 = vdwg.mxu0
    %v1551 = vadd.f32 %v1435, %v1533
    %v1552 = vadd.f32 %v1436, %v1538
    %v1553 = vadd.f32 %v1437, %v1543
    %v1554 = vadd.f32 %v1438, %v1548
    %1555 = vst [vmem:[#allocation8] sm:$0xff] %v1551
    %1556 = vst [vmem:[#allocation8 + $0x8] sm:$0xff] %v1552
    %1557 = vst [vmem:[#allocation8 + $0x10] sm:$0xff] %v1553
    %1558 = vst [vmem:[#allocation8 + $0x18] sm:$0xff] %v1554
    // Predicated region
    $region70: #{tpu_custom_call.1} parent=1 // pred_check
      _
    $region71: #{tpu_custom_call.1} parent=1 // pred_check_branch
      %1560 = sbr.rel (0) target = $region73
    $region72: #{tpu_custom_call.1} parent=1 // pred_region
      %s1562 = ssub.s32 512, 512
      %1563 = vsyncadd [#allocation5], %s1562
      %s1564 = sshll.u32 [#allocation8], 4
      %s1565 = int_to_ptr.vmem [resolvable:$true] %s1564
      %1570 = dma.vmem_to_hbm [thread:$0]  %s1565, 512, %s15, [#allocation5], 128, 128, 8
    $region73: #{tpu_custom_call.1} parent=1 // pred_fallthru
      _
    // Predicated region
    $region74: #{tpu_custom_call.1} parent=1 // pred_check
      _
    $region75: #{tpu_custom_call.1} parent=1 // pred_check_branch
      %1572 = sbr.rel (0) target = $region77
    $region76: #{tpu_custom_call.1} parent=1 // pred_region
      %1573 = dma.done [#allocation5], 512
    $region77: #{tpu_custom_call.1} parent=1 // pred_fallthru
      _
    %1574 = vsyncpa [#allocation4], 1
    %1575 = vsyncpa [#allocation7], 1
    %1576 = vsyncpa [#allocation5], 1

// kernel: tpu_custom_call.1
$region0: #{tpu_custom_call.1}
  #allocation0 [shape = 'u32[]', space=smem, size = 0x4, offset = 0x4, fixed_abs, tag = 'smem constant byte address 0x4 - core index']
  #allocation1 [shape = 'u32[144,128]{1,0:T(1,128)}', space=vmem, size = 0x12000, scoped, tag = 'internal scratch']
  #allocation2 [shape = 'f32[2,18,128]{2,1,0:T(8,128)}', space=vmem, size = 0x6000, scoped, tag = 'scratch operand']
  %s0 = inlined_call_operand.vmem [shape: f32[2,18,128], index: 0, kind: input, shape index: {}]
  %s1 = inlined_call_operand.vmem [shape: f32[2,1,128], index: 1, kind: input, shape index: {}]
  %s2 = inlined_call_operand.vmem [shape: f32[2,1,128], index: 2, kind: input, shape index: {}]
  %s3 = inlined_call_operand.hbm [shape: f32[3,128,128], index: 3, kind: input, shape index: {}]
  %s4 = inlined_call_operand.vmem [shape: f32[1,128], index: 4, kind: input, shape index: {}]
  %s5 = inlined_call_operand.vmem [shape: f32[1,128], index: 5, kind: input, shape index: {}]
  %s6 = inlined_call_operand.vmem [shape: f32[1,128], index: 6, kind: input, shape index: {}]
  %s7 = inlined_call_operand.hbm [shape: f32[3,128,128], index: 7, kind: input, shape index: {}]
  %s8 = inlined_call_operand.vmem [shape: f32[1,128], index: 8, kind: input, shape index: {}]
  %s9 = inlined_call_operand.vmem [shape: f32[1,128], index: 9, kind: input, shape index: {}]
  %s10 = inlined_call_operand.vmem [shape: f32[1,128], index: 10, kind: input, shape index: {}]
  %s11 = inlined_call_operand.vmem [shape: f32[128,128], index: 11, kind: input, shape index: {}]
  %s12 = inlined_call_operand.vmem [shape: f32[1,128], index: 12, kind: input, shape index: {}]
  %s13 = inlined_call_operand.vmem [shape: f32[128,8], index: 13, kind: input, shape index: {}]
  %s14 = inlined_call_operand.vmem [shape: f32[8,128], index: 14, kind: input, shape index: {}]
  %s15 = inlined_call_operand.hbm [shape: f32[2,16,128], index: 15, kind: output, shape index: {}]
  %s16 = sld [smem:[#allocation0]]
  $region78: #{tpu_custom_call.1} parent=0
    _
  %s18 = ssub.s32 1, %s16
  %s19 = scalar_select 0, %s18, %s16
  $region1: #{tpu_custom_call.1} parent=0
    #allocation3 [shape = 'u8[196608]{0}', space=vmem, size = 0x30000, scoped, tag = 'input window, operand 3, single buffered']
    #allocation4 [shape = 's32[1]{0}', space=sflag, size = 0x4, scoped, tag = 'scoped memory for tpu_custom_call.1']
    #allocation5 [shape = 's32[1]{0}', space=sflag, size = 0x4, scoped, tag = 'scoped memory for tpu_custom_call.1']
    #allocation6 [shape = 'u8[196608]{0}', space=vmem, size = 0x30000, scoped, tag = 'input window, operand 7, single buffered']
    #allocation7 [shape = 's32[1]{0}', space=sflag, size = 0x4, scoped, tag = 'scoped memory for tpu_custom_call.1']
    #allocation8 [shape = 'u8[16384]{0}', space=vmem, size = 0x4000, scoped, tag = 'output window, operand 0, single buffered']
    %20 = vsyncpa [#allocation4], 0
    %21 = vsyncpa [#allocation7], 0
    %22 = vsyncpa [#allocation5], 0
    // Predicated region
    $region2: #{tpu_custom_call.1} parent=1 // pred_check
      _
    $region3: #{tpu_custom_call.1} parent=1 // pred_check_branch
      %24 = sbr.rel (0) target = $region5
    $region4: #{tpu_custom_call.1} parent=1 // pred_region
      _
    $region5: #{tpu_custom_call.1} parent=1 // pred_fallthru
      _
    // Predicated region
    $region6: #{tpu_custom_call.1} parent=1 // pred_check
      _
    $region7: #{tpu_custom_call.1} parent=1 // pred_check_branch
      %26 = sbr.rel (0) target = $region9
    $region8: #{tpu_custom_call.1} parent=1 // pred_region
      _
    $region9: #{tpu_custom_call.1} parent=1 // pred_fallthru
      _
    // Predicated region
    $region10: #{tpu_custom_call.1} parent=1 // pred_check
      _
    $region11: #{tpu_custom_call.1} parent=1 // pred_check_branch
      %28 = sbr.rel (0) target = $region13
    $region12: #{tpu_custom_call.1} parent=1 // pred_region
      _
    $region13: #{tpu_custom_call.1} parent=1 // pred_fallthru
      _
    // Predicated region
    $region14: #{tpu_custom_call.1} parent=1 // pred_check
      _
    $region15: #{tpu_custom_call.1} parent=1 // pred_check_branch
      %30 = sbr.rel (0) target = $region17
    $region16: #{tpu_custom_call.1} parent=1 // pred_region
      %s32 = ssub.s32 6144, 6144
      %33 = vsyncadd [#allocation4], %s32
      %s34 = sshll.u32 [#allocation3], 4
      %s35 = int_to_ptr.vmem [resolvable:$true] %s34
      %40 = dma.hbm_to_vmem [thread:$0]  %s3, 6144, %s35, [#allocation4], 128, 128, 8
    $region17: #{tpu_custom_call.1} parent=1 // pred_fallthru
      _
    // Predicated region
    $region18: #{tpu_custom_call.1} parent=1 // pred_check
      _
    $region19: #{tpu_custom_call.1} parent=1 // pred_check_branch
      %42 = sbr.rel (0) target = $region21
    $region20: #{tpu_custom_call.1} parent=1 // pred_region
      _
    $region21: #{tpu_custom_call.1} parent=1 // pred_fallthru
      _
    // Predicated region
    $region22: #{tpu_custom_call.1} parent=1 // pred_check
      _
    $region23: #{tpu_custom_call.1} parent=1 // pred_check_branch
      %44 = sbr.rel (0) target = $region25
    $region24: #{tpu_custom_call.1} parent=1 // pred_region
      _
    $region25: #{tpu_custom_call.1} parent=1 // pred_fallthru
      _
    // Predicated region
    $region26: #{tpu_custom_call.1} parent=1 // pred_check
      _
    $region27: #{tpu_custom_call.1} parent=1 // pred_check_branch
      %46 = sbr.rel (0) target = $region29
    $region28: #{tpu_custom_call.1} parent=1 // pred_region
      _
    $region29: #{tpu_custom_call.1} parent=1 // pred_fallthru
      _
    // Predicated region
    $region30: #{tpu_custom_call.1} parent=1 // pred_check
      _
    $region31: #{tpu_custom_call.1} parent=1 // pred_check_branch
      %48 = sbr.rel (0) target = $region33
    $region32: #{tpu_custom_call.1} parent=1 // pred_region
      %s50 = ssub.s32 6144, 6144
      %51 = vsyncadd [#allocation7], %s50
      %s52 = sshll.u32 [#allocation6], 4
      %s53 = int_to_ptr.vmem [resolvable:$true] %s52
      %58 = dma.hbm_to_vmem [thread:$0]  %s7, 6144, %s53, [#allocation7], 128, 128, 8
    $region33: #{tpu_custom_call.1} parent=1 // pred_fallthru
      _
    // Predicated region
    $region34: #{tpu_custom_call.1} parent=1 // pred_check
      _
    $region35: #{tpu_custom_call.1} parent=1 // pred_check_branch
      %60 = sbr.rel (0) target = $region37
    $region36: #{tpu_custom_call.1} parent=1 // pred_region
      _
    $region37: #{tpu_custom_call.1} parent=1 // pred_fallthru
      _
    // Predicated region
    $region38: #{tpu_custom_call.1} parent=1 // pred_check
      _
    $region39: #{tpu_custom_call.1} parent=1 // pred_check_branch
      %62 = sbr.rel (0) target = $region41
    $region40: #{tpu_custom_call.1} parent=1 // pred_region
      _
    $region41: #{tpu_custom_call.1} parent=1 // pred_fallthru
      _
    // Predicated region
    $region42: #{tpu_custom_call.1} parent=1 // pred_check
      _
    $region43: #{tpu_custom_call.1} parent=1 // pred_check_branch
      %64 = sbr.rel (0) target = $region45
    $region44: #{tpu_custom_call.1} parent=1 // pred_region
      _
    $region45: #{tpu_custom_call.1} parent=1 // pred_fallthru
      _
    // Predicated region
    $region46: #{tpu_custom_call.1} parent=1 // pred_check
      _
    $region47: #{tpu_custom_call.1} parent=1 // pred_check_branch
      %66 = sbr.rel (0) target = $region49
    $region48: #{tpu_custom_call.1} parent=1 // pred_region
      _
    $region49: #{tpu_custom_call.1} parent=1 // pred_fallthru
      _
    // Predicated region
    $region50: #{tpu_custom_call.1} parent=1 // pred_check
      _
    $region51: #{tpu_custom_call.1} parent=1 // pred_check_branch
      %68 = sbr.rel (0) target = $region53
    $region52: #{tpu_custom_call.1} parent=1 // pred_region
      _
    $region53: #{tpu_custom_call.1} parent=1 // pred_fallthru
      _
    // Predicated region
    $region54: #{tpu_custom_call.1} parent=1 // pred_check
      _
    $region55: #{tpu_custom_call.1} parent=1 // pred_check_branch
      %70 = sbr.rel (0) target = $region57
    $region56: #{tpu_custom_call.1} parent=1 // pred_region
      _
    $region57: #{tpu_custom_call.1} parent=1 // pred_fallthru
      _
    // Predicated region
    $region58: #{tpu_custom_call.1} parent=1 // pred_check
      _
    $region59: #{tpu_custom_call.1} parent=1 // pred_check_branch
      %72 = sbr.rel (0) target = $region61
    $region60: #{tpu_custom_call.1} parent=1 // pred_region
      _
    $region61: #{tpu_custom_call.1} parent=1 // pred_fallthru
      _
    // Predicated region
    $region62: #{tpu_custom_call.1} parent=1 // pred_check
      _
    $region63: #{tpu_custom_call.1} parent=1 // pred_check_branch
      %74 = sbr.rel (0) target = $region65
    $region64: #{tpu_custom_call.1} parent=1 // pred_region
      %75 = dma.done [#allocation4], 6144
    $region65: #{tpu_custom_call.1} parent=1 // pred_fallthru
      _
    // Predicated region
    $region66: #{tpu_custom_call.1} parent=1 // pred_check
      _
    $region67: #{tpu_custom_call.1} parent=1 // pred_check_branch
      %77 = sbr.rel (0) target = $region69
    $region68: #{tpu_custom_call.1} parent=1 // pred_region
      %78 = dma.done [#allocation7], 6144
    $region69: #{tpu_custom_call.1} parent=1 // pred_fallthru
      _
    %v79 = vld [vmem:[%s0] sm:$0xff]
    %v80 = vld [vmem:[%s0 + $0x8] sm:$0xff]
    %v81 = vld [vmem:[%s0 + $0x18] sm:$0xff]
    %v82 = vld [vmem:[%s0 + $0x20] sm:$0xff]
    %v83 = vld [vmem:[#allocation3] sm:$0xff]
    %v84 = vld [vmem:[#allocation3 + $0x8] sm:$0xff]
    %v85 = vld [vmem:[#allocation3 + $0x10] sm:$0xff]
    %v86 = vld [vmem:[#allocation3 + $0x18] sm:$0xff]
    %v87 = vld [vmem:[#allocation3 + $0x20] sm:$0xff]
    %v88 = vld [vmem:[#allocation3 + $0x28] sm:$0xff]
    %v89 = vld [vmem:[#allocation3 + $0x30] sm:$0xff]
    %v90 = vld [vmem:[#allocation3 + $0x38] sm:$0xff]
    %v91 = vld [vmem:[#allocation3 + $0x40] sm:$0xff]
    %v92 = vld [vmem:[#allocation3 + $0x48] sm:$0xff]
    %v93 = vld [vmem:[#allocation3 + $0x50] sm:$0xff]
    %v94 = vld [vmem:[#allocation3 + $0x58] sm:$0xff]
    %v95 = vld [vmem:[#allocation3 + $0x60] sm:$0xff]
    %v96 = vld [vmem:[#allocation3 + $0x68] sm:$0xff]
    %v97 = vld [vmem:[#allocation3 + $0x70] sm:$0xff]
    %v98 = vld [vmem:[#allocation3 + $0x78] sm:$0xff]
    %v99 = vld [vmem:[%s0 + $0x1] sm:$0xff]
    %v100 = vld [vmem:[%s0 + $0x9] sm:$0xff]
    %v101 = vld [vmem:[%s0 + $0x19] sm:$0xff]
    %v102 = vld [vmem:[%s0 + $0x21] sm:$0xff]
    %s103 = scalar_lea.vmem [#allocation3], 128
    %v104 = vld [vmem:[%s103] sm:$0xff]
    %v105 = vld [vmem:[%s103 + $0x8] sm:$0xff]
    %v106 = vld [vmem:[%s103 + $0x10] sm:$0xff]
    %v107 = vld [vmem:[%s103 + $0x18] sm:$0xff]
    %v108 = vld [vmem:[%s103 + $0x20] sm:$0xff]
    %v109 = vld [vmem:[%s103 + $0x28] sm:$0xff]
    %v110 = vld [vmem:[%s103 + $0x30] sm:$0xff]
    %v111 = vld [vmem:[%s103 + $0x38] sm:$0xff]
    %v112 = vld [vmem:[%s103 + $0x40] sm:$0xff]
    %v113 = vld [vmem:[%s103 + $0x48] sm:$0xff]
    %v114 = vld [vmem:[%s103 + $0x50] sm:$0xff]
    %v115 = vld [vmem:[%s103 + $0x58] sm:$0xff]
    %v116 = vld [vmem:[%s103 + $0x60] sm:$0xff]
    %v117 = vld [vmem:[%s103 + $0x68] sm:$0xff]
    %v118 = vld [vmem:[%s103 + $0x70] sm:$0xff]
    %v119 = vld [vmem:[%s103 + $0x78] sm:$0xff]
    %120 = vmatprep.subr.mxu0 0.0
    %121 = vmatpush1.msra.mxu0 %v104
    %122 = vmatprep.subr.mxu0 0.0
    %123 = vmatpush1.msra.mxu0 %v105
    %124 = vmatprep.subr.mxu0 0.0
    %125 = vmatpush1.msra.mxu0 %v106
    %126 = vmatprep.subr.mxu0 0.0
    %127 = vmatpush1.msra.mxu0 %v107
    %128 = vmatprep.subr.mxu0 0.0
    %129 = vmatpush1.msra.mxu0 %v108
    %130 = vmatprep.subr.mxu0 0.0
    %131 = vmatpush1.msra.mxu0 %v109
    %132 = vmatprep.subr.mxu0 0.0
    %133 = vmatpush1.msra.mxu0 %v110
    %134 = vmatprep.subr.mxu0 0.0
    %135 = vmatpush1.msra.mxu0 %v111
    %136 = vmatprep.subr.mxu0 0.0
    %137 = vmatpush1.msra.mxu0 %v112
    %138 = vmatprep.subr.mxu0 0.0
    %139 = vmatpush1.msra.mxu0 %v113
    %140 = vmatprep.subr.mxu0 0.0
    %141 = vmatpush1.msra.mxu0 %v114
    %142 = vmatprep.subr.mxu0 0.0
    %143 = vmatpush1.msra.mxu0 %v115
    %144 = vmatprep.subr.mxu0 0.0
    %145 = vmatpush1.msra.mxu0 %v116
    %146 = vmatprep.subr.mxu0 0.0
    %147 = vmatpush1.msra.mxu0 %v117
    %148 = vmatprep.subr.mxu0 0.0
    %149 = vmatpush1.msra.mxu0 %v118
    %150 = vmatprep.subr.mxu0 0.0
    %151 = vmatpush1.msra.mxu0 %v119
    %152 = vmatprep.subr.mxu0 0.0
    %153 = vmatpush1.msra.mxu0 0.0
    %154 = vmatprep.subr.mxu0 0.0
    %155 = vmatpush1.msra.mxu0 0.0
    %156 = vmatprep.subr.mxu0 0.0
    %157 = vmatpush1.msra.mxu0 0.0
    %158 = vmatprep.subr.mxu0 0.0
    %159 = vmatpush1.msra.mxu0 0.0
    %160 = vmatprep.subr.mxu0 0.0
    %161 = vmatpush1.msra.mxu0 0.0
    %162 = vmatprep.subr.mxu0 0.0
    %163 = vmatpush1.msra.mxu0 0.0
    %164 = vmatprep.subr.mxu0 0.0
    %165 = vmatpush1.msra.mxu0 0.0
    %166 = vmatprep.subr.mxu0 0.0
    %167 = vmatpush1.msra.mxu0 0.0
    %168 = vmatprep.subr.mxu0 0.0
    %169 = vmatpush1.msra.mxu0 0.0
    %170 = vmatprep.subr.mxu0 0.0
    %171 = vmatpush1.msra.mxu0 0.0
    %172 = vmatprep.subr.mxu0 0.0
    %173 = vmatpush1.msra.mxu0 0.0
    %174 = vmatprep.subr.mxu0 0.0
    %175 = vmatpush1.msra.mxu0 0.0
    %176 = vmatprep.subr.mxu0 0.0
    %177 = vmatpush1.msra.mxu0 0.0
    %178 = vmatprep.subr.mxu0 0.0
    %179 = vmatpush1.msra.mxu0 0.0
    %180 = vmatprep.subr.mxu0 0.0
    %181 = vmatpush1.msra.mxu0 0.0
    %182 = vmatprep.subr.mxu0 0.0
    %183 = vmatpush1.msra.mxu0 0.0
    %184 = vmatprep.mubr.f32.mxu0 0.0
    %185 = vmatmul.mubr.f32.gmra.mrb[0].mxu0 %v99
    %v186 = vpop.f32.mrb[0].mxu0
    %v187 = vadd.f32 0.0, %v186
    %v188 = vpop.f32.mrb[0].mxu0
    %189 = vmatprep.mubr.f32.mxu0 0.0
    %190 = vmatmul.mubr.f32.gmra.mrb[0].mxu0 %v100
    %v191 = vpop.f32.mrb[0].mxu0
    %v192 = vadd.f32 0.0, %v191
    %v193 = vpop.f32.mrb[0].mxu0
    %194 = vmatprep.mubr.f32.mxu0 0.0
    %195 = vmatmul.mubr.f32.gmra.mrb[0].mxu0 %v101
    %v196 = vpop.f32.mrb[0].mxu0
    %v197 = vadd.f32 0.0, %v196
    %v198 = vpop.f32.mrb[0].mxu0
    %199 = vmatprep.mubr.f32.mxu0 0.0
    %200 = vmatmul.mubr.f32.gmra.mrb[0].mxu0 %v102
    %v201 = vpop.f32.mrb[0].mxu0
    %v202 = vadd.f32 0.0, %v201
    %v203 = vpop.f32.mrb[0].mxu0
    %204 = vdwg.mxu0
    %205 = vmatprep.subr.mxu0 0.0
    %206 = vmatpush1.msra.mxu0 %v83
    %207 = vmatprep.subr.mxu0 0.0
    %208 = vmatpush1.msra.mxu0 %v84
    %209 = vmatprep.subr.mxu0 0.0
    %210 = vmatpush1.msra.mxu0 %v85
    %211 = vmatprep.subr.mxu0 0.0
    %212 = vmatpush1.msra.mxu0 %v86
    %213 = vmatprep.subr.mxu0 0.0
    %214 = vmatpush1.msra.mxu0 %v87
    %215 = vmatprep.subr.mxu0 0.0
    %216 = vmatpush1.msra.mxu0 %v88
    %217 = vmatprep.subr.mxu0 0.0
    %218 = vmatpush1.msra.mxu0 %v89
    %219 = vmatprep.subr.mxu0 0.0
    %220 = vmatpush1.msra.mxu0 %v90
    %221 = vmatprep.subr.mxu0 0.0
    %222 = vmatpush1.msra.mxu0 %v91
    %223 = vmatprep.subr.mxu0 0.0
    %224 = vmatpush1.msra.mxu0 %v92
    %225 = vmatprep.subr.mxu0 0.0
    %226 = vmatpush1.msra.mxu0 %v93
    %227 = vmatprep.subr.mxu0 0.0
    %228 = vmatpush1.msra.mxu0 %v94
    %229 = vmatprep.subr.mxu0 0.0
    %230 = vmatpush1.msra.mxu0 %v95
    %231 = vmatprep.subr.mxu0 0.0
    %232 = vmatpush1.msra.mxu0 %v96
    %233 = vmatprep.subr.mxu0 0.0
    %234 = vmatpush1.msra.mxu0 %v97
    %235 = vmatprep.subr.mxu0 0.0
    %236 = vmatpush1.msra.mxu0 %v98
    %237 = vmatprep.subr.mxu0 0.0
    %238 = vmatpush1.msra.mxu0 0.0
    %239 = vmatprep.subr.mxu0 0.0
    %240 = vmatpush1.msra.mxu0 0.0
    %241 = vmatprep.subr.mxu0 0.0
    %242 = vmatpush1.msra.mxu0 0.0
    %243 = vmatprep.subr.mxu0 0.0
    %244 = vmatpush1.msra.mxu0 0.0
    %245 = vmatprep.subr.mxu0 0.0
    %246 = vmatpush1.msra.mxu0 0.0
    %247 = vmatprep.subr.mxu0 0.0
    %248 = vmatpush1.msra.mxu0 0.0
    %249 = vmatprep.subr.mxu0 0.0
    %250 = vmatpush1.msra.mxu0 0.0
    %251 = vmatprep.subr.mxu0 0.0
    %252 = vmatpush1.msra.mxu0 0.0
    %253 = vmatprep.subr.mxu0 0.0
    %254 = vmatpush1.msra.mxu0 0.0
    %255 = vmatprep.subr.mxu0 0.0
    %256 = vmatpush1.msra.mxu0 0.0
    %257 = vmatprep.subr.mxu0 0.0
    %258 = vmatpush1.msra.mxu0 0.0
    %259 = vmatprep.subr.mxu0 0.0
    %260 = vmatpush1.msra.mxu0 0.0
    %261 = vmatprep.subr.mxu0 0.0
    %262 = vmatpush1.msra.mxu0 0.0
    %263 = vmatprep.subr.mxu0 0.0
    %264 = vmatpush1.msra.mxu0 0.0
    %265 = vmatprep.subr.mxu0 0.0
    %266 = vmatpush1.msra.mxu0 0.0
    %267 = vmatprep.subr.mxu0 0.0
    %268 = vmatpush1.msra.mxu0 0.0
    %269 = vmatprep.mubr.f32.mxu0 0.0
    %270 = vmatmul.mubr.f32.gmra.mrb[0].mxu0 %v79
    %v271 = vpop.f32.mrb[0].mxu0
    %v272 = vadd.f32 %v187, %v271
    %v273 = vpop.f32.mrb[0].mxu0
    %274 = vmatprep.mubr.f32.mxu0 0.0
    %275 = vmatmul.mubr.f32.gmra.mrb[0].mxu0 %v80
    %v276 = vpop.f32.mrb[0].mxu0
    %v277 = vadd.f32 %v192, %v276
    %v278 = vpop.f32.mrb[0].mxu0
    %279 = vmatprep.mubr.f32.mxu0 0.0
    %280 = vmatmul.mubr.f32.gmra.mrb[0].mxu0 %v81
    %v281 = vpop.f32.mrb[0].mxu0
    %v282 = vadd.f32 %v197, %v281
    %v283 = vpop.f32.mrb[0].mxu0
    %284 = vmatprep.mubr.f32.mxu0 0.0
    %285 = vmatmul.mubr.f32.gmra.mrb[0].mxu0 %v82
    %v286 = vpop.f32.mrb[0].mxu0
    %v287 = vadd.f32 %v202, %v286
    %v288 = vpop.f32.mrb[0].mxu0
    %289 = vdwg.mxu0
    %v290 = vld [vmem:[%s0 + $0x2] sm:$0xff]
    %v291 = vld [vmem:[%s0 + $0xa] sm:$0xff]
    %v292 = vld [vmem:[%s0 + $0x1a] sm:$0xff]
    %v293 = vld [vmem:[%s0 + $0x22] sm:$0xff]
    %s294 = scalar_lea.vmem [#allocation3], 256
    %v295 = vld [vmem:[%s294] sm:$0xff]
    %v296 = vld [vmem:[%s294 + $0x8] sm:$0xff]
    %v297 = vld [vmem:[%s294 + $0x10] sm:$0xff]
    %v298 = vld [vmem:[%s294 + $0x18] sm:$0xff]
    %v299 = vld [vmem:[%s294 + $0x20] sm:$0xff]
    %v300 = vld [vmem:[%s294 + $0x28] sm:$0xff]
    %v301 = vld [vmem:[%s294 + $0x30] sm:$0xff]
    %v302 = vld [vmem:[%s294 + $0x38] sm:$0xff]
    %v303 = vld [vmem:[%s294 + $0x40] sm:$0xff]
    %v304 = vld [vmem:[%s294 + $0x48] sm:$0xff]
    %v305 = vld [vmem:[%s294 + $0x50] sm:$0xff]
    %v306 = vld [vmem:[%s294 + $0x58] sm:$0xff]
    %v307 = vld [vmem:[%s294 + $0x60] sm:$0xff]
    %v308 = vld [vmem:[%s294 + $0x68] sm:$0xff]
    %v309 = vld [vmem:[%s294 + $0x70] sm:$0xff]
    %v310 = vld [vmem:[%s294 + $0x78] sm:$0xff]
    %311 = vmatprep.subr.mxu0 0.0
    %312 = vmatpush1.msra.mxu0 %v295
    %313 = vmatprep.subr.mxu0 0.0
    %314 = vmatpush1.msra.mxu0 %v296
    %315 = vmatprep.subr.mxu0 0.0
    %316 = vmatpush1.msra.mxu0 %v297
    %317 = vmatprep.subr.mxu0 0.0
    %318 = vmatpush1.msra.mxu0 %v298
    %319 = vmatprep.subr.mxu0 0.0
    %320 = vmatpush1.msra.mxu0 %v299
    %321 = vmatprep.subr.mxu0 0.0
    %322 = vmatpush1.msra.mxu0 %v300
    %323 = vmatprep.subr.mxu0 0.0
    %324 = vmatpush1.msra.mxu0 %v301
    %325 = vmatprep.subr.mxu0 0.0
    %326 = vmatpush1.msra.mxu0 %v302
    %327 = vmatprep.subr.mxu0 0.0
    %328 = vmatpush1.msra.mxu0 %v303
    %329 = vmatprep.subr.mxu0 0.0
    %330 = vmatpush1.msra.mxu0 %v304
    %331 = vmatprep.subr.mxu0 0.0
    %332 = vmatpush1.msra.mxu0 %v305
    %333 = vmatprep.subr.mxu0 0.0
    %334 = vmatpush1.msra.mxu0 %v306
    %335 = vmatprep.subr.mxu0 0.0
    %336 = vmatpush1.msra.mxu0 %v307
    %337 = vmatprep.subr.mxu0 0.0
    %338 = vmatpush1.msra.mxu0 %v308
    %339 = vmatprep.subr.mxu0 0.0
    %340 = vmatpush1.msra.mxu0 %v309
    %341 = vmatprep.subr.mxu0 0.0
    %342 = vmatpush1.msra.mxu0 %v310
    %343 = vmatprep.subr.mxu0 0.0
    %344 = vmatpush1.msra.mxu0 0.0
    %345 = vmatprep.subr.mxu0 0.0
    %346 = vmatpush1.msra.mxu0 0.0
    %347 = vmatprep.subr.mxu0 0.0
    %348 = vmatpush1.msra.mxu0 0.0
    %349 = vmatprep.subr.mxu0 0.0
    %350 = vmatpush1.msra.mxu0 0.0
    %351 = vmatprep.subr.mxu0 0.0
    %352 = vmatpush1.msra.mxu0 0.0
    %353 = vmatprep.subr.mxu0 0.0
    %354 = vmatpush1.msra.mxu0 0.0
    %355 = vmatprep.subr.mxu0 0.0
    %356 = vmatpush1.msra.mxu0 0.0
    %357 = vmatprep.subr.mxu0 0.0
    %358 = vmatpush1.msra.mxu0 0.0
    %359 = vmatprep.subr.mxu0 0.0
    %360 = vmatpush1.msra.mxu0 0.0
    %361 = vmatprep.subr.mxu0 0.0
    %362 = vmatpush1.msra.mxu0 0.0
    %363 = vmatprep.subr.mxu0 0.0
    %364 = vmatpush1.msra.mxu0 0.0
    %365 = vmatprep.subr.mxu0 0.0
    %366 = vmatpush1.msra.mxu0 0.0
    %367 = vmatprep.subr.mxu0 0.0
    %368 = vmatpush1.msra.mxu0 0.0
    %369 = vmatprep.subr.mxu0 0.0
    %370 = vmatpush1.msra.mxu0 0.0
    %371 = vmatprep.subr.mxu0 0.0
    %372 = vmatpush1.msra.mxu0 0.0
    %373 = vmatprep.subr.mxu0 0.0
    %374 = vmatpush1.msra.mxu0 0.0
    %375 = vmatprep.mubr.f32.mxu0 0.0
    %376 = vmatmul.mubr.f32.gmra.mrb[0].mxu0 %v290
    %v377 = vpop.f32.mrb[0].mxu0
    %v378 = vadd.f32 0.0, %v377
    %v379 = vpop.f32.mrb[0].mxu0
    %380 = vmatprep.mubr.f32.mxu0 0.0
    %381 = vmatmul.mubr.f32.gmra.mrb[0].mxu0 %v291
    %v382 = vpop.f32.mrb[0].mxu0
    %v383 = vadd.f32 0.0, %v382
    %v384 = vpop.f32.mrb[0].mxu0
    %385 = vmatprep.mubr.f32.mxu0 0.0
    %386 = vmatmul.mubr.f32.gmra.mrb[0].mxu0 %v292
    %v387 = vpop.f32.mrb[0].mxu0
    %v388 = vadd.f32 0.0, %v387
    %v389 = vpop.f32.mrb[0].mxu0
    %390 = vmatprep.mubr.f32.mxu0 0.0
    %391 = vmatmul.mubr.f32.gmra.mrb[0].mxu0 %v293
    %v392 = vpop.f32.mrb[0].mxu0
    %v393 = vadd.f32 0.0, %v392
    %v394 = vpop.f32.mrb[0].mxu0
    %395 = vdwg.mxu0
    %v396 = vadd.f32 %v272, %v378
    %v397 = vadd.f32 %v277, %v383
    %v398 = vadd.f32 %v282, %v388
    %v399 = vadd.f32 %v287, %v393
    %v400 = vld [vmem:[%s4] sm:$0x1]
    %v402 = vlaneseq
    %v403 = vshrl.u32 %v402, 7
    %v404 = vsub.s32 0, %v403
    %v405 = vrot.slane %v400, %v404
    %v407 = vadd.f32 %v396, %v405
    %v408 = vadd.f32 %v397, %v405
    %v409 = vadd.f32 %v398, %v405
    %v410 = vadd.f32 %v399, %v405
    %v411 = vadd.f32 %v407, %v408
    %v412 = vrot.slane %v411, 4
    %v413 = vadd.f32 %v411, %v412
    %v414 = vrot.slane %v413, 2
    %v415 = vadd.f32 %v413, %v414
    %v416 = vrot.slane %v415, 1
    %v417 = vadd.f32 %v415, %v416
    %v418 = vadd.f32 %v409, %v410
    %v419 = vrot.slane %v418, 4
    %v420 = vadd.f32 %v418, %v419
    %v421 = vrot.slane %v420, 2
    %v422 = vadd.f32 %v420, %v421
    %v423 = vrot.slane %v422, 1
    %v424 = vadd.f32 %v422, %v423
    %v425 = vmul.f32 %v407, %v407
    %v426 = vmul.f32 %v408, %v408
    %v427 = vmul.f32 %v409, %v409
    %v428 = vmul.f32 %v410, %v410
    %v429 = vadd.f32 %v425, %v426
    %v430 = vrot.slane %v429, 4
    %v431 = vadd.f32 %v429, %v430
    %v432 = vrot.slane %v431, 2
    %v433 = vadd.f32 %v431, %v432
    %v434 = vrot.slane %v433, 1
    %v435 = vadd.f32 %v433, %v434
    %v436 = vadd.f32 %v427, %v428
    %v437 = vrot.slane %v436, 4
    %v438 = vadd.f32 %v436, %v437
    %v439 = vrot.slane %v438, 2
    %v440 = vadd.f32 %v438, %v439
    %v441 = vrot.slane %v440, 1
    %v442 = vadd.f32 %v440, %v441
    %vm445 = vcmask 1041409
    %v446 = vsel %vm445, %v424, %v417
    %vm450 = vcmask 1043459
    %v451 = vsel %vm450, %v442, %v435
    %vm453 = vcmask 1041408
    %v454 = vsel %vm453, %v446, %v451
    %v455 = vld [vmem:[%s13] sm:$0xff]
    %v456 = vld [vmem:[%s13 + $0x8] sm:$0xff]
    %v457 = vld [vmem:[%s13 + $0x10] sm:$0xff]
    %v458 = vld [vmem:[%s13 + $0x18] sm:$0xff]
    %v459 = vld [vmem:[%s13 + $0x20] sm:$0xff]
    %v460 = vld [vmem:[%s13 + $0x28] sm:$0xff]
    %v461 = vld [vmem:[%s13 + $0x30] sm:$0xff]
    %v462 = vld [vmem:[%s13 + $0x38] sm:$0xff]
    %v463 = vld [vmem:[%s13 + $0x40] sm:$0xff]
    %v464 = vld [vmem:[%s13 + $0x48] sm:$0xff]
    %v465 = vld [vmem:[%s13 + $0x50] sm:$0xff]
    %v466 = vld [vmem:[%s13 + $0x58] sm:$0xff]
    %v467 = vld [vmem:[%s13 + $0x60] sm:$0xff]
    %v468 = vld [vmem:[%s13 + $0x68] sm:$0xff]
    %v469 = vld [vmem:[%s13 + $0x70] sm:$0xff]
    %v470 = vld [vmem:[%s13 + $0x78] sm:$0xff]
    %471 = vmatprep.subr.mxu0 0.0
    %472 = vmatpush1.msra.mxu0 %v455
    %473 = vmatprep.subr.mxu0 0.0
    %474 = vmatpush1.msra.mxu0 %v456
    %475 = vmatprep.subr.mxu0 0.0
    %476 = vmatpush1.msra.mxu0 %v457
    %477 = vmatprep.subr.mxu0 0.0
    %478 = vmatpush1.msra.mxu0 %v458
    %479 = vmatprep.subr.mxu0 0.0
    %480 = vmatpush1.msra.mxu0 %v459
    %481 = vmatprep.subr.mxu0 0.0
    %482 = vmatpush1.msra.mxu0 %v460
    %483 = vmatprep.subr.mxu0 0.0
    %484 = vmatpush1.msra.mxu0 %v461
    %485 = vmatprep.subr.mxu0 0.0
    %486 = vmatpush1.msra.mxu0 %v462
    %487 = vmatprep.subr.mxu0 0.0
    %488 = vmatpush1.msra.mxu0 %v463
    %489 = vmatprep.subr.mxu0 0.0
    %490 = vmatpush1.msra.mxu0 %v464
    %491 = vmatprep.subr.mxu0 0.0
    %492 = vmatpush1.msra.mxu0 %v465
    %493 = vmatprep.subr.mxu0 0.0
    %494 = vmatpush1.msra.mxu0 %v466
    %495 = vmatprep.subr.mxu0 0.0
    %496 = vmatpush1.msra.mxu0 %v467
    %497 = vmatprep.subr.mxu0 0.0
    %498 = vmatpush1.msra.mxu0 %v468
    %499 = vmatprep.subr.mxu0 0.0
    %500 = vmatpush1.msra.mxu0 %v469
    %501 = vmatprep.subr.mxu0 0.0
    %502 = vmatpush1.msra.mxu0 %v470
    %503 = vmatprep.subr.mxu0 0.0
    %504 = vmatpush1.msra.mxu0 0.0
    %505 = vmatprep.subr.mxu0 0.0
    %506 = vmatpush1.msra.mxu0 0.0
    %507 = vmatprep.subr.mxu0 0.0
    %508 = vmatpush1.msra.mxu0 0.0
    %509 = vmatprep.subr.mxu0 0.0
    %510 = vmatpush1.msra.mxu0 0.0
    %511 = vmatprep.subr.mxu0 0.0
    %512 = vmatpush1.msra.mxu0 0.0
    %513 = vmatprep.subr.mxu0 0.0
    %514 = vmatpush1.msra.mxu0 0.0
    %515 = vmatprep.subr.mxu0 0.0
    %516 = vmatpush1.msra.mxu0 0.0
    %517 = vmatprep.subr.mxu0 0.0
    %518 = vmatpush1.msra.mxu0 0.0
    %519 = vmatprep.subr.mxu0 0.0
    %520 = vmatpush1.msra.mxu0 0.0
    %521 = vmatprep.subr.mxu0 0.0
    %522 = vmatpush1.msra.mxu0 0.0
    %523 = vmatprep.subr.mxu0 0.0
    %524 = vmatpush1.msra.mxu0 0.0
    %525 = vmatprep.subr.mxu0 0.0
    %526 = vmatpush1.msra.mxu0 0.0
    %527 = vmatprep.subr.mxu0 0.0
    %528 = vmatpush1.msra.mxu0 0.0
    %529 = vmatprep.subr.mxu0 0.0
    %530 = vmatpush1.msra.mxu0 0.0
    %531 = vmatprep.subr.mxu0 0.0
    %532 = vmatpush1.msra.mxu0 0.0
    %533 = vmatprep.subr.mxu0 0.0
    %534 = vmatpush1.msra.mxu0 0.0
    %535 = vmatprep.mubr.f32.mxu0 0.0
    %536 = vmatmul.mubr.f32.gmra.mrb[0].mxu0 %v454
    %v537 = vpop.f32.mrb[0].mxu0
    %v538 = vadd.f32 0.0, %v537
    %v539 = vpop.f32.mrb[0].mxu0
    %540 = vdwg.mxu0
    %v541 = vmul.f32 %v538, 0.03125
    %v542 = vmul.f32 %v541, %v541
    %v544 = vrot.slane %v542, 6
    %v546 = vsub.f32 %v541, %v544
    %v547 = vmax.f32 %v546, 0.0
    %v548 = vadd.f32 %v547, 1e-05
    %v549 = vrsqrt.pop %v548
    %v550 = vsel %vm453, %v541, %v549
    %v551 = vld [vmem:[%s14] sm:$0xff]
    %vm552 = vcmask 64512
    %v554 = vsel %vm552, %v550, 0
    %556 = vmatprep.subr.mxu0 0.0
    %557 = vmatpush1.msra.mxu0 %v551
    %558 = vmatprep.subr.mxu0 0.0
    %559 = vmatpush1.msra.mxu0 0.0
    %560 = vmatprep.subr.mxu0 0.0
    %561 = vmatpush1.msra.mxu0 0.0
    %562 = vmatprep.subr.mxu0 0.0
    %563 = vmatpush1.msra.mxu0 0.0
    %564 = vmatprep.subr.mxu0 0.0
    %565 = vmatpush1.msra.mxu0 0.0
    %566 = vmatprep.subr.mxu0 0.0
    %567 = vmatpush1.msra.mxu0 0.0
    %568 = vmatprep.subr.mxu0 0.0
    %569 = vmatpush1.msra.mxu0 0.0
    %570 = vmatprep.subr.mxu0 0.0
    %571 = vmatpush1.msra.mxu0 0.0
    %572 = vmatprep.subr.mxu0 0.0
    %573 = vmatpush1.msra.mxu0 0.0
    %574 = vmatprep.subr.mxu0 0.0
    %575 = vmatpush1.msra.mxu0 0.0
    %576 = vmatprep.subr.mxu0 0.0
    %577 = vmatpush1.msra.mxu0 0.0
    %578 = vmatprep.subr.mxu0 0.0
    %579 = vmatpush1.msra.mxu0 0.0
    %580 = vmatprep.subr.mxu0 0.0
    %581 = vmatpush1.msra.mxu0 0.0
    %582 = vmatprep.subr.mxu0 0.0
    %583 = vmatpush1.msra.mxu0 0.0
    %584 = vmatprep.subr.mxu0 0.0
    %585 = vmatpush1.msra.mxu0 0.0
    %586 = vmatprep.subr.mxu0 0.0
    %587 = vmatpush1.msra.mxu0 0.0
    %588 = vmatprep.subr.mxu0 0.0
    %589 = vmatpush1.msra.mxu0 0.0
    %590 = vmatprep.subr.mxu0 0.0
    %591 = vmatpush1.msra.mxu0 0.0
    %592 = vmatprep.subr.mxu0 0.0
    %593 = vmatpush1.msra.mxu0 0.0
    %594 = vmatprep.subr.mxu0 0.0
    %595 = vmatpush1.msra.mxu0 0.0
    %596 = vmatprep.subr.mxu0 0.0
    %597 = vmatpush1.msra.mxu0 0.0
    %598 = vmatprep.subr.mxu0 0.0
    %599 = vmatpush1.msra.mxu0 0.0
    %600 = vmatprep.subr.mxu0 0.0
    %601 = vmatpush1.msra.mxu0 0.0
    %602 = vmatprep.subr.mxu0 0.0
    %603 = vmatpush1.msra.mxu0 0.0
    %604 = vmatprep.subr.mxu0 0.0
    %605 = vmatpush1.msra.mxu0 0.0
    %606 = vmatprep.subr.mxu0 0.0
    %607 = vmatpush1.msra.mxu0 0.0
    %608 = vmatprep.subr.mxu0 0.0
    %609 = vmatpush1.msra.mxu0 0.0
    %610 = vmatprep.subr.mxu0 0.0
    %611 = vmatpush1.msra.mxu0 0.0
    %612 = vmatprep.subr.mxu0 0.0
    %613 = vmatpush1.msra.mxu0 0.0
    %614 = vmatprep.subr.mxu0 0.0
    %615 = vmatpush1.msra.mxu0 0.0
    %616 = vmatprep.subr.mxu0 0.0
    %617 = vmatpush1.msra.mxu0 0.0
    %618 = vmatprep.subr.mxu0 0.0
    %619 = vmatpush1.msra.mxu0 0.0
    %620 = vmatprep.mubr.f32.mxu0 0.0
    %621 = vmatmul.mubr.f32.gmra.mrb[0].mxu0 %v554
    %v622 = vpop.f32.mrb[0].mxu0
    %v623 = vadd.f32 0.0, %v622
    %v624 = vpop.f32.mrb[0].mxu0
    %625 = vdwg.mxu0
    %v628 = vunpack.c.l.s4 1966171168
    %v629 = vunpack.c.0.s8 %v628
    %v630 = vlaneseq
    %v631 = vshrl.u32 %v630, 7
    %v632 = vsub.s32 %v629, %v631
    %v633 = vrot.slane %v623, %v632
    %v634 = vcombine.high %v633, %v633
    %v636 = vunpack.c.l.s4 1966171168
    %v637 = vunpack.c.0.s8 %v636
    %v638 = vlaneseq
    %v639 = vshrl.u32 %v638, 7
    %v640 = vsub.s32 %v637, %v639
    %v641 = vrot.slane %v633, %v640
    %v643 = vunpack.c.l.s4 1966171168
    %v644 = vunpack.c.0.s8 %v643
    %v645 = vlaneseq
    %v646 = vshrl.u32 %v645, 7
    %v647 = vsub.s32 %v644, %v646
    %v648 = vrot.slane %v634, %v647
    %v651 = vcombine.high %v641, %v641
    %v652 = vcombine.high %v648, %v648
    %v655 = vld [vmem:[%s5] sm:$0x1]
    %v656 = vmul.f32 %v651, %v655
    %v657 = vmul.f32 %v652, %v655
    %v658 = vld [vmem:[%s6] sm:$0x1]
    %v659 = vmul.f32 %v641, %v656
    %v660 = vmul.f32 %v648, %v657
    %v661 = vsub.f32 %v658, %v659
    %v662 = vsub.f32 %v658, %v660
    %v665 = vlaneseq
    %v666 = vshrl.u32 %v665, 7
    %v667 = vsub.s32 0, %v666
    %v668 = vrot.slane %v656, %v667
    %v669 = vlaneseq
    %v670 = vshrl.u32 %v669, 7
    %v671 = vsub.s32 0, %v670
    %v672 = vrot.slane %v657, %v671
    %v675 = vmul.f32 %v407, %v668
    %v676 = vmul.f32 %v408, %v668
    %v677 = vmul.f32 %v409, %v672
    %v678 = vmul.f32 %v410, %v672
    %v681 = vlaneseq
    %v682 = vshrl.u32 %v681, 7
    %v683 = vsub.s32 0, %v682
    %v684 = vrot.slane %v661, %v683
    %v685 = vlaneseq
    %v686 = vshrl.u32 %v685, 7
    %v687 = vsub.s32 0, %v686
    %v688 = vrot.slane %v662, %v687
    %v691 = vadd.f32 %v675, %v684
    %v692 = vadd.f32 %v676, %v684
    %v693 = vadd.f32 %v677, %v688
    %v694 = vadd.f32 %v678, %v688
    %v695 = vmin.f32 %v691, 20.0
    %v696 = vmin.f32 %v692, 20.0
    %v697 = vmin.f32 %v693, 20.0
    %v698 = vmin.f32 %v694, 20.0
    %v699 = vmul.f32 %v695, 1.442695
    %v700 = vpow.pop %v699
    %v701 = vmul.f32 %v696, 1.442695
    %v702 = vpow.pop %v701
    %v703 = vmul.f32 %v697, 1.442695
    %v704 = vpow.pop %v703
    %v705 = vmul.f32 %v698, 1.442695
    %v706 = vpow.pop %v705
    %v707 = vadd.f32 %v700, 2.0
    %v708 = vadd.f32 %v702, 2.0
    %v709 = vadd.f32 %v704, 2.0
    %v710 = vadd.f32 %v706, 2.0
    %v711 = vmul.f32 %v700, %v707
    %v712 = vmul.f32 %v702, %v708
    %v713 = vmul.f32 %v704, %v709
    %v714 = vmul.f32 %v706, %v710
    %v715 = vmul.f32 %v691, %v711
    %v716 = vmul.f32 %v692, %v712
    %v717 = vmul.f32 %v693, %v713
    %v718 = vmul.f32 %v694, %v714
    %v719 = vadd.f32 %v711, 2.0
    %v720 = vadd.f32 %v712, 2.0
    %v721 = vadd.f32 %v713, 2.0
    %v722 = vadd.f32 %v714, 2.0
    %v723 = vrcp.pop %v719
    %v724 = vrcp.pop %v720
    %v725 = vrcp.pop %v721
    %v726 = vrcp.pop %v722
    %v727 = vmul.f32 %v715, %v723
    %v728 = vmul.f32 %v716, %v724
    %v729 = vmul.f32 %v717, %v725
    %v730 = vmul.f32 %v718, %v726
    %vm731 = vcmp.gt.f32.partialorder %v691, 20.0
    %vm732 = vcmp.gt.f32.partialorder %v692, 20.0
    %vm733 = vcmp.gt.f32.partialorder %v693, 20.0
    %vm734 = vcmp.gt.f32.partialorder %v694, 20.0
    %v735 = vsel %vm731, %v691, %v727
    %v736 = vsel %vm732, %v692, %v728
    %v737 = vsel %vm733, %v693, %v729
    %v738 = vsel %vm734, %v694, %v730
    %v739 = vld [vmem:[%s1] sm:$0x1]
    %v740 = vld [vmem:[%s1 + $0x1] sm:$0x1]
    %v743 = vlaneseq
    %v744 = vshrl.u32 %v743, 7
    %v745 = vsub.s32 0, %v744
    %v746 = vrot.slane %v739, %v745
    %v747 = vlaneseq
    %v748 = vshrl.u32 %v747, 7
    %v749 = vsub.s32 0, %v748
    %v750 = vrot.slane %v740, %v749
    %v753 = vmul.f32 %v746, %v735
    %v754 = vmul.f32 %v746, %v736
    %v755 = vmul.f32 %v750, %v737
    %v756 = vmul.f32 %v750, %v738
    %v757 = vld [vmem:[%s2] sm:$0x1]
    %v758 = vld [vmem:[%s2 + $0x1] sm:$0x1]
    %v761 = vlaneseq
    %v762 = vshrl.u32 %v761, 7
    %v763 = vsub.s32 0, %v762
    %v764 = vrot.slane %v757, %v763
    %v765 = vlaneseq
    %v766 = vshrl.u32 %v765, 7
    %v767 = vsub.s32 0, %v766
    %v768 = vrot.slane %v758, %v767
    %v771 = vadd.f32 %v753, %v764
    %v772 = vadd.f32 %v754, %v764
    %v773 = vadd.f32 %v755, %v768
    %v774 = vadd.f32 %v756, %v768
    %775 = vst [vmem:[#allocation2] sm:$0x1] 0.0
    %776 = vst [vmem:[#allocation2 + $0x18] sm:$0x1] 0.0
    %777 = vst [vmem:[#allocation2 + $0x11] sm:$0x1] 0.0
    %778 = vst [vmem:[#allocation2 + $0x29] sm:$0x1] 0.0
    %779 = vst [vmem:[#allocation2 + $0x1] sm:$0xff] %v771
    %780 = vst [vmem:[#allocation2 + $0x9] sm:$0xff] %v772
    %781 = vst [vmem:[#allocation2 + $0x19] sm:$0xff] %v773
    %782 = vst [vmem:[#allocation2 + $0x21] sm:$0xff] %v774
    %v783 = vld [vmem:[#allocation2] sm:$0xff]
    %v784 = vld [vmem:[#allocation2 + $0x8] sm:$0xff]
    %v785 = vld [vmem:[#allocation2 + $0x18] sm:$0xff]
    %v786 = vld [vmem:[#allocation2 + $0x20] sm:$0xff]
    %v787 = vld [vmem:[#allocation6] sm:$0xff]
    %v788 = vld [vmem:[#allocation6 + $0x8] sm:$0xff]
    %v789 = vld [vmem:[#allocation6 + $0x10] sm:$0xff]
    %v790 = vld [vmem:[#allocation6 + $0x18] sm:$0xff]
    %v791 = vld [vmem:[#allocation6 + $0x20] sm:$0xff]
    %v792 = vld [vmem:[#allocation6 + $0x28] sm:$0xff]
    %v793 = vld [vmem:[#allocation6 + $0x30] sm:$0xff]
    %v794 = vld [vmem:[#allocation6 + $0x38] sm:$0xff]
    %v795 = vld [vmem:[#allocation6 + $0x40] sm:$0xff]
    %v796 = vld [vmem:[#allocation6 + $0x48] sm:$0xff]
    %v797 = vld [vmem:[#allocation6 + $0x50] sm:$0xff]
    %v798 = vld [vmem:[#allocation6 + $0x58] sm:$0xff]
    %v799 = vld [vmem:[#allocation6 + $0x60] sm:$0xff]
    %v800 = vld [vmem:[#allocation6 + $0x68] sm:$0xff]
    %v801 = vld [vmem:[#allocation6 + $0x70] sm:$0xff]
    %v802 = vld [vmem:[#allocation6 + $0x78] sm:$0xff]
    %v803 = vld [vmem:[#allocation2 + $0x1] sm:$0xff]
    %v804 = vld [vmem:[#allocation2 + $0x9] sm:$0xff]
    %v805 = vld [vmem:[#allocation2 + $0x19] sm:$0xff]
    %v806 = vld [vmem:[#allocation2 + $0x21] sm:$0xff]
    %s807 = scalar_lea.vmem [#allocation6], 128
    %v808 = vld [vmem:[%s807] sm:$0xff]
    %v809 = vld [vmem:[%s807 + $0x8] sm:$0xff]
    %v810 = vld [vmem:[%s807 + $0x10] sm:$0xff]
    %v811 = vld [vmem:[%s807 + $0x18] sm:$0xff]
    %v812 = vld [vmem:[%s807 + $0x20] sm:$0xff]
    %v813 = vld [vmem:[%s807 + $0x28] sm:$0xff]
    %v814 = vld [vmem:[%s807 + $0x30] sm:$0xff]
    %v815 = vld [vmem:[%s807 + $0x38] sm:$0xff]
    %v816 = vld [vmem:[%s807 + $0x40] sm:$0xff]
    %v817 = vld [vmem:[%s807 + $0x48] sm:$0xff]
    %v818 = vld [vmem:[%s807 + $0x50] sm:$0xff]
    %v819 = vld [vmem:[%s807 + $0x58] sm:$0xff]
    %v820 = vld [vmem:[%s807 + $0x60] sm:$0xff]
    %v821 = vld [vmem:[%s807 + $0x68] sm:$0xff]
    %v822 = vld [vmem:[%s807 + $0x70] sm:$0xff]
    %v823 = vld [vmem:[%s807 + $0x78] sm:$0xff]
    %824 = vmatprep.subr.mxu0 0.0
    %825 = vmatpush1.msra.mxu0 %v808
    %826 = vmatprep.subr.mxu0 0.0
    %827 = vmatpush1.msra.mxu0 %v809
    %828 = vmatprep.subr.mxu0 0.0
    %829 = vmatpush1.msra.mxu0 %v810
    %830 = vmatprep.subr.mxu0 0.0
    %831 = vmatpush1.msra.mxu0 %v811
    %832 = vmatprep.subr.mxu0 0.0
    %833 = vmatpush1.msra.mxu0 %v812
    %834 = vmatprep.subr.mxu0 0.0
    %835 = vmatpush1.msra.mxu0 %v813
    %836 = vmatprep.subr.mxu0 0.0
    %837 = vmatpush1.msra.mxu0 %v814
    %838 = vmatprep.subr.mxu0 0.0
    %839 = vmatpush1.msra.mxu0 %v815
    %840 = vmatprep.subr.mxu0 0.0
    %841 = vmatpush1.msra.mxu0 %v816
    %842 = vmatprep.subr.mxu0 0.0
    %843 = vmatpush1.msra.mxu0 %v817
    %844 = vmatprep.subr.mxu0 0.0
    %845 = vmatpush1.msra.mxu0 %v818
    %846 = vmatprep.subr.mxu0 0.0
    %847 = vmatpush1.msra.mxu0 %v819
    %848 = vmatprep.subr.mxu0 0.0
    %849 = vmatpush1.msra.mxu0 %v820
    %850 = vmatprep.subr.mxu0 0.0
    %851 = vmatpush1.msra.mxu0 %v821
    %852 = vmatprep.subr.mxu0 0.0
    %853 = vmatpush1.msra.mxu0 %v822
    %854 = vmatprep.subr.mxu0 0.0
    %855 = vmatpush1.msra.mxu0 %v823
    %856 = vmatprep.subr.mxu0 0.0
    %857 = vmatpush1.msra.mxu0 0.0
    %858 = vmatprep.subr.mxu0 0.0
    %859 = vmatpush1.msra.mxu0 0.0
    %860 = vmatprep.subr.mxu0 0.0
    %861 = vmatpush1.msra.mxu0 0.0
    %862 = vmatprep.subr.mxu0 0.0
    %863 = vmatpush1.msra.mxu0 0.0
    %864 = vmatprep.subr.mxu0 0.0
    %865 = vmatpush1.msra.mxu0 0.0
    %866 = vmatprep.subr.mxu0 0.0
    %867 = vmatpush1.msra.mxu0 0.0
    %868 = vmatprep.subr.mxu0 0.0
    %869 = vmatpush1.msra.mxu0 0.0
    %870 = vmatprep.subr.mxu0 0.0
    %871 = vmatpush1.msra.mxu0 0.0
    %872 = vmatprep.subr.mxu0 0.0
    %873 = vmatpush1.msra.mxu0 0.0
    %874 = vmatprep.subr.mxu0 0.0
    %875 = vmatpush1.msra.mxu0 0.0
    %876 = vmatprep.subr.mxu0 0.0
    %877 = vmatpush1.msra.mxu0 0.0
    %878 = vmatprep.subr.mxu0 0.0
    %879 = vmatpush1.msra.mxu0 0.0
    %880 = vmatprep.subr.mxu0 0.0
    %881 = vmatpush1.msra.mxu0 0.0
    %882 = vmatprep.subr.mxu0 0.0
    %883 = vmatpush1.msra.mxu0 0.0
    %884 = vmatprep.subr.mxu0 0.0
    %885 = vmatpush1.msra.mxu0 0.0
    %886 = vmatprep.subr.mxu0 0.0
    %887 = vmatpush1.msra.mxu0 0.0
    %888 = vmatprep.mubr.f32.mxu0 0.0
    %889 = vmatmul.mubr.f32.gmra.mrb[0].mxu0 %v803
    %v890 = vpop.f32.mrb[0].mxu0
    %v891 = vadd.f32 0.0, %v890
    %v892 = vpop.f32.mrb[0].mxu0
    %893 = vmatprep.mubr.f32.mxu0 0.0
    %894 = vmatmul.mubr.f32.gmra.mrb[0].mxu0 %v804
    %v895 = vpop.f32.mrb[0].mxu0
    %v896 = vadd.f32 0.0, %v895
    %v897 = vpop.f32.mrb[0].mxu0
    %898 = vmatprep.mubr.f32.mxu0 0.0
    %899 = vmatmul.mubr.f32.gmra.mrb[0].mxu0 %v805
    %v900 = vpop.f32.mrb[0].mxu0
    %v901 = vadd.f32 0.0, %v900
    %v902 = vpop.f32.mrb[0].mxu0
    %903 = vmatprep.mubr.f32.mxu0 0.0
    %904 = vmatmul.mubr.f32.gmra.mrb[0].mxu0 %v806
    %v905 = vpop.f32.mrb[0].mxu0
    %v906 = vadd.f32 0.0, %v905
    %v907 = vpop.f32.mrb[0].mxu0
    %908 = vdwg.mxu0
    %909 = vmatprep.subr.mxu0 0.0
    %910 = vmatpush1.msra.mxu0 %v787
    %911 = vmatprep.subr.mxu0 0.0
    %912 = vmatpush1.msra.mxu0 %v788
    %913 = vmatprep.subr.mxu0 0.0
    %914 = vmatpush1.msra.mxu0 %v789
    %915 = vmatprep.subr.mxu0 0.0
    %916 = vmatpush1.msra.mxu0 %v790
    %917 = vmatprep.subr.mxu0 0.0
    %918 = vmatpush1.msra.mxu0 %v791
    %919 = vmatprep.subr.mxu0 0.0
    %920 = vmatpush1.msra.mxu0 %v792
    %921 = vmatprep.subr.mxu0 0.0
    %922 = vmatpush1.msra.mxu0 %v793
    %923 = vmatprep.subr.mxu0 0.0
    %924 = vmatpush1.msra.mxu0 %v794
    %925 = vmatprep.subr.mxu0 0.0
    %926 = vmatpush1.msra.mxu0 %v795
    %927 = vmatprep.subr.mxu0 0.0
    %928 = vmatpush1.msra.mxu0 %v796
    %929 = vmatprep.subr.mxu0 0.0
    %930 = vmatpush1.msra.mxu0 %v797
    %931 = vmatprep.subr.mxu0 0.0
    %932 = vmatpush1.msra.mxu0 %v798
    %933 = vmatprep.subr.mxu0 0.0
    %934 = vmatpush1.msra.mxu0 %v799
    %935 = vmatprep.subr.mxu0 0.0
    %936 = vmatpush1.msra.mxu0 %v800
    %937 = vmatprep.subr.mxu0 0.0
    %938 = vmatpush1.msra.mxu0 %v801
    %939 = vmatprep.subr.mxu0 0.0
    %940 = vmatpush1.msra.mxu0 %v802
    %941 = vmatprep.subr.mxu0 0.0
    %942 = vmatpush1.msra.mxu0 0.0
    %943 = vmatprep.subr.mxu0 0.0
    %944 = vmatpush1.msra.mxu0 0.0
    %945 = vmatprep.subr.mxu0 0.0
    %946 = vmatpush1.msra.mxu0 0.0
    %947 = vmatprep.subr.mxu0 0.0
    %948 = vmatpush1.msra.mxu0 0.0
    %949 = vmatprep.subr.mxu0 0.0
    %950 = vmatpush1.msra.mxu0 0.0
    %951 = vmatprep.subr.mxu0 0.0
    %952 = vmatpush1.msra.mxu0 0.0
    %953 = vmatprep.subr.mxu0 0.0
    %954 = vmatpush1.msra.mxu0 0.0
    %955 = vmatprep.subr.mxu0 0.0
    %956 = vmatpush1.msra.mxu0 0.0
    %957 = vmatprep.subr.mxu0 0.0
    %958 = vmatpush1.msra.mxu0 0.0
    %959 = vmatprep.subr.mxu0 0.0
    %960 = vmatpush1.msra.mxu0 0.0
    %961 = vmatprep.subr.mxu0 0.0
    %962 = vmatpush1.msra.mxu0 0.0
    %963 = vmatprep.subr.mxu0 0.0
    %964 = vmatpush1.msra.mxu0 0.0
    %965 = vmatprep.subr.mxu0 0.0
    %966 = vmatpush1.msra.mxu0 0.0
    %967 = vmatprep.subr.mxu0 0.0
    %968 = vmatpush1.msra.mxu0 0.0
    %969 = vmatprep.subr.mxu0 0.0
    %970 = vmatpush1.msra.mxu0 0.0
    %971 = vmatprep.subr.mxu0 0.0
    %972 = vmatpush1.msra.mxu0 0.0
    %973 = vmatprep.mubr.f32.mxu0 0.0
    %974 = vmatmul.mubr.f32.gmra.mrb[0].mxu0 %v783
    %v975 = vpop.f32.mrb[0].mxu0
    %v976 = vadd.f32 %v891, %v975
    %v977 = vpop.f32.mrb[0].mxu0
    %978 = vmatprep.mubr.f32.mxu0 0.0
    %979 = vmatmul.mubr.f32.gmra.mrb[0].mxu0 %v784
    %v980 = vpop.f32.mrb[0].mxu0
    %v981 = vadd.f32 %v896, %v980
    %v982 = vpop.f32.mrb[0].mxu0
    %983 = vmatprep.mubr.f32.mxu0 0.0
    %984 = vmatmul.mubr.f32.gmra.mrb[0].mxu0 %v785
    %v985 = vpop.f32.mrb[0].mxu0
    %v986 = vadd.f32 %v901, %v985
    %v987 = vpop.f32.mrb[0].mxu0
    %988 = vmatprep.mubr.f32.mxu0 0.0
    %989 = vmatmul.mubr.f32.gmra.mrb[0].mxu0 %v786
    %v990 = vpop.f32.mrb[0].mxu0
    %v991 = vadd.f32 %v906, %v990
    %v992 = vpop.f32.mrb[0].mxu0
    %993 = vdwg.mxu0
    %v994 = vld [vmem:[#allocation2 + $0x2] sm:$0xff]
    %v995 = vld [vmem:[#allocation2 + $0xa] sm:$0xff]
    %v996 = vld [vmem:[#allocation2 + $0x1a] sm:$0xff]
    %v997 = vld [vmem:[#allocation2 + $0x22] sm:$0xff]
    %s998 = scalar_lea.vmem [#allocation6], 256
    %v999 = vld [vmem:[%s998] sm:$0xff]
    %v1000 = vld [vmem:[%s998 + $0x8] sm:$0xff]
    %v1001 = vld [vmem:[%s998 + $0x10] sm:$0xff]
    %v1002 = vld [vmem:[%s998 + $0x18] sm:$0xff]
    %v1003 = vld [vmem:[%s998 + $0x20] sm:$0xff]
    %v1004 = vld [vmem:[%s998 + $0x28] sm:$0xff]
    %v1005 = vld [vmem:[%s998 + $0x30] sm:$0xff]
    %v1006 = vld [vmem:[%s998 + $0x38] sm:$0xff]
    %v1007 = vld [vmem:[%s998 + $0x40] sm:$0xff]
    %v1008 = vld [vmem:[%s998 + $0x48] sm:$0xff]
    %v1009 = vld [vmem:[%s998 + $0x50] sm:$0xff]
    %v1010 = vld [vmem:[%s998 + $0x58] sm:$0xff]
    %v1011 = vld [vmem:[%s998 + $0x60] sm:$0xff]
    %v1012 = vld [vmem:[%s998 + $0x68] sm:$0xff]
    %v1013 = vld [vmem:[%s998 + $0x70] sm:$0xff]
    %v1014 = vld [vmem:[%s998 + $0x78] sm:$0xff]
    %1015 = vmatprep.subr.mxu0 0.0
    %1016 = vmatpush1.msra.mxu0 %v999
    %1017 = vmatprep.subr.mxu0 0.0
    %1018 = vmatpush1.msra.mxu0 %v1000
    %1019 = vmatprep.subr.mxu0 0.0
    %1020 = vmatpush1.msra.mxu0 %v1001
    %1021 = vmatprep.subr.mxu0 0.0
    %1022 = vmatpush1.msra.mxu0 %v1002
    %1023 = vmatprep.subr.mxu0 0.0
    %1024 = vmatpush1.msra.mxu0 %v1003
    %1025 = vmatprep.subr.mxu0 0.0
    %1026 = vmatpush1.msra.mxu0 %v1004
    %1027 = vmatprep.subr.mxu0 0.0
    %1028 = vmatpush1.msra.mxu0 %v1005
    %1029 = vmatprep.subr.mxu0 0.0
    %1030 = vmatpush1.msra.mxu0 %v1006
    %1031 = vmatprep.subr.mxu0 0.0
    %1032 = vmatpush1.msra.mxu0 %v1007
    %1033 = vmatprep.subr.mxu0 0.0
    %1034 = vmatpush1.msra.mxu0 %v1008
    %1035 = vmatprep.subr.mxu0 0.0
    %1036 = vmatpush1.msra.mxu0 %v1009
    %1037 = vmatprep.subr.mxu0 0.0
    %1038 = vmatpush1.msra.mxu0 %v1010
    %1039 = vmatprep.subr.mxu0 0.0
    %1040 = vmatpush1.msra.mxu0 %v1011
    %1041 = vmatprep.subr.mxu0 0.0
    %1042 = vmatpush1.msra.mxu0 %v1012
    %1043 = vmatprep.subr.mxu0 0.0
    %1044 = vmatpush1.msra.mxu0 %v1013
    %1045 = vmatprep.subr.mxu0 0.0
    %1046 = vmatpush1.msra.mxu0 %v1014
    %1047 = vmatprep.subr.mxu0 0.0
    %1048 = vmatpush1.msra.mxu0 0.0
    %1049 = vmatprep.subr.mxu0 0.0
    %1050 = vmatpush1.msra.mxu0 0.0
    %1051 = vmatprep.subr.mxu0 0.0
    %1052 = vmatpush1.msra.mxu0 0.0
    %1053 = vmatprep.subr.mxu0 0.0
    %1054 = vmatpush1.msra.mxu0 0.0
    %1055 = vmatprep.subr.mxu0 0.0
    %1056 = vmatpush1.msra.mxu0 0.0
    %1057 = vmatprep.subr.mxu0 0.0
    %1058 = vmatpush1.msra.mxu0 0.0
    %1059 = vmatprep.subr.mxu0 0.0
    %1060 = vmatpush1.msra.mxu0 0.0
    %1061 = vmatprep.subr.mxu0 0.0
    %1062 = vmatpush1.msra.mxu0 0.0
    %1063 = vmatprep.subr.mxu0 0.0
    %1064 = vmatpush1.msra.mxu0 0.0
    %1065 = vmatprep.subr.mxu0 0.0
    %1066 = vmatpush1.msra.mxu0 0.0
    %1067 = vmatprep.subr.mxu0 0.0
    %1068 = vmatpush1.msra.mxu0 0.0
    %1069 = vmatprep.subr.mxu0 0.0
    %1070 = vmatpush1.msra.mxu0 0.0
    %1071 = vmatprep.subr.mxu0 0.0
    %1072 = vmatpush1.msra.mxu0 0.0
    %1073 = vmatprep.subr.mxu0 0.0
    %1074 = vmatpush1.msra.mxu0 0.0
    %1075 = vmatprep.subr.mxu0 0.0
    %1076 = vmatpush1.msra.mxu0 0.0
    %1077 = vmatprep.subr.mxu0 0.0
    %1078 = vmatpush1.msra.mxu0 0.0
    %1079 = vmatprep.mubr.f32.mxu0 0.0
    %1080 = vmatmul.mubr.f32.gmra.mrb[0].mxu0 %v994
    %v1081 = vpop.f32.mrb[0].mxu0
    %v1082 = vadd.f32 0.0, %v1081
    %v1083 = vpop.f32.mrb[0].mxu0
    %1084 = vmatprep.mubr.f32.mxu0 0.0
    %1085 = vmatmul.mubr.f32.gmra.mrb[0].mxu0 %v995
    %v1086 = vpop.f32.mrb[0].mxu0
    %v1087 = vadd.f32 0.0, %v1086
    %v1088 = vpop.f32.mrb[0].mxu0
    %1089 = vmatprep.mubr.f32.mxu0 0.0
    %1090 = vmatmul.mubr.f32.gmra.mrb[0].mxu0 %v996
    %v1091 = vpop.f32.mrb[0].mxu0
    %v1092 = vadd.f32 0.0, %v1091
    %v1093 = vpop.f32.mrb[0].mxu0
    %1094 = vmatprep.mubr.f32.mxu0 0.0
    %1095 = vmatmul.mubr.f32.gmra.mrb[0].mxu0 %v997
    %v1096 = vpop.f32.mrb[0].mxu0
    %v1097 = vadd.f32 0.0, %v1096
    %v1098 = vpop.f32.mrb[0].mxu0
    %1099 = vdwg.mxu0
    %v1100 = vadd.f32 %v976, %v1082
    %v1101 = vadd.f32 %v981, %v1087
    %v1102 = vadd.f32 %v986, %v1092
    %v1103 = vadd.f32 %v991, %v1097
    %v1104 = vld [vmem:[%s8] sm:$0x1]
    %v1106 = vlaneseq
    %v1107 = vshrl.u32 %v1106, 7
    %v1108 = vsub.s32 0, %v1107
    %v1109 = vrot.slane %v1104, %v1108
    %v1111 = vadd.f32 %v1100, %v1109
    %v1112 = vadd.f32 %v1101, %v1109
    %v1113 = vadd.f32 %v1102, %v1109
    %v1114 = vadd.f32 %v1103, %v1109
    %v1115 = vadd.f32 %v1111, %v1112
    %v1116 = vrot.slane %v1115, 4
    %v1117 = vadd.f32 %v1115, %v1116
    %v1118 = vrot.slane %v1117, 2
    %v1119 = vadd.f32 %v1117, %v1118
    %v1120 = vrot.slane %v1119, 1
    %v1121 = vadd.f32 %v1119, %v1120
    %v1122 = vadd.f32 %v1113, %v1114
    %v1123 = vrot.slane %v1122, 4
    %v1124 = vadd.f32 %v1122, %v1123
    %v1125 = vrot.slane %v1124, 2
    %v1126 = vadd.f32 %v1124, %v1125
    %v1127 = vrot.slane %v1126, 1
    %v1128 = vadd.f32 %v1126, %v1127
    %v1129 = vmul.f32 %v1111, %v1111
    %v1130 = vmul.f32 %v1112, %v1112
    %v1131 = vmul.f32 %v1113, %v1113
    %v1132 = vmul.f32 %v1114, %v1114
    %v1133 = vadd.f32 %v1129, %v1130
    %v1134 = vrot.slane %v1133, 4
    %v1135 = vadd.f32 %v1133, %v1134
    %v1136 = vrot.slane %v1135, 2
    %v1137 = vadd.f32 %v1135, %v1136
    %v1138 = vrot.slane %v1137, 1
    %v1139 = vadd.f32 %v1137, %v1138
    %v1140 = vadd.f32 %v1131, %v1132
    %v1141 = vrot.slane %v1140, 4
    %v1142 = vadd.f32 %v1140, %v1141
    %v1143 = vrot.slane %v1142, 2
    %v1144 = vadd.f32 %v1142, %v1143
    %v1145 = vrot.slane %v1144, 1
    %v1146 = vadd.f32 %v1144, %v1145
    %v1149 = vsel %vm445, %v1128, %v1121
    %v1153 = vsel %vm450, %v1146, %v1139
    %v1155 = vsel %vm453, %v1149, %v1153
    %v1156 = vld [vmem:[%s13] sm:$0xff]
    %v1157 = vld [vmem:[%s13 + $0x8] sm:$0xff]
    %v1158 = vld [vmem:[%s13 + $0x10] sm:$0xff]
    %v1159 = vld [vmem:[%s13 + $0x18] sm:$0xff]
    %v1160 = vld [vmem:[%s13 + $0x20] sm:$0xff]
    %v1161 = vld [vmem:[%s13 + $0x28] sm:$0xff]
    %v1162 = vld [vmem:[%s13 + $0x30] sm:$0xff]
    %v1163 = vld [vmem:[%s13 + $0x38] sm:$0xff]
    %v1164 = vld [vmem:[%s13 + $0x40] sm:$0xff]
    %v1165 = vld [vmem:[%s13 + $0x48] sm:$0xff]
    %v1166 = vld [vmem:[%s13 + $0x50] sm:$0xff]
    %v1167 = vld [vmem:[%s13 + $0x58] sm:$0xff]
    %v1168 = vld [vmem:[%s13 + $0x60] sm:$0xff]
    %v1169 = vld [vmem:[%s13 + $0x68] sm:$0xff]
    %v1170 = vld [vmem:[%s13 + $0x70] sm:$0xff]
    %v1171 = vld [vmem:[%s13 + $0x78] sm:$0xff]
    %1172 = vmatprep.subr.mxu0 0.0
    %1173 = vmatpush1.msra.mxu0 %v1156
    %1174 = vmatprep.subr.mxu0 0.0
    %1175 = vmatpush1.msra.mxu0 %v1157
    %1176 = vmatprep.subr.mxu0 0.0
    %1177 = vmatpush1.msra.mxu0 %v1158
    %1178 = vmatprep.subr.mxu0 0.0
    %1179 = vmatpush1.msra.mxu0 %v1159
    %1180 = vmatprep.subr.mxu0 0.0
    %1181 = vmatpush1.msra.mxu0 %v1160
    %1182 = vmatprep.subr.mxu0 0.0
    %1183 = vmatpush1.msra.mxu0 %v1161
    %1184 = vmatprep.subr.mxu0 0.0
    %1185 = vmatpush1.msra.mxu0 %v1162
    %1186 = vmatprep.subr.mxu0 0.0
    %1187 = vmatpush1.msra.mxu0 %v1163
    %1188 = vmatprep.subr.mxu0 0.0
    %1189 = vmatpush1.msra.mxu0 %v1164
    %1190 = vmatprep.subr.mxu0 0.0
    %1191 = vmatpush1.msra.mxu0 %v1165
    %1192 = vmatprep.subr.mxu0 0.0
    %1193 = vmatpush1.msra.mxu0 %v1166
    %1194 = vmatprep.subr.mxu0 0.0
    %1195 = vmatpush1.msra.mxu0 %v1167
    %1196 = vmatprep.subr.mxu0 0.0
    %1197 = vmatpush1.msra.mxu0 %v1168
    %1198 = vmatprep.subr.mxu0 0.0
    %1199 = vmatpush1.msra.mxu0 %v1169
    %1200 = vmatprep.subr.mxu0 0.0
    %1201 = vmatpush1.msra.mxu0 %v1170
    %1202 = vmatprep.subr.mxu0 0.0
    %1203 = vmatpush1.msra.mxu0 %v1171
    %1204 = vmatprep.subr.mxu0 0.0
    %1205 = vmatpush1.msra.mxu0 0.0
    %1206 = vmatprep.subr.mxu0 0.0
    %1207 = vmatpush1.msra.mxu0 0.0
    %1208 = vmatprep.subr.mxu0 0.0
    %1209 = vmatpush1.msra.mxu0 0.0
    %1210 = vmatprep.subr.mxu0 0.0
    %1211 = vmatpush1.msra.mxu0 0.0
    %1212 = vmatprep.subr.mxu0 0.0
    %1213 = vmatpush1.msra.mxu0 0.0
    %1214 = vmatprep.subr.mxu0 0.0
    %1215 = vmatpush1.msra.mxu0 0.0
    %1216 = vmatprep.subr.mxu0 0.0
    %1217 = vmatpush1.msra.mxu0 0.0
    %1218 = vmatprep.subr.mxu0 0.0
    %1219 = vmatpush1.msra.mxu0 0.0
    %1220 = vmatprep.subr.mxu0 0.0
    %1221 = vmatpush1.msra.mxu0 0.0
    %1222 = vmatprep.subr.mxu0 0.0
    %1223 = vmatpush1.msra.mxu0 0.0
    %1224 = vmatprep.subr.mxu0 0.0
    %1225 = vmatpush1.msra.mxu0 0.0
    %1226 = vmatprep.subr.mxu0 0.0
    %1227 = vmatpush1.msra.mxu0 0.0
    %1228 = vmatprep.subr.mxu0 0.0
    %1229 = vmatpush1.msra.mxu0 0.0
    %1230 = vmatprep.subr.mxu0 0.0
    %1231 = vmatpush1.msra.mxu0 0.0
    %1232 = vmatprep.subr.mxu0 0.0
    %1233 = vmatpush1.msra.mxu0 0.0
    %1234 = vmatprep.subr.mxu0 0.0
    %1235 = vmatpush1.msra.mxu0 0.0
    %1236 = vmatprep.mubr.f32.mxu0 0.0
    %1237 = vmatmul.mubr.f32.gmra.mrb[0].mxu0 %v1155
    %v1238 = vpop.f32.mrb[0].mxu0
    %v1239 = vadd.f32 0.0, %v1238
    %v1240 = vpop.f32.mrb[0].mxu0
    %1241 = vdwg.mxu0
    %v1242 = vmul.f32 %v1239, 0.03125
    %v1243 = vmul.f32 %v1242, %v1242
    %v1245 = vrot.slane %v1243, 6
    %v1247 = vsub.f32 %v1242, %v1245
    %v1248 = vmax.f32 %v1247, 0.0
    %v1249 = vadd.f32 %v1248, 1e-05
    %v1250 = vrsqrt.pop %v1249
    %v1251 = vsel %vm453, %v1242, %v1250
    %v1252 = vld [vmem:[%s14] sm:$0xff]
    %v1254 = vsel %vm552, %v1251, 0
    %1256 = vmatprep.subr.mxu0 0.0
    %1257 = vmatpush1.msra.mxu0 %v1252
    %1258 = vmatprep.subr.mxu0 0.0
    %1259 = vmatpush1.msra.mxu0 0.0
    %1260 = vmatprep.subr.mxu0 0.0
    %1261 = vmatpush1.msra.mxu0 0.0
    %1262 = vmatprep.subr.mxu0 0.0
    %1263 = vmatpush1.msra.mxu0 0.0
    %1264 = vmatprep.subr.mxu0 0.0
    %1265 = vmatpush1.msra.mxu0 0.0
    %1266 = vmatprep.subr.mxu0 0.0
    %1267 = vmatpush1.msra.mxu0 0.0
    %1268 = vmatprep.subr.mxu0 0.0
    %1269 = vmatpush1.msra.mxu0 0.0
    %1270 = vmatprep.subr.mxu0 0.0
    %1271 = vmatpush1.msra.mxu0 0.0
    %1272 = vmatprep.subr.mxu0 0.0
    %1273 = vmatpush1.msra.mxu0 0.0
    %1274 = vmatprep.subr.mxu0 0.0
    %1275 = vmatpush1.msra.mxu0 0.0
    %1276 = vmatprep.subr.mxu0 0.0
    %1277 = vmatpush1.msra.mxu0 0.0
    %1278 = vmatprep.subr.mxu0 0.0
    %1279 = vmatpush1.msra.mxu0 0.0
    %1280 = vmatprep.subr.mxu0 0.0
    %1281 = vmatpush1.msra.mxu0 0.0
    %1282 = vmatprep.subr.mxu0 0.0
    %1283 = vmatpush1.msra.mxu0 0.0
    %1284 = vmatprep.subr.mxu0 0.0
    %1285 = vmatpush1.msra.mxu0 0.0
    %1286 = vmatprep.subr.mxu0 0.0
    %1287 = vmatpush1.msra.mxu0 0.0
    %1288 = vmatprep.subr.mxu0 0.0
    %1289 = vmatpush1.msra.mxu0 0.0
    %1290 = vmatprep.subr.mxu0 0.0
    %1291 = vmatpush1.msra.mxu0 0.0
    %1292 = vmatprep.subr.mxu0 0.0
    %1293 = vmatpush1.msra.mxu0 0.0
    %1294 = vmatprep.subr.mxu0 0.0
    %1295 = vmatpush1.msra.mxu0 0.0
    %1296 = vmatprep.subr.mxu0 0.0
    %1297 = vmatpush1.msra.mxu0 0.0
    %1298 = vmatprep.subr.mxu0 0.0
    %1299 = vmatpush1.msra.mxu0 0.0
    %1300 = vmatprep.subr.mxu0 0.0
    %1301 = vmatpush1.msra.mxu0 0.0
    %1302 = vmatprep.subr.mxu0 0.0
    %1303 = vmatpush1.msra.mxu0 0.0
    %1304 = vmatprep.subr.mxu0 0.0
    %1305 = vmatpush1.msra.mxu0 0.0
    %1306 = vmatprep.subr.mxu0 0.0
    %1307 = vmatpush1.msra.mxu0 0.0
    %1308 = vmatprep.subr.mxu0 0.0
    %1309 = vmatpush1.msra.mxu0 0.0
    %1310 = vmatprep.subr.mxu0 0.0
    %1311 = vmatpush1.msra.mxu0 0.0
    %1312 = vmatprep.subr.mxu0 0.0
    %1313 = vmatpush1.msra.mxu0 0.0
    %1314 = vmatprep.subr.mxu0 0.0
    %1315 = vmatpush1.msra.mxu0 0.0
    %1316 = vmatprep.subr.mxu0 0.0
    %1317 = vmatpush1.msra.mxu0 0.0
    %1318 = vmatprep.subr.mxu0 0.0
    %1319 = vmatpush1.msra.mxu0 0.0
    %1320 = vmatprep.mubr.f32.mxu0 0.0
    %1321 = vmatmul.mubr.f32.gmra.mrb[0].mxu0 %v1254
    %v1322 = vpop.f32.mrb[0].mxu0
    %v1323 = vadd.f32 0.0, %v1322
    %v1324 = vpop.f32.mrb[0].mxu0
    %1325 = vdwg.mxu0
    %v1328 = vunpack.c.l.s4 1966171168
    %v1329 = vunpack.c.0.s8 %v1328
    %v1330 = vlaneseq
    %v1331 = vshrl.u32 %v1330, 7
    %v1332 = vsub.s32 %v1329, %v1331
    %v1333 = vrot.slane %v1323, %v1332
    %v1334 = vcombine.high %v1333, %v1333
    %v1336 = vunpack.c.l.s4 1966171168
    %v1337 = vunpack.c.0.s8 %v1336
    %v1338 = vlaneseq
    %v1339 = vshrl.u32 %v1338, 7
    %v1340 = vsub.s32 %v1337, %v1339
    %v1341 = vrot.slane %v1333, %v1340
    %v1343 = vunpack.c.l.s4 1966171168
    %v1344 = vunpack.c.0.s8 %v1343
    %v1345 = vlaneseq
    %v1346 = vshrl.u32 %v1345, 7
    %v1347 = vsub.s32 %v1344, %v1346
    %v1348 = vrot.slane %v1334, %v1347
    %v1351 = vcombine.high %v1341, %v1341
    %v1352 = vcombine.high %v1348, %v1348
    %v1355 = vld [vmem:[%s9] sm:$0x1]
    %v1356 = vmul.f32 %v1351, %v1355
    %v1357 = vmul.f32 %v1352, %v1355
    %v1358 = vld [vmem:[%s10] sm:$0x1]
    %v1359 = vmul.f32 %v1341, %v1356
    %v1360 = vmul.f32 %v1348, %v1357
    %v1361 = vsub.f32 %v1358, %v1359
    %v1362 = vsub.f32 %v1358, %v1360
    %v1365 = vlaneseq
    %v1366 = vshrl.u32 %v1365, 7
    %v1367 = vsub.s32 0, %v1366
    %v1368 = vrot.slane %v1356, %v1367
    %v1369 = vlaneseq
    %v1370 = vshrl.u32 %v1369, 7
    %v1371 = vsub.s32 0, %v1370
    %v1372 = vrot.slane %v1357, %v1371
    %v1375 = vmul.f32 %v1111, %v1368
    %v1376 = vmul.f32 %v1112, %v1368
    %v1377 = vmul.f32 %v1113, %v1372
    %v1378 = vmul.f32 %v1114, %v1372
    %v1381 = vlaneseq
    %v1382 = vshrl.u32 %v1381, 7
    %v1383 = vsub.s32 0, %v1382
    %v1384 = vrot.slane %v1361, %v1383
    %v1385 = vlaneseq
    %v1386 = vshrl.u32 %v1385, 7
    %v1387 = vsub.s32 0, %v1386
    %v1388 = vrot.slane %v1362, %v1387
    %v1391 = vadd.f32 %v1375, %v1384
    %v1392 = vadd.f32 %v1376, %v1384
    %v1393 = vadd.f32 %v1377, %v1388
    %v1394 = vadd.f32 %v1378, %v1388
    %v1395 = vmin.f32 %v1391, 20.0
    %v1396 = vmin.f32 %v1392, 20.0
    %v1397 = vmin.f32 %v1393, 20.0
    %v1398 = vmin.f32 %v1394, 20.0
    %v1399 = vmul.f32 %v1395, 1.442695
    %v1400 = vpow.pop %v1399
    %v1401 = vmul.f32 %v1396, 1.442695
    %v1402 = vpow.pop %v1401
    %v1403 = vmul.f32 %v1397, 1.442695
    %v1404 = vpow.pop %v1403
    %v1405 = vmul.f32 %v1398, 1.442695
    %v1406 = vpow.pop %v1405
    %v1407 = vadd.f32 %v1400, 2.0
    %v1408 = vadd.f32 %v1402, 2.0
    %v1409 = vadd.f32 %v1404, 2.0
    %v1410 = vadd.f32 %v1406, 2.0
    %v1411 = vmul.f32 %v1400, %v1407
    %v1412 = vmul.f32 %v1402, %v1408
    %v1413 = vmul.f32 %v1404, %v1409
    %v1414 = vmul.f32 %v1406, %v1410
    %v1415 = vmul.f32 %v1391, %v1411
    %v1416 = vmul.f32 %v1392, %v1412
    %v1417 = vmul.f32 %v1393, %v1413
    %v1418 = vmul.f32 %v1394, %v1414
    %v1419 = vadd.f32 %v1411, 2.0
    %v1420 = vadd.f32 %v1412, 2.0
    %v1421 = vadd.f32 %v1413, 2.0
    %v1422 = vadd.f32 %v1414, 2.0
    %v1423 = vrcp.pop %v1419
    %v1424 = vrcp.pop %v1420
    %v1425 = vrcp.pop %v1421
    %v1426 = vrcp.pop %v1422
    %v1427 = vmul.f32 %v1415, %v1423
    %v1428 = vmul.f32 %v1416, %v1424
    %v1429 = vmul.f32 %v1417, %v1425
    %v1430 = vmul.f32 %v1418, %v1426
    %vm1431 = vcmp.gt.f32.partialorder %v1391, 20.0
    %vm1432 = vcmp.gt.f32.partialorder %v1392, 20.0
    %vm1433 = vcmp.gt.f32.partialorder %v1393, 20.0
    %vm1434 = vcmp.gt.f32.partialorder %v1394, 20.0
    %v1435 = vsel %vm1431, %v1391, %v1427
    %v1436 = vsel %vm1432, %v1392, %v1428
    %v1437 = vsel %vm1433, %v1393, %v1429
    %v1438 = vsel %vm1434, %v1394, %v1430
    %v1439 = vld [vmem:[%s0 + $0x1] sm:$0xff]
    %v1440 = vld [vmem:[%s0 + $0x9] sm:$0xff]
    %v1441 = vld [vmem:[%s0 + $0x19] sm:$0xff]
    %v1442 = vld [vmem:[%s0 + $0x21] sm:$0xff]
    %v1443 = vld [vmem:[%s11] sm:$0xff]
    %v1444 = vld [vmem:[%s11 + $0x8] sm:$0xff]
    %v1445 = vld [vmem:[%s11 + $0x10] sm:$0xff]
    %v1446 = vld [vmem:[%s11 + $0x18] sm:$0xff]
    %v1447 = vld [vmem:[%s11 + $0x20] sm:$0xff]
    %v1448 = vld [vmem:[%s11 + $0x28] sm:$0xff]
    %v1449 = vld [vmem:[%s11 + $0x30] sm:$0xff]
    %v1450 = vld [vmem:[%s11 + $0x38] sm:$0xff]
    %v1451 = vld [vmem:[%s11 + $0x40] sm:$0xff]
    %v1452 = vld [vmem:[%s11 + $0x48] sm:$0xff]
    %v1453 = vld [vmem:[%s11 + $0x50] sm:$0xff]
    %v1454 = vld [vmem:[%s11 + $0x58] sm:$0xff]
    %v1455 = vld [vmem:[%s11 + $0x60] sm:$0xff]
    %v1456 = vld [vmem:[%s11 + $0x68] sm:$0xff]
    %v1457 = vld [vmem:[%s11 + $0x70] sm:$0xff]
    %v1458 = vld [vmem:[%s11 + $0x78] sm:$0xff]
    %v1459 = vld [vmem:[%s12] sm:$0x1]
    %v1461 = vlaneseq
    %v1462 = vshrl.u32 %v1461, 7
    %v1463 = vsub.s32 0, %v1462
    %v1464 = vrot.slane %v1459, %v1463
    %1466 = vmatprep.subr.mxu0 0.0
    %1467 = vmatpush1.msra.mxu0 %v1443
    %1468 = vmatprep.subr.mxu0 0.0
    %1469 = vmatpush1.msra.mxu0 %v1444
    %1470 = vmatprep.subr.mxu0 0.0
    %1471 = vmatpush1.msra.mxu0 %v1445
    %1472 = vmatprep.subr.mxu0 0.0
    %1473 = vmatpush1.msra.mxu0 %v1446
    %1474 = vmatprep.subr.mxu0 0.0
    %1475 = vmatpush1.msra.mxu0 %v1447
    %1476 = vmatprep.subr.mxu0 0.0
    %1477 = vmatpush1.msra.mxu0 %v1448
    %1478 = vmatprep.subr.mxu0 0.0
    %1479 = vmatpush1.msra.mxu0 %v1449
    %1480 = vmatprep.subr.mxu0 0.0
    %1481 = vmatpush1.msra.mxu0 %v1450
    %1482 = vmatprep.subr.mxu0 0.0
    %1483 = vmatpush1.msra.mxu0 %v1451
    %1484 = vmatprep.subr.mxu0 0.0
    %1485 = vmatpush1.msra.mxu0 %v1452
    %1486 = vmatprep.subr.mxu0 0.0
    %1487 = vmatpush1.msra.mxu0 %v1453
    %1488 = vmatprep.subr.mxu0 0.0
    %1489 = vmatpush1.msra.mxu0 %v1454
    %1490 = vmatprep.subr.mxu0 0.0
    %1491 = vmatpush1.msra.mxu0 %v1455
    %1492 = vmatprep.subr.mxu0 0.0
    %1493 = vmatpush1.msra.mxu0 %v1456
    %1494 = vmatprep.subr.mxu0 0.0
    %1495 = vmatpush1.msra.mxu0 %v1457
    %1496 = vmatprep.subr.mxu0 0.0
    %1497 = vmatpush1.msra.mxu0 %v1458
    %1498 = vmatprep.subr.mxu0 0.0
    %1499 = vmatpush1.msra.mxu0 0.0
    %1500 = vmatprep.subr.mxu0 0.0
    %1501 = vmatpush1.msra.mxu0 0.0
    %1502 = vmatprep.subr.mxu0 0.0
    %1503 = vmatpush1.msra.mxu0 0.0
    %1504 = vmatprep.subr.mxu0 0.0
    %1505 = vmatpush1.msra.mxu0 0.0
    %1506 = vmatprep.subr.mxu0 0.0
    %1507 = vmatpush1.msra.mxu0 0.0
    %1508 = vmatprep.subr.mxu0 0.0
    %1509 = vmatpush1.msra.mxu0 0.0
    %1510 = vmatprep.subr.mxu0 0.0
    %1511 = vmatpush1.msra.mxu0 0.0
    %1512 = vmatprep.subr.mxu0 0.0
    %1513 = vmatpush1.msra.mxu0 0.0
    %1514 = vmatprep.subr.mxu0 0.0
    %1515 = vmatpush1.msra.mxu0 0.0
    %1516 = vmatprep.subr.mxu0 0.0
    %1517 = vmatpush1.msra.mxu0 0.0
    %1518 = vmatprep.subr.mxu0 0.0
    %1519 = vmatpush1.msra.mxu0 0.0
    %1520 = vmatprep.subr.mxu0 0.0
    %1521 = vmatpush1.msra.mxu0 0.0
    %1522 = vmatprep.subr.mxu0 0.0
    %1523 = vmatpush1.msra.mxu0 0.0
    %1524 = vmatprep.subr.mxu0 0.0
    %1525 = vmatpush1.msra.mxu0 0.0
    %1526 = vmatprep.subr.mxu0 0.0
    %1527 = vmatpush1.msra.mxu0 0.0
    %1528 = vmatprep.subr.mxu0 0.0
    %1529 = vmatpush1.msra.mxu0 0.0
    %1530 = vmatprep.mubr.f32.mxu0 0.0
    %1531 = vmatmul.mubr.f32.gmra.mrb[0].mxu0 %v1439
    %v1532 = vpop.f32.mrb[0].mxu0
    %v1533 = vadd.f32 %v1464, %v1532
    %v1534 = vpop.f32.mrb[0].mxu0
    %1535 = vmatprep.mubr.f32.mxu0 0.0
    %1536 = vmatmul.mubr.f32.gmra.mrb[0].mxu0 %v1440
    %v1537 = vpop.f32.mrb[0].mxu0
    %v1538 = vadd.f32 %v1464, %v1537
    %v1539 = vpop.f32.mrb[0].mxu0
    %1540 = vmatprep.mubr.f32.mxu0 0.0
    %1541 = vmatmul.mubr.f32.gmra.mrb[0].mxu0 %v1441
    %v1542 = vpop.f32.mrb[0].mxu0
    %v1543 = vadd.f32 %v1464, %v1542
    %v1544 = vpop.f32.mrb[0].mxu0
    %1545 = vmatprep.mubr.f32.mxu0 0.0
    %1546 = vmatmul.mubr.f32.gmra.mrb[0].mxu0 %v1442
    %v1547 = vpop.f32.mrb[0].mxu0
    %v1548 = vadd.f32 %v1464, %v1547
    %v1549 = vpop.f32.mrb[0].mxu0
    %1550 = vdwg.mxu0
    %v1551 = vadd.f32 %v1435, %v1533
    %v1552 = vadd.f32 %v1436, %v1538
    %v1553 = vadd.f32 %v1437, %v1543
    %v1554 = vadd.f32 %v1438, %v1548
    %1555 = vst [vmem:[#allocation8] sm:$0xff] %v1551
    %1556 = vst [vmem:[#allocation8 + $0x8] sm:$0xff] %v1552
    %1557 = vst [vmem:[#allocation8 + $0x10] sm:$0xff] %v1553
    %1558 = vst [vmem:[#allocation8 + $0x18] sm:$0xff] %v1554
    // Predicated region
    $region70: #{tpu_custom_call.1} parent=1 // pred_check
      _
    $region71: #{tpu_custom_call.1} parent=1 // pred_check_branch
      %1560 = sbr.rel (0) target = $region73
    $region72: #{tpu_custom_call.1} parent=1 // pred_region
      %s1562 = ssub.s32 512, 512
      %1563 = vsyncadd [#allocation5], %s1562
      %s1564 = sshll.u32 [#allocation8], 4
      %s1565 = int_to_ptr.vmem [resolvable:$true] %s1564
      %1570 = dma.vmem_to_hbm [thread:$0]  %s1565, 512, %s15, [#allocation5], 128, 128, 8
    $region73: #{tpu_custom_call.1} parent=1 // pred_fallthru
      _
    // Predicated region
    $region74: #{tpu_custom_call.1} parent=1 // pred_check
      _
    $region75: #{tpu_custom_call.1} parent=1 // pred_check_branch
      %1572 = sbr.rel (0) target = $region77
    $region76: #{tpu_custom_call.1} parent=1 // pred_region
      %1573 = dma.done [#allocation5], 512
    $region77: #{tpu_custom_call.1} parent=1 // pred_fallthru
      _
    %1574 = vsyncpa [#allocation4], 1
    %1575 = vsyncpa [#allocation7], 1
    %1576 = vsyncpa [#allocation5], 1

</llo_original>
